<compile_context>
chip_gen: v6e
topology: v6e:2x2x1
jax: 0.10.0
libtpu: 0.0.40
codegen_flags: <defaults>
</compile_context>

<pallas_src>
import functools

import jax
import jax.numpy as jnp
from jax.experimental import pallas as pl
from jax.experimental.pallas import tpu as pltpu


# ---------------------------------------------------------------------------
# Fused Pallas kernel: full Sparse_layer forward for Nb batch elements.
# ---------------------------------------------------------------------------
def _fused_sparse_kernel(x_ref, wmain_ref, bmain_ref, wlast_ref, blast_ref,
                         maskm_ref, maskl_ref, o_ref, col_ref,
                         *, H, W, F, K, Kf, L, Nb):
    # x_ref    : (Nb, F, H*W)        input images, channels 2:F zero-padded on host
    # wmain_ref: (L, F, K*K*F)       stacked 3x3 conv weights, transposed (BN folded)
    # bmain_ref: (L, F, 1)           stacked biases
    # wlast_ref: (2, Kf*Kf*F)        final conv weights, transposed
    # blast_ref: (2, 1)              final conv bias
    # maskm_ref: (K*K,  Nb*H*W)      0/1 'same'-padding masks per 3x3 tap
    # maskl_ref: (Kf*Kf, Nb*H*W)     0/1 masks per final-conv tap
    # o_ref    : (Nb, 2, H*W)        output (real, imag channels), lane-dense
    # col_ref  : (kk_max*F, Nb*H*W)  VMEM im2col buffer (single MXU matmul feed)
    HW = H * W

    # Lane-dense activation (F, Nb*HW): images concatenated along the lane axis
    # (each image is a 128-multiple of lanes, so this concat is fully aligned).
    if Nb == 1:
        x = x_ref[0]
    else:
        x = jnp.concatenate([x_ref[i] for i in range(Nb)], axis=1)

    def build_col(k, mask_ref):
        # im2col in the transposed layout: col[t*F:(t+1)*F, :] = shift_t(x) * mask_t.
        # A tap offset (dy, dx) is a static lane roll by (dy-p)*W + (dx-p); the mask
        # zeroes every position whose 2-D neighbour is outside the image (zero 'same'
        # padding) and every wrapped position (image borders / cross-image).
        p = k // 2
        for t in range(k * k):                            # static unroll over taps
            dy, dx = t // k, t % k
            s = (dy - p) * W + (dx - p)
            tap = x if s == 0 else jnp.roll(x, -s, axis=1)
            if not (dy == p and dx == p):                 # centre-tap mask is all ones
                tap = tap * mask_ref[t:t + 1, :]
            col_ref[t * F:(t + 1) * F, :] = tap           # aligned full-lane store

    # Main 3x3 stack: conv2d_relu, (layer_num-2) x conv2d_bn_relu (BN folded), conv2d.
    # The first layer's weight rows for channels >= 2 are zero and the corresponding
    # input channels are zero-padded on the host, so the stack is uniform.
    for l in range(L):                                    # static unroll over layers
        build_col(K, maskm_ref)
        y = jnp.dot(wmain_ref[l], col_ref[:K * K * F, :],
                    preferred_element_type=jnp.float32)
        y = y + bmain_ref[l]                              # (F, 1) lane broadcast
        if l < L - 1:                                     # ReLU on all but the last
            y = jnp.maximum(y, 0.0)
        x = y                                             # stays in vregs

    # Sparse_layer final conv: F -> 2 (real, imag), kernel Kf, no activation.
    build_col(Kf, maskl_ref)
    y = jnp.dot(wlast_ref[...], col_ref[:Kf * Kf * F, :],
                preferred_element_type=jnp.float32)
    y = y + blast_ref[...]
    for i in range(Nb):                                   # lane-dense (2, HW) stores
        o_ref[i] = y[:, i * HW:(i + 1) * HW].astype(o_ref.dtype)


# ---------------------------------------------------------------------------
# Host-side helpers.
# ---------------------------------------------------------------------------
def _tap_masks(k, H, W, Nb):
    """0/1 f32 masks, one row per tap, marking positions whose (dy,dx) neighbour
    lies inside the image ('same' zero padding in the flattened lane layout)."""
    p = k // 2
    yy = jnp.arange(H)[:, None]
    xx = jnp.arange(W)[None, :]
    rows = []
    for t in range(k * k):
        dy, dx = t // k, t % k
        vy = (yy + dy - p >= 0) & (yy + dy - p < H)
        vx = (xx + dx - p >= 0) & (xx + dx - p < W)
        rows.append((vy & vx).reshape(-1))
    m = jnp.stack(rows).astype(jnp.float32)               # (k*k, H*W)
    return jnp.tile(m, (1, Nb)) if Nb > 1 else m          # (k*k, Nb*H*W)


def init_params(key, filter_num, layer_num, filter_size):
    """Deterministic synthetic parameters mirroring Sparse_layer.__init__, already in
    the MXU-facing transposed layout the fused kernel expects."""
    F, K, Kf = filter_num, 3, filter_size
    keys = jax.random.split(key, 2 * (layer_num + 1))
    ki = 0

    def w_init(k, kh, kw, cin, cout):
        return 0.1 * jax.random.normal(k, (kh, kw, cin, cout), jnp.float32)

    def b_init(k, c):
        return 0.01 * jax.random.normal(k, (c,), jnp.float32)

    ws, bs = [], []

    # conv2d_relu(2, filter_num, 3); zero-pad Cin 2 -> F so the stack is uniform
    # (the matching input channels are zero-padded on the host as well).
    w1 = w_init(keys[ki], K, K, 2, F); ki += 1
    b1 = b_init(keys[ki], F); ki += 1
    ws.append(jnp.pad(w1, ((0, 0), (0, 0), (0, F - 2), (0, 0))))
    bs.append(b1)

    # (layer_num - 2) x conv2d_bn_relu(F, F, 3): eval-mode BN (default stats) folded.
    bn_scale = 1.0 / jnp.sqrt(1.0 + 1e-5)
    for _ in range(layer_num - 2):
        w = w_init(keys[ki], K, K, F, F); ki += 1
        b = b_init(keys[ki], F); ki += 1
        ws.append(w * bn_scale)
        bs.append(b * bn_scale)

    # final conv2d(F, F, 3) of Conv_layer (no relu).
    w3 = w_init(keys[ki], K, K, F, F); ki += 1
    b3 = b_init(keys[ki], F); ki += 1
    ws.append(w3)
    bs.append(b3)

    # Transposed, stacked layouts (row order of col is tap-major, channel-minor).
    wmainT = jnp.stack([w.reshape(K * K * F, F).T for w in ws])    # (L, F, K*K*F)
    bmain = jnp.stack([b.reshape(F, 1) for b in bs])               # (L, F, 1)

    # Sparse_layer.conv2d(F, 2, filter_size).
    w4 = w_init(keys[ki], Kf, Kf, F, 2); ki += 1
    b4 = b_init(keys[ki], 2); ki += 1
    wlastT = w4.reshape(Kf * Kf * F, 2).T                          # (2, Kf*Kf*F)
    blast = b4.reshape(2, 1)                                       # (2, 1)

    return dict(wmainT=wmainT, bmain=bmain, wlastT=wlastT, blast=blast, K=K, Kf=Kf)


# ---------------------------------------------------------------------------
# Sparse_layer forward (single fused pallas_call).
# ---------------------------------------------------------------------------
def sparse_layer_forward(x_complex, params, images_per_step=None):
    # torch_complex2double: complex (N,1,H,W) -> real (N,2,H,W) NCHW.  The kernel works
    # in a lane-dense (C, H*W) layout, so only reshapes are needed (no transposes).
    xr = jnp.concatenate([jnp.real(x_complex), jnp.imag(x_complex)], axis=1)
    N, _, H, W = xr.shape
    HW = H * W

    wmainT, bmain = params["wmainT"], params["bmain"]
    wlastT, blast = params["wlastT"], params["blast"]
    K, Kf = params["K"], params["Kf"]
    L, F = wmainT.shape[0], wmainT.shape[1]

    # Fold several images into the matmul M (lane) dim per grid step, but keep the grid
    # length >= 2 so both v7x TensorCores get work (no-op on single-TC v5e/v6e).
    if images_per_step is None:
        images_per_step = N // 2 if (N % 2 == 0 and N >= 4) else 1
    Nb = images_per_step
    assert N % Nb == 0, "images_per_step must divide the batch"
    grid_n = N // Nb
    M = Nb * HW

    # Zero-pad input channels 2 -> F on the host (tiny DMA cost) so every im2col write
    # is an aligned full (F, M) store and the weight stack stays uniform.
    x = xr.reshape(N, 2, HW).astype(jnp.float32)
    x = jnp.pad(x, ((0, 0), (0, F - 2), (0, 0)))                   # (N, F, HW)

    mask_main = _tap_masks(K, H, W, Nb)
    mask_last = mask_main if Kf == K else _tap_masks(Kf, H, W, Nb)

    kk_max = max(K * K, Kf * Kf)
    kernel = functools.partial(_fused_sparse_kernel,
                               H=H, W=W, F=F, K=K, Kf=Kf, L=L, Nb=Nb)

    y = pl.pallas_call(
        kernel,
        out_shape=jax.ShapeDtypeStruct((N, 2, HW), jnp.float32),
        grid_spec=pltpu.PrefetchScalarGridSpec(
            num_scalar_prefetch=0,
            grid=(grid_n,),
            in_specs=[
                pl.BlockSpec((Nb, F, HW), lambda n: (n, 0, 0)),     # per-step images
                pl.BlockSpec(wmainT.shape, lambda n: (0, 0, 0)),    # resident weights
                pl.BlockSpec(bmain.shape, lambda n: (0, 0, 0)),
                pl.BlockSpec(wlastT.shape, lambda n: (0, 0)),
                pl.BlockSpec(blast.shape, lambda n: (0, 0)),
                pl.BlockSpec(mask_main.shape, lambda n: (0, 0)),    # resident masks
                pl.BlockSpec(mask_last.shape, lambda n: (0, 0)),
            ],
            out_specs=pl.BlockSpec((Nb, 2, HW), lambda n: (n, 0, 0)),
            scratch_shapes=[
                pltpu.VMEM((kk_max * F, M), jnp.float32),           # im2col buffer
            ],
        ),
        compiler_params=pltpu.CompilerParams(
            dimension_semantics=("parallel",),
        ),
    )(x, wmainT, bmain, wlastT, blast, mask_main, mask_last)

    # (N, 2, H*W) is already NCHW-flattened: reshape, then torch_double2complex.
    y = y.reshape(N, 2, H, W)
    return (y[:, 0:1, :, :] + 1j * y[:, 1:2, :, :]).astype(jnp.complex64)


# ---------------------------------------------------------------------------
# Pure-JAX reference (lax convs) for a correctness check of the fused kernel.
# ---------------------------------------------------------------------------
def _reference_forward(x_complex, params):
    xr = jnp.concatenate([jnp.real(x_complex), jnp.imag(x_complex)], axis=1)
    x = jnp.transpose(xr, (0, 2, 3, 1)).astype(jnp.float32)        # NHWC, Cin=2
    wmainT, bmain = params["wmainT"], params["bmain"]
    wlastT, blast = params["wlastT"], params["blast"]
    K, Kf = params["K"], params["Kf"]
    L, F = wmainT.shape[0], wmainT.shape[1]
    x = jnp.pad(x, ((0, 0), (0, 0), (0, 0), (0, F - x.shape[-1])))  # match padded Cin
    dn = jax.lax.conv_dimension_numbers(x.shape, (K, K, F, F), ("NHWC", "HWIO", "NHWC"))
    for l in range(L):
        w = wmainT[l].T.reshape(K, K, F, F)
        x = jax.lax.conv_general_dilated(x, w, (1, 1), "SAME", dimension_numbers=dn)
        x = x + bmain[l][:, 0]
        if l < L - 1:
            x = jnp.maximum(x, 0.0)
    w_last = wlastT.T.reshape(Kf, Kf, F, 2)
    dn2 = jax.lax.conv_dimension_numbers(x.shape, (Kf, Kf, F, 2), ("NHWC", "HWIO", "NHWC"))
    x = jax.lax.conv_general_dilated(x, w_last, (1, 1), "SAME", dimension_numbers=dn2)
    x = x + blast[:, 0]
    y = jnp.transpose(x, (0, 3, 1, 2))
    return (y[:, 0:1, :, :] + 1j * y[:, 1:2, :, :]).astype(jnp.complex64)


if __name__ == "__main__":
    # args: filter_num=8, layer_num=3 (one conv_bn_relu block), filter_size=3.
    # N=4 so the kernel exercises both batch folding (Nb=2) and a grid of 2 steps.
    FILTER_NUM, LAYER_NUM, FILTER_SIZE = 8, 3, 3
    N, H, W = 4, 16, 16

    key = jax.random.PRNGKey(0)
    k_in_r, k_in_i, k_p = jax.random.split(key, 3)
    x_complex = (jax.random.normal(k_in_r, (N, 1, H, W), jnp.float32)
                 + 1j * jax.random.normal(k_in_i, (N, 1, H, W), jnp.float32)
                 ).astype(jnp.complex64)

    params = init_params(k_p, FILTER_NUM, LAYER_NUM, FILTER_SIZE)

    out = sparse_layer_forward(x_complex, params)
    out = jax.block_until_ready(out)
    assert out.shape == (N, 1, H, W) and out.dtype == jnp.complex64

    ref = jax.block_until_ready(_reference_forward(x_complex, params))
    assert jnp.allclose(out, ref, atol=1e-4, rtol=1e-4), "fused kernel mismatch vs reference"

    print("KERNEL_OK")
</pallas_src>

<mosaic_0001>
module attributes {stable_mosaic.version = 11 : i64} {
  func.func @_fused_sparse_kernel(%arg0: i32, %arg1: memref<2x8x256xf32, #tpu.memory_space<vmem>>, %arg2: memref<3x8x72xf32, #tpu.memory_space<vmem>>, %arg3: memref<3x8x1xf32, #tpu.memory_space<vmem>>, %arg4: memref<2x72xf32, #tpu.memory_space<vmem>>, %arg5: memref<2x1xf32, #tpu.memory_space<vmem>>, %arg6: memref<9x512xf32, #tpu.memory_space<vmem>>, %arg7: memref<9x512xf32, #tpu.memory_space<vmem>>, %arg8: memref<2x2x256xf32, #tpu.memory_space<vmem>>, %arg9: memref<72x512xf32, #tpu.memory_space<vmem>>) attributes {dimension_semantics = [#tpu.dimension_semantics<parallel>], iteration_bounds = array<i64: 2>, scalar_prefetch = 0 : i64, scratch_operands = 1 : i64, tpu.core_type = #tpu.core_type<tc>, window_params = [{transform_indices = @transform_0, window_bounds = array<i64: 2, 8, 256>}, {pipeline_mode = #tpu.pipeline_mode<synchronous>, transform_indices = @transform_1, window_bounds = array<i64: 3, 8, 72>}, {pipeline_mode = #tpu.pipeline_mode<synchronous>, transform_indices = @transform_2, window_bounds = array<i64: 3, 8, 1>}, {pipeline_mode = #tpu.pipeline_mode<synchronous>, transform_indices = @transform_3, window_bounds = array<i64: 2, 72>}, {pipeline_mode = #tpu.pipeline_mode<synchronous>, transform_indices = @transform_4, window_bounds = array<i64: 2, 1>}, {pipeline_mode = #tpu.pipeline_mode<synchronous>, transform_indices = @transform_5, window_bounds = array<i64: 9, 512>}, {pipeline_mode = #tpu.pipeline_mode<synchronous>, transform_indices = @transform_6, window_bounds = array<i64: 9, 512>}, {transform_indices = @transform_7, window_bounds = array<i64: 2, 2, 256>}]} {
    %c0 = arith.constant 0 : index
    %c0_0 = arith.constant 0 : index
    %c0_1 = arith.constant 0 : index
    %0 = vector.load %arg1[%c0, %c0_0, %c0_1] : memref<2x8x256xf32, #tpu.memory_space<vmem>>, vector<1x8x256xf32>
    %1 = vector.shape_cast %0 : vector<1x8x256xf32> to vector<8x256xf32>
    %c1 = arith.constant 1 : index
    %c0_2 = arith.constant 0 : index
    %c0_3 = arith.constant 0 : index
    %2 = vector.load %arg1[%c1, %c0_2, %c0_3] : memref<2x8x256xf32, #tpu.memory_space<vmem>>, vector<1x8x256xf32>
    %3 = vector.shape_cast %2 : vector<1x8x256xf32> to vector<8x256xf32>
    %4 = tpu.concatenate %1, %3 in 1 : vector<8x256xf32>, vector<8x256xf32> -> vector<8x512xf32>
    %5 = vector.extract_strided_slice %4 {offsets = [0, 495], sizes = [8, 17], strides = [1, 1]} : vector<8x512xf32> to vector<8x17xf32>
    %6 = vector.extract_strided_slice %4 {offsets = [0, 0], sizes = [8, 495], strides = [1, 1]} : vector<8x512xf32> to vector<8x495xf32>
    %7 = tpu.concatenate %5, %6 in 1 : vector<8x17xf32>, vector<8x495xf32> -> vector<8x512xf32>
    %c0_4 = arith.constant 0 : index
    %c0_5 = arith.constant 0 : index
    %8 = vector.load %arg6[%c0_4, %c0_5] : memref<9x512xf32, #tpu.memory_space<vmem>>, vector<1x512xf32>
    %9 = vector.broadcast %8 : vector<1x512xf32> to vector<8x512xf32>
    %10 = arith.mulf %7, %9 : vector<8x512xf32>
    %c0_6 = arith.constant 0 : index
    %c0_7 = arith.constant 0 : index
    %11 = vector.load %arg9[%c0_6, %c0_7] : memref<72x512xf32, #tpu.memory_space<vmem>>, vector<8x512xf32>
    tpu.vector_store %arg9[%c0_6, %c0_7], %10 {strides = array<i32>} : memref<72x512xf32, #tpu.memory_space<vmem>>, vector<8x512xf32>,
    %12 = vector.extract_strided_slice %4 {offsets = [0, 496], sizes = [8, 16], strides = [1, 1]} : vector<8x512xf32> to vector<8x16xf32>
    %13 = vector.extract_strided_slice %4 {offsets = [0, 0], sizes = [8, 496], strides = [1, 1]} : vector<8x512xf32> to vector<8x496xf32>
    %14 = tpu.concatenate %12, %13 in 1 : vector<8x16xf32>, vector<8x496xf32> -> vector<8x512xf32>
    %c1_8 = arith.constant 1 : index
    %c0_9 = arith.constant 0 : index
    %15 = vector.load %arg6[%c1_8, %c0_9] : memref<9x512xf32, #tpu.memory_space<vmem>>, vector<1x512xf32>
    %16 = vector.broadcast %15 : vector<1x512xf32> to vector<8x512xf32>
    %17 = arith.mulf %14, %16 : vector<8x512xf32>
    %c8 = arith.constant 8 : index
    %c0_10 = arith.constant 0 : index
    %18 = vector.load %arg9[%c8, %c0_10] : memref<72x512xf32, #tpu.memory_space<vmem>>, vector<8x512xf32>
    tpu.vector_store %arg9[%c8, %c0_10], %17 {strides = array<i32>} : memref<72x512xf32, #tpu.memory_space<vmem>>, vector<8x512xf32>,
    %19 = vector.extract_strided_slice %4 {offsets = [0, 497], sizes = [8, 15], strides = [1, 1]} : vector<8x512xf32> to vector<8x15xf32>
    %20 = vector.extract_strided_slice %4 {offsets = [0, 0], sizes = [8, 497], strides = [1, 1]} : vector<8x512xf32> to vector<8x497xf32>
    %21 = tpu.concatenate %19, %20 in 1 : vector<8x15xf32>, vector<8x497xf32> -> vector<8x512xf32>
    %c2 = arith.constant 2 : index
    %c0_11 = arith.constant 0 : index
    %22 = vector.load %arg6[%c2, %c0_11] : memref<9x512xf32, #tpu.memory_space<vmem>>, vector<1x512xf32>
    %23 = vector.broadcast %22 : vector<1x512xf32> to vector<8x512xf32>
    %24 = arith.mulf %21, %23 : vector<8x512xf32>
    %c16 = arith.constant 16 : index
    %c0_12 = arith.constant 0 : index
    %25 = vector.load %arg9[%c16, %c0_12] : memref<72x512xf32, #tpu.memory_space<vmem>>, vector<8x512xf32>
    tpu.vector_store %arg9[%c16, %c0_12], %24 {strides = array<i32>} : memref<72x512xf32, #tpu.memory_space<vmem>>, vector<8x512xf32>,
    %26 = vector.extract_strided_slice %4 {offsets = [0, 511], sizes = [8, 1], strides = [1, 1]} : vector<8x512xf32> to vector<8x1xf32>
    %27 = vector.extract_strided_slice %4 {offsets = [0, 0], sizes = [8, 511], strides = [1, 1]} : vector<8x512xf32> to vector<8x511xf32>
    %28 = tpu.concatenate %26, %27 in 1 : vector<8x1xf32>, vector<8x511xf32> -> vector<8x512xf32>
    %c3 = arith.constant 3 : index
    %c0_13 = arith.constant 0 : index
    %29 = vector.load %arg6[%c3, %c0_13] : memref<9x512xf32, #tpu.memory_space<vmem>>, vector<1x512xf32>
    %30 = vector.broadcast %29 : vector<1x512xf32> to vector<8x512xf32>
    %31 = arith.mulf %28, %30 : vector<8x512xf32>
    %c24 = arith.constant 24 : index
    %c0_14 = arith.constant 0 : index
    %32 = vector.load %arg9[%c24, %c0_14] : memref<72x512xf32, #tpu.memory_space<vmem>>, vector<8x512xf32>
    tpu.vector_store %arg9[%c24, %c0_14], %31 {strides = array<i32>} : memref<72x512xf32, #tpu.memory_space<vmem>>, vector<8x512xf32>,
    %c32 = arith.constant 32 : index
    %c0_15 = arith.constant 0 : index
    %33 = vector.load %arg9[%c32, %c0_15] : memref<72x512xf32, #tpu.memory_space<vmem>>, vector<8x512xf32>
    tpu.vector_store %arg9[%c32, %c0_15], %4 {strides = array<i32>} : memref<72x512xf32, #tpu.memory_space<vmem>>, vector<8x512xf32>,
    %34 = vector.extract_strided_slice %4 {offsets = [0, 1], sizes = [8, 511], strides = [1, 1]} : vector<8x512xf32> to vector<8x511xf32>
    %35 = vector.extract_strided_slice %4 {offsets = [0, 0], sizes = [8, 1], strides = [1, 1]} : vector<8x512xf32> to vector<8x1xf32>
    %36 = tpu.concatenate %34, %35 in 1 : vector<8x511xf32>, vector<8x1xf32> -> vector<8x512xf32>
    %c5 = arith.constant 5 : index
    %c0_16 = arith.constant 0 : index
    %37 = vector.load %arg6[%c5, %c0_16] : memref<9x512xf32, #tpu.memory_space<vmem>>, vector<1x512xf32>
    %38 = vector.broadcast %37 : vector<1x512xf32> to vector<8x512xf32>
    %39 = arith.mulf %36, %38 : vector<8x512xf32>
    %c40 = arith.constant 40 : index
    %c0_17 = arith.constant 0 : index
    %40 = vector.load %arg9[%c40, %c0_17] : memref<72x512xf32, #tpu.memory_space<vmem>>, vector<8x512xf32>
    tpu.vector_store %arg9[%c40, %c0_17], %39 {strides = array<i32>} : memref<72x512xf32, #tpu.memory_space<vmem>>, vector<8x512xf32>,
    %41 = vector.extract_strided_slice %4 {offsets = [0, 15], sizes = [8, 497], strides = [1, 1]} : vector<8x512xf32> to vector<8x497xf32>
    %42 = vector.extract_strided_slice %4 {offsets = [0, 0], sizes = [8, 15], strides = [1, 1]} : vector<8x512xf32> to vector<8x15xf32>
    %43 = tpu.concatenate %41, %42 in 1 : vector<8x497xf32>, vector<8x15xf32> -> vector<8x512xf32>
    %c6 = arith.constant 6 : index
    %c0_18 = arith.constant 0 : index
    %44 = vector.load %arg6[%c6, %c0_18] : memref<9x512xf32, #tpu.memory_space<vmem>>, vector<1x512xf32>
    %45 = vector.broadcast %44 : vector<1x512xf32> to vector<8x512xf32>
    %46 = arith.mulf %43, %45 : vector<8x512xf32>
    %c48 = arith.constant 48 : index
    %c0_19 = arith.constant 0 : index
    %47 = vector.load %arg9[%c48, %c0_19] : memref<72x512xf32, #tpu.memory_space<vmem>>, vector<8x512xf32>
    tpu.vector_store %arg9[%c48, %c0_19], %46 {strides = array<i32>} : memref<72x512xf32, #tpu.memory_space<vmem>>, vector<8x512xf32>,
    %48 = vector.extract_strided_slice %4 {offsets = [0, 16], sizes = [8, 496], strides = [1, 1]} : vector<8x512xf32> to vector<8x496xf32>
    %49 = vector.extract_strided_slice %4 {offsets = [0, 0], sizes = [8, 16], strides = [1, 1]} : vector<8x512xf32> to vector<8x16xf32>
    %50 = tpu.concatenate %48, %49 in 1 : vector<8x496xf32>, vector<8x16xf32> -> vector<8x512xf32>
    %c7 = arith.constant 7 : index
    %c0_20 = arith.constant 0 : index
    %51 = vector.load %arg6[%c7, %c0_20] : memref<9x512xf32, #tpu.memory_space<vmem>>, vector<1x512xf32>
    %52 = vector.broadcast %51 : vector<1x512xf32> to vector<8x512xf32>
    %53 = arith.mulf %50, %52 : vector<8x512xf32>
    %c56 = arith.constant 56 : index
    %c0_21 = arith.constant 0 : index
    %54 = vector.load %arg9[%c56, %c0_21] : memref<72x512xf32, #tpu.memory_space<vmem>>, vector<8x512xf32>
    tpu.vector_store %arg9[%c56, %c0_21], %53 {strides = array<i32>} : memref<72x512xf32, #tpu.memory_space<vmem>>, vector<8x512xf32>,
    %55 = vector.extract_strided_slice %4 {offsets = [0, 17], sizes = [8, 495], strides = [1, 1]} : vector<8x512xf32> to vector<8x495xf32>
    %56 = vector.extract_strided_slice %4 {offsets = [0, 0], sizes = [8, 17], strides = [1, 1]} : vector<8x512xf32> to vector<8x17xf32>
    %57 = tpu.concatenate %55, %56 in 1 : vector<8x495xf32>, vector<8x17xf32> -> vector<8x512xf32>
    %c8_22 = arith.constant 8 : index
    %c0_23 = arith.constant 0 : index
    %58 = vector.load %arg6[%c8_22, %c0_23] : memref<9x512xf32, #tpu.memory_space<vmem>>, vector<1x512xf32>
    %59 = vector.broadcast %58 : vector<1x512xf32> to vector<8x512xf32>
    %60 = arith.mulf %57, %59 : vector<8x512xf32>
    %c64 = arith.constant 64 : index
    %c0_24 = arith.constant 0 : index
    %61 = vector.load %arg9[%c64, %c0_24] : memref<72x512xf32, #tpu.memory_space<vmem>>, vector<8x512xf32>
    tpu.vector_store %arg9[%c64, %c0_24], %60 {strides = array<i32>} : memref<72x512xf32, #tpu.memory_space<vmem>>, vector<8x512xf32>,
    %c0_25 = arith.constant 0 : index
    %c0_26 = arith.constant 0 : index
    %c0_27 = arith.constant 0 : index
    %62 = vector.load %arg2[%c0_25, %c0_26, %c0_27] : memref<3x8x72xf32, #tpu.memory_space<vmem>>, vector<1x8x72xf32>
    %63 = vector.shape_cast %62 : vector<1x8x72xf32> to vector<8x72xf32>
    %c0_28 = arith.constant 0 : index
    %c0_29 = arith.constant 0 : index
    %64 = vector.load %arg9[%c0_28, %c0_29] : memref<72x512xf32, #tpu.memory_space<vmem>>, vector<72x512xf32>
    %cst = arith.constant dense<0.000000e+00> : vector<8x512xf32>
    %65 = tpu.matmul %63, %64, %cst {dimension_numbers = #tpu.dot_dimension_numbers<[1], [0], [0], [1], [0, 0, 1, 1], [], []>} : vector<8x72xf32>, vector<72x512xf32>, vector<8x512xf32> -> vector<8x512xf32>
    %c0_30 = arith.constant 0 : index
    %c0_31 = arith.constant 0 : index
    %c0_32 = arith.constant 0 : index
    %66 = vector.load %arg3[%c0_30, %c0_31, %c0_32] : memref<3x8x1xf32, #tpu.memory_space<vmem>>, vector<1x8x1xf32>
    %67 = vector.shape_cast %66 : vector<1x8x1xf32> to vector<8x1xf32>
    %68 = vector.broadcast %67 : vector<8x1xf32> to vector<8x512xf32>
    %69 = arith.addf %65, %68 : vector<8x512xf32>
    %cst_33 = arith.constant 0.000000e+00 : f32
    %70 = vector.broadcast %cst_33 : f32 to vector<8x512xf32>
    %71 = arith.maximumf %69, %70 : vector<8x512xf32>
    %72 = vector.extract_strided_slice %71 {offsets = [0, 495], sizes = [8, 17], strides = [1, 1]} : vector<8x512xf32> to vector<8x17xf32>
    %73 = vector.extract_strided_slice %71 {offsets = [0, 0], sizes = [8, 495], strides = [1, 1]} : vector<8x512xf32> to vector<8x495xf32>
    %74 = tpu.concatenate %72, %73 in 1 : vector<8x17xf32>, vector<8x495xf32> -> vector<8x512xf32>
    %c0_34 = arith.constant 0 : index
    %c0_35 = arith.constant 0 : index
    %75 = vector.load %arg6[%c0_34, %c0_35] : memref<9x512xf32, #tpu.memory_space<vmem>>, vector<1x512xf32>
    %76 = vector.broadcast %75 : vector<1x512xf32> to vector<8x512xf32>
    %77 = arith.mulf %74, %76 : vector<8x512xf32>
    %c0_36 = arith.constant 0 : index
    %c0_37 = arith.constant 0 : index
    %78 = vector.load %arg9[%c0_36, %c0_37] : memref<72x512xf32, #tpu.memory_space<vmem>>, vector<8x512xf32>
    tpu.vector_store %arg9[%c0_36, %c0_37], %77 {strides = array<i32>} : memref<72x512xf32, #tpu.memory_space<vmem>>, vector<8x512xf32>,
    %79 = vector.extract_strided_slice %71 {offsets = [0, 496], sizes = [8, 16], strides = [1, 1]} : vector<8x512xf32> to vector<8x16xf32>
    %80 = vector.extract_strided_slice %71 {offsets = [0, 0], sizes = [8, 496], strides = [1, 1]} : vector<8x512xf32> to vector<8x496xf32>
    %81 = tpu.concatenate %79, %80 in 1 : vector<8x16xf32>, vector<8x496xf32> -> vector<8x512xf32>
    %c1_38 = arith.constant 1 : index
    %c0_39 = arith.constant 0 : index
    %82 = vector.load %arg6[%c1_38, %c0_39] : memref<9x512xf32, #tpu.memory_space<vmem>>, vector<1x512xf32>
    %83 = vector.broadcast %82 : vector<1x512xf32> to vector<8x512xf32>
    %84 = arith.mulf %81, %83 : vector<8x512xf32>
    %c8_40 = arith.constant 8 : index
    %c0_41 = arith.constant 0 : index
    %85 = vector.load %arg9[%c8_40, %c0_41] : memref<72x512xf32, #tpu.memory_space<vmem>>, vector<8x512xf32>
    tpu.vector_store %arg9[%c8_40, %c0_41], %84 {strides = array<i32>} : memref<72x512xf32, #tpu.memory_space<vmem>>, vector<8x512xf32>,
    %86 = vector.extract_strided_slice %71 {offsets = [0, 497], sizes = [8, 15], strides = [1, 1]} : vector<8x512xf32> to vector<8x15xf32>
    %87 = vector.extract_strided_slice %71 {offsets = [0, 0], sizes = [8, 497], strides = [1, 1]} : vector<8x512xf32> to vector<8x497xf32>
    %88 = tpu.concatenate %86, %87 in 1 : vector<8x15xf32>, vector<8x497xf32> -> vector<8x512xf32>
    %c2_42 = arith.constant 2 : index
    %c0_43 = arith.constant 0 : index
    %89 = vector.load %arg6[%c2_42, %c0_43] : memref<9x512xf32, #tpu.memory_space<vmem>>, vector<1x512xf32>
    %90 = vector.broadcast %89 : vector<1x512xf32> to vector<8x512xf32>
    %91 = arith.mulf %88, %90 : vector<8x512xf32>
    %c16_44 = arith.constant 16 : index
    %c0_45 = arith.constant 0 : index
    %92 = vector.load %arg9[%c16_44, %c0_45] : memref<72x512xf32, #tpu.memory_space<vmem>>, vector<8x512xf32>
    tpu.vector_store %arg9[%c16_44, %c0_45], %91 {strides = array<i32>} : memref<72x512xf32, #tpu.memory_space<vmem>>, vector<8x512xf32>,
    %93 = vector.extract_strided_slice %71 {offsets = [0, 511], sizes = [8, 1], strides = [1, 1]} : vector<8x512xf32> to vector<8x1xf32>
    %94 = vector.extract_strided_slice %71 {offsets = [0, 0], sizes = [8, 511], strides = [1, 1]} : vector<8x512xf32> to vector<8x511xf32>
    %95 = tpu.concatenate %93, %94 in 1 : vector<8x1xf32>, vector<8x511xf32> -> vector<8x512xf32>
    %c3_46 = arith.constant 3 : index
    %c0_47 = arith.constant 0 : index
    %96 = vector.load %arg6[%c3_46, %c0_47] : memref<9x512xf32, #tpu.memory_space<vmem>>, vector<1x512xf32>
    %97 = vector.broadcast %96 : vector<1x512xf32> to vector<8x512xf32>
    %98 = arith.mulf %95, %97 : vector<8x512xf32>
    %c24_48 = arith.constant 24 : index
    %c0_49 = arith.constant 0 : index
    %99 = vector.load %arg9[%c24_48, %c0_49] : memref<72x512xf32, #tpu.memory_space<vmem>>, vector<8x512xf32>
    tpu.vector_store %arg9[%c24_48, %c0_49], %98 {strides = array<i32>} : memref<72x512xf32, #tpu.memory_space<vmem>>, vector<8x512xf32>,
    %c32_50 = arith.constant 32 : index
    %c0_51 = arith.constant 0 : index
    %100 = vector.load %arg9[%c32_50, %c0_51] : memref<72x512xf32, #tpu.memory_space<vmem>>, vector<8x512xf32>
    tpu.vector_store %arg9[%c32_50, %c0_51], %71 {strides = array<i32>} : memref<72x512xf32, #tpu.memory_space<vmem>>, vector<8x512xf32>,
    %101 = vector.extract_strided_slice %71 {offsets = [0, 1], sizes = [8, 511], strides = [1, 1]} : vector<8x512xf32> to vector<8x511xf32>
    %102 = vector.extract_strided_slice %71 {offsets = [0, 0], sizes = [8, 1], strides = [1, 1]} : vector<8x512xf32> to vector<8x1xf32>
    %103 = tpu.concatenate %101, %102 in 1 : vector<8x511xf32>, vector<8x1xf32> -> vector<8x512xf32>
    %c5_52 = arith.constant 5 : index
    %c0_53 = arith.constant 0 : index
    %104 = vector.load %arg6[%c5_52, %c0_53] : memref<9x512xf32, #tpu.memory_space<vmem>>, vector<1x512xf32>
    %105 = vector.broadcast %104 : vector<1x512xf32> to vector<8x512xf32>
    %106 = arith.mulf %103, %105 : vector<8x512xf32>
    %c40_54 = arith.constant 40 : index
    %c0_55 = arith.constant 0 : index
    %107 = vector.load %arg9[%c40_54, %c0_55] : memref<72x512xf32, #tpu.memory_space<vmem>>, vector<8x512xf32>
    tpu.vector_store %arg9[%c40_54, %c0_55], %106 {strides = array<i32>} : memref<72x512xf32, #tpu.memory_space<vmem>>, vector<8x512xf32>,
    %108 = vector.extract_strided_slice %71 {offsets = [0, 15], sizes = [8, 497], strides = [1, 1]} : vector<8x512xf32> to vector<8x497xf32>
    %109 = vector.extract_strided_slice %71 {offsets = [0, 0], sizes = [8, 15], strides = [1, 1]} : vector<8x512xf32> to vector<8x15xf32>
    %110 = tpu.concatenate %108, %109 in 1 : vector<8x497xf32>, vector<8x15xf32> -> vector<8x512xf32>
    %c6_56 = arith.constant 6 : index
    %c0_57 = arith.constant 0 : index
    %111 = vector.load %arg6[%c6_56, %c0_57] : memref<9x512xf32, #tpu.memory_space<vmem>>, vector<1x512xf32>
    %112 = vector.broadcast %111 : vector<1x512xf32> to vector<8x512xf32>
    %113 = arith.mulf %110, %112 : vector<8x512xf32>
    %c48_58 = arith.constant 48 : index
    %c0_59 = arith.constant 0 : index
    %114 = vector.load %arg9[%c48_58, %c0_59] : memref<72x512xf32, #tpu.memory_space<vmem>>, vector<8x512xf32>
    tpu.vector_store %arg9[%c48_58, %c0_59], %113 {strides = array<i32>} : memref<72x512xf32, #tpu.memory_space<vmem>>, vector<8x512xf32>,
    %115 = vector.extract_strided_slice %71 {offsets = [0, 16], sizes = [8, 496], strides = [1, 1]} : vector<8x512xf32> to vector<8x496xf32>
    %116 = vector.extract_strided_slice %71 {offsets = [0, 0], sizes = [8, 16], strides = [1, 1]} : vector<8x512xf32> to vector<8x16xf32>
    %117 = tpu.concatenate %115, %116 in 1 : vector<8x496xf32>, vector<8x16xf32> -> vector<8x512xf32>
    %c7_60 = arith.constant 7 : index
    %c0_61 = arith.constant 0 : index
    %118 = vector.load %arg6[%c7_60, %c0_61] : memref<9x512xf32, #tpu.memory_space<vmem>>, vector<1x512xf32>
    %119 = vector.broadcast %118 : vector<1x512xf32> to vector<8x512xf32>
    %120 = arith.mulf %117, %119 : vector<8x512xf32>
    %c56_62 = arith.constant 56 : index
    %c0_63 = arith.constant 0 : index
    %121 = vector.load %arg9[%c56_62, %c0_63] : memref<72x512xf32, #tpu.memory_space<vmem>>, vector<8x512xf32>
    tpu.vector_store %arg9[%c56_62, %c0_63], %120 {strides = array<i32>} : memref<72x512xf32, #tpu.memory_space<vmem>>, vector<8x512xf32>,
    %122 = vector.extract_strided_slice %71 {offsets = [0, 17], sizes = [8, 495], strides = [1, 1]} : vector<8x512xf32> to vector<8x495xf32>
    %123 = vector.extract_strided_slice %71 {offsets = [0, 0], sizes = [8, 17], strides = [1, 1]} : vector<8x512xf32> to vector<8x17xf32>
    %124 = tpu.concatenate %122, %123 in 1 : vector<8x495xf32>, vector<8x17xf32> -> vector<8x512xf32>
    %c8_64 = arith.constant 8 : index
    %c0_65 = arith.constant 0 : index
    %125 = vector.load %arg6[%c8_64, %c0_65] : memref<9x512xf32, #tpu.memory_space<vmem>>, vector<1x512xf32>
    %126 = vector.broadcast %125 : vector<1x512xf32> to vector<8x512xf32>
    %127 = arith.mulf %124, %126 : vector<8x512xf32>
    %c64_66 = arith.constant 64 : index
    %c0_67 = arith.constant 0 : index
    %128 = vector.load %arg9[%c64_66, %c0_67] : memref<72x512xf32, #tpu.memory_space<vmem>>, vector<8x512xf32>
    tpu.vector_store %arg9[%c64_66, %c0_67], %127 {strides = array<i32>} : memref<72x512xf32, #tpu.memory_space<vmem>>, vector<8x512xf32>,
    %c1_68 = arith.constant 1 : index
    %c0_69 = arith.constant 0 : index
    %c0_70 = arith.constant 0 : index
    %129 = vector.load %arg2[%c1_68, %c0_69, %c0_70] : memref<3x8x72xf32, #tpu.memory_space<vmem>>, vector<1x8x72xf32>
    %130 = vector.shape_cast %129 : vector<1x8x72xf32> to vector<8x72xf32>
    %c0_71 = arith.constant 0 : index
    %c0_72 = arith.constant 0 : index
    %131 = vector.load %arg9[%c0_71, %c0_72] : memref<72x512xf32, #tpu.memory_space<vmem>>, vector<72x512xf32>
    %cst_73 = arith.constant dense<0.000000e+00> : vector<8x512xf32>
    %132 = tpu.matmul %130, %131, %cst_73 {dimension_numbers = #tpu.dot_dimension_numbers<[1], [0], [0], [1], [0, 0, 1, 1], [], []>} : vector<8x72xf32>, vector<72x512xf32>, vector<8x512xf32> -> vector<8x512xf32>
    %c1_74 = arith.constant 1 : index
    %c0_75 = arith.constant 0 : index
    %c0_76 = arith.constant 0 : index
    %133 = vector.load %arg3[%c1_74, %c0_75, %c0_76] : memref<3x8x1xf32, #tpu.memory_space<vmem>>, vector<1x8x1xf32>
    %134 = vector.shape_cast %133 : vector<1x8x1xf32> to vector<8x1xf32>
    %135 = vector.broadcast %134 : vector<8x1xf32> to vector<8x512xf32>
    %136 = arith.addf %132, %135 : vector<8x512xf32>
    %cst_77 = arith.constant 0.000000e+00 : f32
    %137 = vector.broadcast %cst_77 : f32 to vector<8x512xf32>
    %138 = arith.maximumf %136, %137 : vector<8x512xf32>
    %139 = vector.extract_strided_slice %138 {offsets = [0, 495], sizes = [8, 17], strides = [1, 1]} : vector<8x512xf32> to vector<8x17xf32>
    %140 = vector.extract_strided_slice %138 {offsets = [0, 0], sizes = [8, 495], strides = [1, 1]} : vector<8x512xf32> to vector<8x495xf32>
    %141 = tpu.concatenate %139, %140 in 1 : vector<8x17xf32>, vector<8x495xf32> -> vector<8x512xf32>
    %c0_78 = arith.constant 0 : index
    %c0_79 = arith.constant 0 : index
    %142 = vector.load %arg6[%c0_78, %c0_79] : memref<9x512xf32, #tpu.memory_space<vmem>>, vector<1x512xf32>
    %143 = vector.broadcast %142 : vector<1x512xf32> to vector<8x512xf32>
    %144 = arith.mulf %141, %143 : vector<8x512xf32>
    %c0_80 = arith.constant 0 : index
    %c0_81 = arith.constant 0 : index
    %145 = vector.load %arg9[%c0_80, %c0_81] : memref<72x512xf32, #tpu.memory_space<vmem>>, vector<8x512xf32>
    tpu.vector_store %arg9[%c0_80, %c0_81], %144 {strides = array<i32>} : memref<72x512xf32, #tpu.memory_space<vmem>>, vector<8x512xf32>,
    %146 = vector.extract_strided_slice %138 {offsets = [0, 496], sizes = [8, 16], strides = [1, 1]} : vector<8x512xf32> to vector<8x16xf32>
    %147 = vector.extract_strided_slice %138 {offsets = [0, 0], sizes = [8, 496], strides = [1, 1]} : vector<8x512xf32> to vector<8x496xf32>
    %148 = tpu.concatenate %146, %147 in 1 : vector<8x16xf32>, vector<8x496xf32> -> vector<8x512xf32>
    %c1_82 = arith.constant 1 : index
    %c0_83 = arith.constant 0 : index
    %149 = vector.load %arg6[%c1_82, %c0_83] : memref<9x512xf32, #tpu.memory_space<vmem>>, vector<1x512xf32>
    %150 = vector.broadcast %149 : vector<1x512xf32> to vector<8x512xf32>
    %151 = arith.mulf %148, %150 : vector<8x512xf32>
    %c8_84 = arith.constant 8 : index
    %c0_85 = arith.constant 0 : index
    %152 = vector.load %arg9[%c8_84, %c0_85] : memref<72x512xf32, #tpu.memory_space<vmem>>, vector<8x512xf32>
    tpu.vector_store %arg9[%c8_84, %c0_85], %151 {strides = array<i32>} : memref<72x512xf32, #tpu.memory_space<vmem>>, vector<8x512xf32>,
    %153 = vector.extract_strided_slice %138 {offsets = [0, 497], sizes = [8, 15], strides = [1, 1]} : vector<8x512xf32> to vector<8x15xf32>
    %154 = vector.extract_strided_slice %138 {offsets = [0, 0], sizes = [8, 497], strides = [1, 1]} : vector<8x512xf32> to vector<8x497xf32>
    %155 = tpu.concatenate %153, %154 in 1 : vector<8x15xf32>, vector<8x497xf32> -> vector<8x512xf32>
    %c2_86 = arith.constant 2 : index
    %c0_87 = arith.constant 0 : index
    %156 = vector.load %arg6[%c2_86, %c0_87] : memref<9x512xf32, #tpu.memory_space<vmem>>, vector<1x512xf32>
    %157 = vector.broadcast %156 : vector<1x512xf32> to vector<8x512xf32>
    %158 = arith.mulf %155, %157 : vector<8x512xf32>
    %c16_88 = arith.constant 16 : index
    %c0_89 = arith.constant 0 : index
    %159 = vector.load %arg9[%c16_88, %c0_89] : memref<72x512xf32, #tpu.memory_space<vmem>>, vector<8x512xf32>
    tpu.vector_store %arg9[%c16_88, %c0_89], %158 {strides = array<i32>} : memref<72x512xf32, #tpu.memory_space<vmem>>, vector<8x512xf32>,
    %160 = vector.extract_strided_slice %138 {offsets = [0, 511], sizes = [8, 1], strides = [1, 1]} : vector<8x512xf32> to vector<8x1xf32>
    %161 = vector.extract_strided_slice %138 {offsets = [0, 0], sizes = [8, 511], strides = [1, 1]} : vector<8x512xf32> to vector<8x511xf32>
    %162 = tpu.concatenate %160, %161 in 1 : vector<8x1xf32>, vector<8x511xf32> -> vector<8x512xf32>
    %c3_90 = arith.constant 3 : index
    %c0_91 = arith.constant 0 : index
    %163 = vector.load %arg6[%c3_90, %c0_91] : memref<9x512xf32, #tpu.memory_space<vmem>>, vector<1x512xf32>
    %164 = vector.broadcast %163 : vector<1x512xf32> to vector<8x512xf32>
    %165 = arith.mulf %162, %164 : vector<8x512xf32>
    %c24_92 = arith.constant 24 : index
    %c0_93 = arith.constant 0 : index
    %166 = vector.load %arg9[%c24_92, %c0_93] : memref<72x512xf32, #tpu.memory_space<vmem>>, vector<8x512xf32>
    tpu.vector_store %arg9[%c24_92, %c0_93], %165 {strides = array<i32>} : memref<72x512xf32, #tpu.memory_space<vmem>>, vector<8x512xf32>,
    %c32_94 = arith.constant 32 : index
    %c0_95 = arith.constant 0 : index
    %167 = vector.load %arg9[%c32_94, %c0_95] : memref<72x512xf32, #tpu.memory_space<vmem>>, vector<8x512xf32>
    tpu.vector_store %arg9[%c32_94, %c0_95], %138 {strides = array<i32>} : memref<72x512xf32, #tpu.memory_space<vmem>>, vector<8x512xf32>,
    %168 = vector.extract_strided_slice %138 {offsets = [0, 1], sizes = [8, 511], strides = [1, 1]} : vector<8x512xf32> to vector<8x511xf32>
    %169 = vector.extract_strided_slice %138 {offsets = [0, 0], sizes = [8, 1], strides = [1, 1]} : vector<8x512xf32> to vector<8x1xf32>
    %170 = tpu.concatenate %168, %169 in 1 : vector<8x511xf32>, vector<8x1xf32> -> vector<8x512xf32>
    %c5_96 = arith.constant 5 : index
    %c0_97 = arith.constant 0 : index
    %171 = vector.load %arg6[%c5_96, %c0_97] : memref<9x512xf32, #tpu.memory_space<vmem>>, vector<1x512xf32>
    %172 = vector.broadcast %171 : vector<1x512xf32> to vector<8x512xf32>
    %173 = arith.mulf %170, %172 : vector<8x512xf32>
    %c40_98 = arith.constant 40 : index
    %c0_99 = arith.constant 0 : index
    %174 = vector.load %arg9[%c40_98, %c0_99] : memref<72x512xf32, #tpu.memory_space<vmem>>, vector<8x512xf32>
    tpu.vector_store %arg9[%c40_98, %c0_99], %173 {strides = array<i32>} : memref<72x512xf32, #tpu.memory_space<vmem>>, vector<8x512xf32>,
    %175 = vector.extract_strided_slice %138 {offsets = [0, 15], sizes = [8, 497], strides = [1, 1]} : vector<8x512xf32> to vector<8x497xf32>
    %176 = vector.extract_strided_slice %138 {offsets = [0, 0], sizes = [8, 15], strides = [1, 1]} : vector<8x512xf32> to vector<8x15xf32>
    %177 = tpu.concatenate %175, %176 in 1 : vector<8x497xf32>, vector<8x15xf32> -> vector<8x512xf32>
    %c6_100 = arith.constant 6 : index
    %c0_101 = arith.constant 0 : index
    %178 = vector.load %arg6[%c6_100, %c0_101] : memref<9x512xf32, #tpu.memory_space<vmem>>, vector<1x512xf32>
    %179 = vector.broadcast %178 : vector<1x512xf32> to vector<8x512xf32>
    %180 = arith.mulf %177, %179 : vector<8x512xf32>
    %c48_102 = arith.constant 48 : index
    %c0_103 = arith.constant 0 : index
    %181 = vector.load %arg9[%c48_102, %c0_103] : memref<72x512xf32, #tpu.memory_space<vmem>>, vector<8x512xf32>
    tpu.vector_store %arg9[%c48_102, %c0_103], %180 {strides = array<i32>} : memref<72x512xf32, #tpu.memory_space<vmem>>, vector<8x512xf32>,
    %182 = vector.extract_strided_slice %138 {offsets = [0, 16], sizes = [8, 496], strides = [1, 1]} : vector<8x512xf32> to vector<8x496xf32>
    %183 = vector.extract_strided_slice %138 {offsets = [0, 0], sizes = [8, 16], strides = [1, 1]} : vector<8x512xf32> to vector<8x16xf32>
    %184 = tpu.concatenate %182, %183 in 1 : vector<8x496xf32>, vector<8x16xf32> -> vector<8x512xf32>
    %c7_104 = arith.constant 7 : index
    %c0_105 = arith.constant 0 : index
    %185 = vector.load %arg6[%c7_104, %c0_105] : memref<9x512xf32, #tpu.memory_space<vmem>>, vector<1x512xf32>
    %186 = vector.broadcast %185 : vector<1x512xf32> to vector<8x512xf32>
    %187 = arith.mulf %184, %186 : vector<8x512xf32>
    %c56_106 = arith.constant 56 : index
    %c0_107 = arith.constant 0 : index
    %188 = vector.load %arg9[%c56_106, %c0_107] : memref<72x512xf32, #tpu.memory_space<vmem>>, vector<8x512xf32>
    tpu.vector_store %arg9[%c56_106, %c0_107], %187 {strides = array<i32>} : memref<72x512xf32, #tpu.memory_space<vmem>>, vector<8x512xf32>,
    %189 = vector.extract_strided_slice %138 {offsets = [0, 17], sizes = [8, 495], strides = [1, 1]} : vector<8x512xf32> to vector<8x495xf32>
    %190 = vector.extract_strided_slice %138 {offsets = [0, 0], sizes = [8, 17], strides = [1, 1]} : vector<8x512xf32> to vector<8x17xf32>
    %191 = tpu.concatenate %189, %190 in 1 : vector<8x495xf32>, vector<8x17xf32> -> vector<8x512xf32>
    %c8_108 = arith.constant 8 : index
    %c0_109 = arith.constant 0 : index
    %192 = vector.load %arg6[%c8_108, %c0_109] : memref<9x512xf32, #tpu.memory_space<vmem>>, vector<1x512xf32>
    %193 = vector.broadcast %192 : vector<1x512xf32> to vector<8x512xf32>
    %194 = arith.mulf %191, %193 : vector<8x512xf32>
    %c64_110 = arith.constant 64 : index
    %c0_111 = arith.constant 0 : index
    %195 = vector.load %arg9[%c64_110, %c0_111] : memref<72x512xf32, #tpu.memory_space<vmem>>, vector<8x512xf32>
    tpu.vector_store %arg9[%c64_110, %c0_111], %194 {strides = array<i32>} : memref<72x512xf32, #tpu.memory_space<vmem>>, vector<8x512xf32>,
    %c2_112 = arith.constant 2 : index
    %c0_113 = arith.constant 0 : index
    %c0_114 = arith.constant 0 : index
    %196 = vector.load %arg2[%c2_112, %c0_113, %c0_114] : memref<3x8x72xf32, #tpu.memory_space<vmem>>, vector<1x8x72xf32>
    %197 = vector.shape_cast %196 : vector<1x8x72xf32> to vector<8x72xf32>
    %c0_115 = arith.constant 0 : index
    %c0_116 = arith.constant 0 : index
    %198 = vector.load %arg9[%c0_115, %c0_116] : memref<72x512xf32, #tpu.memory_space<vmem>>, vector<72x512xf32>
    %cst_117 = arith.constant dense<0.000000e+00> : vector<8x512xf32>
    %199 = tpu.matmul %197, %198, %cst_117 {dimension_numbers = #tpu.dot_dimension_numbers<[1], [0], [0], [1], [0, 0, 1, 1], [], []>} : vector<8x72xf32>, vector<72x512xf32>, vector<8x512xf32> -> vector<8x512xf32>
    %c2_118 = arith.constant 2 : index
    %c0_119 = arith.constant 0 : index
    %c0_120 = arith.constant 0 : index
    %200 = vector.load %arg3[%c2_118, %c0_119, %c0_120] : memref<3x8x1xf32, #tpu.memory_space<vmem>>, vector<1x8x1xf32>
    %201 = vector.shape_cast %200 : vector<1x8x1xf32> to vector<8x1xf32>
    %202 = vector.broadcast %201 : vector<8x1xf32> to vector<8x512xf32>
    %203 = arith.addf %199, %202 : vector<8x512xf32>
    %204 = vector.extract_strided_slice %203 {offsets = [0, 495], sizes = [8, 17], strides = [1, 1]} : vector<8x512xf32> to vector<8x17xf32>
    %205 = vector.extract_strided_slice %203 {offsets = [0, 0], sizes = [8, 495], strides = [1, 1]} : vector<8x512xf32> to vector<8x495xf32>
    %206 = tpu.concatenate %204, %205 in 1 : vector<8x17xf32>, vector<8x495xf32> -> vector<8x512xf32>
    %c0_121 = arith.constant 0 : index
    %c0_122 = arith.constant 0 : index
    %207 = vector.load %arg7[%c0_121, %c0_122] : memref<9x512xf32, #tpu.memory_space<vmem>>, vector<1x512xf32>
    %208 = vector.broadcast %207 : vector<1x512xf32> to vector<8x512xf32>
    %209 = arith.mulf %206, %208 : vector<8x512xf32>
    %c0_123 = arith.constant 0 : index
    %c0_124 = arith.constant 0 : index
    %210 = vector.load %arg9[%c0_123, %c0_124] : memref<72x512xf32, #tpu.memory_space<vmem>>, vector<8x512xf32>
    tpu.vector_store %arg9[%c0_123, %c0_124], %209 {strides = array<i32>} : memref<72x512xf32, #tpu.memory_space<vmem>>, vector<8x512xf32>,
    %211 = vector.extract_strided_slice %203 {offsets = [0, 496], sizes = [8, 16], strides = [1, 1]} : vector<8x512xf32> to vector<8x16xf32>
    %212 = vector.extract_strided_slice %203 {offsets = [0, 0], sizes = [8, 496], strides = [1, 1]} : vector<8x512xf32> to vector<8x496xf32>
    %213 = tpu.concatenate %211, %212 in 1 : vector<8x16xf32>, vector<8x496xf32> -> vector<8x512xf32>
    %c1_125 = arith.constant 1 : index
    %c0_126 = arith.constant 0 : index
    %214 = vector.load %arg7[%c1_125, %c0_126] : memref<9x512xf32, #tpu.memory_space<vmem>>, vector<1x512xf32>
    %215 = vector.broadcast %214 : vector<1x512xf32> to vector<8x512xf32>
    %216 = arith.mulf %213, %215 : vector<8x512xf32>
    %c8_127 = arith.constant 8 : index
    %c0_128 = arith.constant 0 : index
    %217 = vector.load %arg9[%c8_127, %c0_128] : memref<72x512xf32, #tpu.memory_space<vmem>>, vector<8x512xf32>
    tpu.vector_store %arg9[%c8_127, %c0_128], %216 {strides = array<i32>} : memref<72x512xf32, #tpu.memory_space<vmem>>, vector<8x512xf32>,
    %218 = vector.extract_strided_slice %203 {offsets = [0, 497], sizes = [8, 15], strides = [1, 1]} : vector<8x512xf32> to vector<8x15xf32>
    %219 = vector.extract_strided_slice %203 {offsets = [0, 0], sizes = [8, 497], strides = [1, 1]} : vector<8x512xf32> to vector<8x497xf32>
    %220 = tpu.concatenate %218, %219 in 1 : vector<8x15xf32>, vector<8x497xf32> -> vector<8x512xf32>
    %c2_129 = arith.constant 2 : index
    %c0_130 = arith.constant 0 : index
    %221 = vector.load %arg7[%c2_129, %c0_130] : memref<9x512xf32, #tpu.memory_space<vmem>>, vector<1x512xf32>
    %222 = vector.broadcast %221 : vector<1x512xf32> to vector<8x512xf32>
    %223 = arith.mulf %220, %222 : vector<8x512xf32>
    %c16_131 = arith.constant 16 : index
    %c0_132 = arith.constant 0 : index
    %224 = vector.load %arg9[%c16_131, %c0_132] : memref<72x512xf32, #tpu.memory_space<vmem>>, vector<8x512xf32>
    tpu.vector_store %arg9[%c16_131, %c0_132], %223 {strides = array<i32>} : memref<72x512xf32, #tpu.memory_space<vmem>>, vector<8x512xf32>,
    %225 = vector.extract_strided_slice %203 {offsets = [0, 511], sizes = [8, 1], strides = [1, 1]} : vector<8x512xf32> to vector<8x1xf32>
    %226 = vector.extract_strided_slice %203 {offsets = [0, 0], sizes = [8, 511], strides = [1, 1]} : vector<8x512xf32> to vector<8x511xf32>
    %227 = tpu.concatenate %225, %226 in 1 : vector<8x1xf32>, vector<8x511xf32> -> vector<8x512xf32>
    %c3_133 = arith.constant 3 : index
    %c0_134 = arith.constant 0 : index
    %228 = vector.load %arg7[%c3_133, %c0_134] : memref<9x512xf32, #tpu.memory_space<vmem>>, vector<1x512xf32>
    %229 = vector.broadcast %228 : vector<1x512xf32> to vector<8x512xf32>
    %230 = arith.mulf %227, %229 : vector<8x512xf32>
    %c24_135 = arith.constant 24 : index
    %c0_136 = arith.constant 0 : index
    %231 = vector.load %arg9[%c24_135, %c0_136] : memref<72x512xf32, #tpu.memory_space<vmem>>, vector<8x512xf32>
    tpu.vector_store %arg9[%c24_135, %c0_136], %230 {strides = array<i32>} : memref<72x512xf32, #tpu.memory_space<vmem>>, vector<8x512xf32>,
    %c32_137 = arith.constant 32 : index
    %c0_138 = arith.constant 0 : index
    %232 = vector.load %arg9[%c32_137, %c0_138] : memref<72x512xf32, #tpu.memory_space<vmem>>, vector<8x512xf32>
    tpu.vector_store %arg9[%c32_137, %c0_138], %203 {strides = array<i32>} : memref<72x512xf32, #tpu.memory_space<vmem>>, vector<8x512xf32>,
    %233 = vector.extract_strided_slice %203 {offsets = [0, 1], sizes = [8, 511], strides = [1, 1]} : vector<8x512xf32> to vector<8x511xf32>
    %234 = vector.extract_strided_slice %203 {offsets = [0, 0], sizes = [8, 1], strides = [1, 1]} : vector<8x512xf32> to vector<8x1xf32>
    %235 = tpu.concatenate %233, %234 in 1 : vector<8x511xf32>, vector<8x1xf32> -> vector<8x512xf32>
    %c5_139 = arith.constant 5 : index
    %c0_140 = arith.constant 0 : index
    %236 = vector.load %arg7[%c5_139, %c0_140] : memref<9x512xf32, #tpu.memory_space<vmem>>, vector<1x512xf32>
    %237 = vector.broadcast %236 : vector<1x512xf32> to vector<8x512xf32>
    %238 = arith.mulf %235, %237 : vector<8x512xf32>
    %c40_141 = arith.constant 40 : index
    %c0_142 = arith.constant 0 : index
    %239 = vector.load %arg9[%c40_141, %c0_142] : memref<72x512xf32, #tpu.memory_space<vmem>>, vector<8x512xf32>
    tpu.vector_store %arg9[%c40_141, %c0_142], %238 {strides = array<i32>} : memref<72x512xf32, #tpu.memory_space<vmem>>, vector<8x512xf32>,
    %240 = vector.extract_strided_slice %203 {offsets = [0, 15], sizes = [8, 497], strides = [1, 1]} : vector<8x512xf32> to vector<8x497xf32>
    %241 = vector.extract_strided_slice %203 {offsets = [0, 0], sizes = [8, 15], strides = [1, 1]} : vector<8x512xf32> to vector<8x15xf32>
    %242 = tpu.concatenate %240, %241 in 1 : vector<8x497xf32>, vector<8x15xf32> -> vector<8x512xf32>
    %c6_143 = arith.constant 6 : index
    %c0_144 = arith.constant 0 : index
    %243 = vector.load %arg7[%c6_143, %c0_144] : memref<9x512xf32, #tpu.memory_space<vmem>>, vector<1x512xf32>
    %244 = vector.broadcast %243 : vector<1x512xf32> to vector<8x512xf32>
    %245 = arith.mulf %242, %244 : vector<8x512xf32>
    %c48_145 = arith.constant 48 : index
    %c0_146 = arith.constant 0 : index
    %246 = vector.load %arg9[%c48_145, %c0_146] : memref<72x512xf32, #tpu.memory_space<vmem>>, vector<8x512xf32>
    tpu.vector_store %arg9[%c48_145, %c0_146], %245 {strides = array<i32>} : memref<72x512xf32, #tpu.memory_space<vmem>>, vector<8x512xf32>,
    %247 = vector.extract_strided_slice %203 {offsets = [0, 16], sizes = [8, 496], strides = [1, 1]} : vector<8x512xf32> to vector<8x496xf32>
    %248 = vector.extract_strided_slice %203 {offsets = [0, 0], sizes = [8, 16], strides = [1, 1]} : vector<8x512xf32> to vector<8x16xf32>
    %249 = tpu.concatenate %247, %248 in 1 : vector<8x496xf32>, vector<8x16xf32> -> vector<8x512xf32>
    %c7_147 = arith.constant 7 : index
    %c0_148 = arith.constant 0 : index
    %250 = vector.load %arg7[%c7_147, %c0_148] : memref<9x512xf32, #tpu.memory_space<vmem>>, vector<1x512xf32>
    %251 = vector.broadcast %250 : vector<1x512xf32> to vector<8x512xf32>
    %252 = arith.mulf %249, %251 : vector<8x512xf32>
    %c56_149 = arith.constant 56 : index
    %c0_150 = arith.constant 0 : index
    %253 = vector.load %arg9[%c56_149, %c0_150] : memref<72x512xf32, #tpu.memory_space<vmem>>, vector<8x512xf32>
    tpu.vector_store %arg9[%c56_149, %c0_150], %252 {strides = array<i32>} : memref<72x512xf32, #tpu.memory_space<vmem>>, vector<8x512xf32>,
    %254 = vector.extract_strided_slice %203 {offsets = [0, 17], sizes = [8, 495], strides = [1, 1]} : vector<8x512xf32> to vector<8x495xf32>
    %255 = vector.extract_strided_slice %203 {offsets = [0, 0], sizes = [8, 17], strides = [1, 1]} : vector<8x512xf32> to vector<8x17xf32>
    %256 = tpu.concatenate %254, %255 in 1 : vector<8x495xf32>, vector<8x17xf32> -> vector<8x512xf32>
    %c8_151 = arith.constant 8 : index
    %c0_152 = arith.constant 0 : index
    %257 = vector.load %arg7[%c8_151, %c0_152] : memref<9x512xf32, #tpu.memory_space<vmem>>, vector<1x512xf32>
    %258 = vector.broadcast %257 : vector<1x512xf32> to vector<8x512xf32>
    %259 = arith.mulf %256, %258 : vector<8x512xf32>
    %c64_153 = arith.constant 64 : index
    %c0_154 = arith.constant 0 : index
    %260 = vector.load %arg9[%c64_153, %c0_154] : memref<72x512xf32, #tpu.memory_space<vmem>>, vector<8x512xf32>
    tpu.vector_store %arg9[%c64_153, %c0_154], %259 {strides = array<i32>} : memref<72x512xf32, #tpu.memory_space<vmem>>, vector<8x512xf32>,
    %c0_155 = arith.constant 0 : index
    %c0_156 = arith.constant 0 : index
    %261 = vector.load %arg4[%c0_155, %c0_156] : memref<2x72xf32, #tpu.memory_space<vmem>>, vector<2x72xf32>
    %c0_157 = arith.constant 0 : index
    %c0_158 = arith.constant 0 : index
    %262 = vector.load %arg9[%c0_157, %c0_158] : memref<72x512xf32, #tpu.memory_space<vmem>>, vector<72x512xf32>
    %cst_159 = arith.constant dense<0.000000e+00> : vector<2x512xf32>
    %263 = tpu.matmul %261, %262, %cst_159 {dimension_numbers = #tpu.dot_dimension_numbers<[1], [0], [0], [1], [0, 0, 1, 1], [], []>} : vector<2x72xf32>, vector<72x512xf32>, vector<2x512xf32> -> vector<2x512xf32>
    %c0_160 = arith.constant 0 : index
    %c0_161 = arith.constant 0 : index
    %264 = vector.load %arg5[%c0_160, %c0_161] : memref<2x1xf32, #tpu.memory_space<vmem>>, vector<2x1xf32>
    %265 = vector.broadcast %264 : vector<2x1xf32> to vector<2x512xf32>
    %266 = arith.addf %263, %265 : vector<2x512xf32>
    %267 = vector.extract_strided_slice %266 {offsets = [0, 0], sizes = [2, 256], strides = [1, 1]} : vector<2x512xf32> to vector<2x256xf32>
    %c0_162 = arith.constant 0 : index
    %c0_163 = arith.constant 0 : index
    %c0_164 = arith.constant 0 : index
    %268 = vector.load %arg8[%c0_162, %c0_163, %c0_164] : memref<2x2x256xf32, #tpu.memory_space<vmem>>, vector<1x2x256xf32>
    %269 = vector.shape_cast %268 : vector<1x2x256xf32> to vector<2x256xf32>
    %270 = vector.shape_cast %267 : vector<2x256xf32> to vector<1x2x256xf32>
    tpu.vector_store %arg8[%c0_162, %c0_163, %c0_164], %270 {strides = array<i32>} : memref<2x2x256xf32, #tpu.memory_space<vmem>>, vector<1x2x256xf32>,
    %271 = vector.extract_strided_slice %266 {offsets = [0, 256], sizes = [2, 256], strides = [1, 1]} : vector<2x512xf32> to vector<2x256xf32>
    %c1_165 = arith.constant 1 : index
    %c0_166 = arith.constant 0 : index
    %c0_167 = arith.constant 0 : index
    %272 = vector.load %arg8[%c1_165, %c0_166, %c0_167] : memref<2x2x256xf32, #tpu.memory_space<vmem>>, vector<1x2x256xf32>
    %273 = vector.shape_cast %272 : vector<1x2x256xf32> to vector<2x256xf32>
    %274 = vector.shape_cast %271 : vector<2x256xf32> to vector<1x2x256xf32>
    tpu.vector_store %arg8[%c1_165, %c0_166, %c0_167], %274 {strides = array<i32>} : memref<2x2x256xf32, #tpu.memory_space<vmem>>, vector<1x2x256xf32>,
    return
  }
  func.func @transform_0(%arg0: i32) -> (i32, i32, i32) {
    %c0_i32 = arith.constant 0 : i32
    %c0_i32_0 = arith.constant 0 : i32
    %c0_i32_1 = arith.constant 0 : i32
    return %arg0, %c0_i32, %c0_i32_0 : i32, i32, i32
  }
  func.func @transform_1(%arg0: i32) -> (i32, i32, i32) {
    %c0_i32 = arith.constant 0 : i32
    %c0_i32_0 = arith.constant 0 : i32
    %c0_i32_1 = arith.constant 0 : i32
    %c0_i32_2 = arith.constant 0 : i32
    return %c0_i32, %c0_i32_0, %c0_i32_1 : i32, i32, i32
  }
  func.func @transform_2(%arg0: i32) -> (i32, i32, i32) {
    %c0_i32 = arith.constant 0 : i32
    %c0_i32_0 = arith.constant 0 : i32
    %c0_i32_1 = arith.constant 0 : i32
    %c0_i32_2 = arith.constant 0 : i32
    return %c0_i32, %c0_i32_0, %c0_i32_1 : i32, i32, i32
  }
  func.func @transform_3(%arg0: i32) -> (i32, i32) {
    %c0_i32 = arith.constant 0 : i32
    %c0_i32_0 = arith.constant 0 : i32
    %c0_i32_1 = arith.constant 0 : i32
    return %c0_i32, %c0_i32_0 : i32, i32
  }
  func.func @transform_4(%arg0: i32) -> (i32, i32) {
    %c0_i32 = arith.constant 0 : i32
    %c0_i32_0 = arith.constant 0 : i32
    %c0_i32_1 = arith.constant 0 : i32
    return %c0_i32, %c0_i32_0 : i32, i32
  }
  func.func @transform_5(%arg0: i32) -> (i32, i32) {
    %c0_i32 = arith.constant 0 : i32
    %c0_i32_0 = arith.constant 0 : i32
    %c0_i32_1 = arith.constant 0 : i32
    return %c0_i32, %c0_i32_0 : i32, i32
  }
  func.func @transform_6(%arg0: i32) -> (i32, i32) {
    %c0_i32 = arith.constant 0 : i32
    %c0_i32_0 = arith.constant 0 : i32
    %c0_i32_1 = arith.constant 0 : i32
    return %c0_i32, %c0_i32_0 : i32, i32
  }
  func.func @transform_7(%arg0: i32) -> (i32, i32, i32) {
    %c0_i32 = arith.constant 0 : i32
    %c0_i32_0 = arith.constant 0 : i32
    %c0_i32_1 = arith.constant 0 : i32
    return %arg0, %c0_i32, %c0_i32_0 : i32, i32, i32
  }
}

</mosaic_0001>

<llo_original>
// kernel: tpu_custom_call.1
$region0: #{tpu_custom_call.1}
  #allocation0 [shape = 'u32[]', space=smem, size = 0x4, offset = 0x4, fixed_abs, tag = 'smem constant byte address 0x4 - core index']
  #allocation1 [shape = 'u32[144,128]{1,0:T(1,128)}', space=vmem, size = 0x12000, scoped, tag = 'internal scratch']
  #allocation2 [shape = 'f32[72,512]{1,0:T(8,128)}', space=vmem, size = 0x24000, scoped, tag = 'scratch operand']
  %s0 = inlined_call_operand.hbm [shape: f32[4,8,256], index: 0, kind: input, shape index: {}]
  %s1 = inlined_call_operand.vmem [shape: f32[3,8,72], index: 1, kind: input, shape index: {}]
  %s2 = inlined_call_operand.vmem [shape: f32[3,8,1], index: 2, kind: input, shape index: {}]
  %s3 = inlined_call_operand.vmem [shape: f32[2,72], index: 3, kind: input, shape index: {}]
  %s4 = inlined_call_operand.vmem [shape: f32[2,1], index: 4, kind: input, shape index: {}]
  %s5 = inlined_call_operand.hbm [shape: f32[9,512], index: 5, kind: input, shape index: {}]
  %s6 = inlined_call_operand.hbm [shape: f32[9,512], index: 6, kind: input, shape index: {}]
  %s7 = inlined_call_operand.hbm [shape: f32[4,2,256], index: 7, kind: output, shape index: {}]
  %s8 = sld [smem:[#allocation0]]
  $region73: #{tpu_custom_call.1} parent=0
    _
  %s10 = ssub.s32 1, %s8
  %s11 = scalar_select 0, %s10, %s8
  $region1: #{tpu_custom_call.1} parent=0
    #allocation3 [shape = 'u8[32768]{0}', space=vmem, size = 0x8000, scoped, tag = 'input window, operand 0']
    #allocation4 [shape = 's32[2]{0}', space=sflag, size = 0x8, scoped, tag = 'scoped memory for tpu_custom_call.1']
    #allocation5 [shape = 's32[2]{0}', space=sflag, size = 0x8, scoped, tag = 'scoped memory for tpu_custom_call.1']
    #allocation6 [shape = 'u8[32768]{0}', space=vmem, size = 0x8000, scoped, tag = 'input window, operand 5, single buffered']
    #allocation7 [shape = 's32[1]{0}', space=sflag, size = 0x4, scoped, tag = 'scoped memory for tpu_custom_call.1']
    #allocation8 [shape = 'u8[32768]{0}', space=vmem, size = 0x8000, scoped, tag = 'input window, operand 6, single buffered']
    #allocation9 [shape = 'u8[8192]{0}', space=vmem, size = 0x2000, scoped, tag = 'output window, operand 0']
    %12 = vsyncpa [#allocation4], 0
    %s13 = scalar_lea.sflag [#allocation4], 1
    %14 = vsyncpa %s13, 0
    %15 = vsyncpa [#allocation7], 0
    %16 = vsyncpa [#allocation5], 0
    %s17 = scalar_lea.sflag [#allocation5], 1
    %18 = vsyncpa %s17, 0
    loop: start=0, step=1, limit=4
    $region2: #{tpu_custom_call.1} parent=1 // loop_pre_header
      _
    $region3: #{tpu_custom_call.1} parent=1 // loop_header
      %s20 = sphi 0, %s24
      %p21 = scmp.ge.s32.totalorder %s20, 4
      %s30 = sphi 0, %s32
      %s33 = sphi 0, %s30
      %s34 = sphi 0, %s33
      %s50 = sphi 0, %s34
      %s54 = sphi 0, %s54
      %s56 = sphi 0, %s54
      %s57 = sphi 0, %s56
      %s71 = sphi 0, %s57
      %s75 = sphi 0, %s75
      %s77 = sphi 0, %s75
      %s78 = sphi 0, %s77
      %s92 = sphi 0, %s78
      %s96 = sphi 0, %s96
      %s98 = sphi 0, %s96
      %s99 = sphi 0, %s98
      %s113 = sphi 0, %s99
      %s117 = sphi 0, %s117
      %s119 = sphi 0, %s117
      %s120 = sphi 0, %s119
      %s134 = sphi 0, %s120
      %s138 = sphi 0, %s138
      %s140 = sphi 0, %s138
      %s141 = sphi 0, %s140
      %s155 = sphi 0, %s141
      %s159 = sphi 0, %s159
      %s161 = sphi 0, %s159
      %s162 = sphi 0, %s161
      %s176 = sphi 0, %s162
      %s182 = sphi 0, %s184
      %s185 = sphi 0, %s182
      %s186 = sphi 0, %s185
      %s202 = sphi 0, %s186
    $region4: #{tpu_custom_call.1} parent=1 // loop_header_branch
      %23 = sbr.rel (%p21) target = $region8
    $region5: #{tpu_custom_call.1} parent=1 // loop_body
      %s25 = ssub.s32 %s20, 1
      %s26 = ssub.s32 %s20, 2
      %s27 = sadd.s32 %s20, 1
      %s28 = ssub.s32 %s20, %s27
      %p29 = scmp.eq.s32.totalorder %s28, 0
      %s31 = sadd.s32 %s30, 1
      %s32 = scalar_select %p29, %s30, %s31
      %p35 = pneg %p29
      %p36 = scmp.eq.s32.totalorder %s20, 1
      %p37 = por %p35, %p36
      %p38 = scmp.ne.s32.totalorder %s30, %s33
      %p39 = scmp.eq.s32.totalorder %s20, 0
      %p40 = por %p38, %p39
      %p41 = scmp.ne.s32.totalorder %s30, %s33
      %p42 = scmp.eq.s32.totalorder %s25, 1
      %p43 = por %p41, %p42
      %p44 = scmp.ne.s32.totalorder %s33, %s34
      %p45 = scmp.eq.s32.totalorder %s25, 0
      %p46 = por %p44, %p45
      %p47 = scmp.ne.s32.totalorder %s33, %s34
      %p48 = scmp.eq.s32.totalorder %s26, 1
      %p49 = por %p47, %p48
      %p51 = scmp.ne.s32.totalorder %s34, %s50
      %p52 = scmp.eq.s32.totalorder %s26, 0
      %p53 = por %p51, %p52
      %s55 = sadd.s32 %s54, 1
      %p58 = scmp.eq.s32.totalorder %s20, 1
      %p59 = scmp.ne.s32.totalorder %s54, %s56
      %p60 = scmp.eq.s32.totalorder %s20, 0
      %p61 = por %p59, %p60
      %p62 = scmp.ne.s32.totalorder %s54, %s56
      %p63 = scmp.eq.s32.totalorder %s25, 1
      %p64 = por %p62, %p63
      %p65 = scmp.ne.s32.totalorder %s56, %s57
      %p66 = scmp.eq.s32.totalorder %s25, 0
      %p67 = por %p65, %p66
      %p68 = scmp.ne.s32.totalorder %s56, %s57
      %p69 = scmp.eq.s32.totalorder %s26, 1
      %p70 = por %p68, %p69
      %p72 = scmp.ne.s32.totalorder %s57, %s71
      %p73 = scmp.eq.s32.totalorder %s26, 0
      %p74 = por %p72, %p73
      %s76 = sadd.s32 %s75, 1
      %p79 = scmp.eq.s32.totalorder %s20, 1
      %p80 = scmp.ne.s32.totalorder %s75, %s77
      %p81 = scmp.eq.s32.totalorder %s20, 0
      %p82 = por %p80, %p81
      %p83 = scmp.ne.s32.totalorder %s75, %s77
      %p84 = scmp.eq.s32.totalorder %s25, 1
      %p85 = por %p83, %p84
      %p86 = scmp.ne.s32.totalorder %s77, %s78
      %p87 = scmp.eq.s32.totalorder %s25, 0
      %p88 = por %p86, %p87
      %p89 = scmp.ne.s32.totalorder %s77, %s78
      %p90 = scmp.eq.s32.totalorder %s26, 1
      %p91 = por %p89, %p90
      %p93 = scmp.ne.s32.totalorder %s78, %s92
      %p94 = scmp.eq.s32.totalorder %s26, 0
      %p95 = por %p93, %p94
      %s97 = sadd.s32 %s96, 1
      %p100 = scmp.eq.s32.totalorder %s20, 1
      %p101 = scmp.ne.s32.totalorder %s96, %s98
      %p102 = scmp.eq.s32.totalorder %s20, 0
      %p103 = por %p101, %p102
      %p104 = scmp.ne.s32.totalorder %s96, %s98
      %p105 = scmp.eq.s32.totalorder %s25, 1
      %p106 = por %p104, %p105
      %p107 = scmp.ne.s32.totalorder %s98, %s99
      %p108 = scmp.eq.s32.totalorder %s25, 0
      %p109 = por %p107, %p108
      %p110 = scmp.ne.s32.totalorder %s98, %s99
      %p111 = scmp.eq.s32.totalorder %s26, 1
      %p112 = por %p110, %p111
      %p114 = scmp.ne.s32.totalorder %s99, %s113
      %p115 = scmp.eq.s32.totalorder %s26, 0
      %p116 = por %p114, %p115
      %s118 = sadd.s32 %s117, 1
      %p121 = scmp.eq.s32.totalorder %s20, 1
      %p122 = scmp.ne.s32.totalorder %s117, %s119
      %p123 = scmp.eq.s32.totalorder %s20, 0
      %p124 = por %p122, %p123
      %p125 = scmp.ne.s32.totalorder %s117, %s119
      %p126 = scmp.eq.s32.totalorder %s25, 1
      %p127 = por %p125, %p126
      %p128 = scmp.ne.s32.totalorder %s119, %s120
      %p129 = scmp.eq.s32.totalorder %s25, 0
      %p130 = por %p128, %p129
      %p131 = scmp.ne.s32.totalorder %s119, %s120
      %p132 = scmp.eq.s32.totalorder %s26, 1
      %p133 = por %p131, %p132
      %p135 = scmp.ne.s32.totalorder %s120, %s134
      %p136 = scmp.eq.s32.totalorder %s26, 0
      %p137 = por %p135, %p136
      %s139 = sadd.s32 %s138, 1
      %p142 = scmp.eq.s32.totalorder %s20, 1
      %p143 = scmp.ne.s32.totalorder %s138, %s140
      %p144 = scmp.eq.s32.totalorder %s20, 0
      %p145 = por %p143, %p144
      %p146 = scmp.ne.s32.totalorder %s138, %s140
      %p147 = scmp.eq.s32.totalorder %s25, 1
      %p148 = por %p146, %p147
      %p149 = scmp.ne.s32.totalorder %s140, %s141
      %p150 = scmp.eq.s32.totalorder %s25, 0
      %p151 = por %p149, %p150
      %p152 = scmp.ne.s32.totalorder %s140, %s141
      %p153 = scmp.eq.s32.totalorder %s26, 1
      %p154 = por %p152, %p153
      %p156 = scmp.ne.s32.totalorder %s141, %s155
      %p157 = scmp.eq.s32.totalorder %s26, 0
      %p158 = por %p156, %p157
      %s160 = sadd.s32 %s159, 1
      %p163 = scmp.eq.s32.totalorder %s20, 1
      %p164 = scmp.ne.s32.totalorder %s159, %s161
      %p165 = scmp.eq.s32.totalorder %s20, 0
      %p166 = por %p164, %p165
      %p167 = scmp.ne.s32.totalorder %s159, %s161
      %p168 = scmp.eq.s32.totalorder %s25, 1
      %p169 = por %p167, %p168
      %p170 = scmp.ne.s32.totalorder %s161, %s162
      %p171 = scmp.eq.s32.totalorder %s25, 0
      %p172 = por %p170, %p171
      %p173 = scmp.ne.s32.totalorder %s161, %s162
      %p174 = scmp.eq.s32.totalorder %s26, 1
      %p175 = por %p173, %p174
      %p177 = scmp.ne.s32.totalorder %s162, %s176
      %p178 = scmp.eq.s32.totalorder %s26, 0
      %p179 = por %p177, %p178
      %s180 = ssub.s32 %s20, %s27
      %p181 = scmp.eq.s32.totalorder %s180, 0
      %s183 = sadd.s32 %s182, 1
      %s184 = scalar_select %p181, %s182, %s183
      %p187 = pneg %p181
      %p188 = scmp.eq.s32.totalorder %s20, 1
      %p189 = por %p187, %p188
      %p190 = scmp.ne.s32.totalorder %s182, %s185
      %p191 = scmp.eq.s32.totalorder %s20, 0
      %p192 = por %p190, %p191
      %p193 = scmp.ne.s32.totalorder %s182, %s185
      %p194 = scmp.eq.s32.totalorder %s25, 1
      %p195 = por %p193, %p194
      %p196 = scmp.ne.s32.totalorder %s185, %s186
      %p197 = scmp.eq.s32.totalorder %s25, 0
      %p198 = por %p196, %p197
      %p199 = scmp.ne.s32.totalorder %s185, %s186
      %p200 = scmp.eq.s32.totalorder %s26, 1
      %p201 = por %p199, %p200
      %p203 = scmp.ne.s32.totalorder %s186, %s202
      %p204 = scmp.eq.s32.totalorder %s26, 0
      %p205 = por %p203, %p204
      %p206 = scmp.le.s32.totalorder 1, %s20
      %p207 = scmp.lt.s32.totalorder %s20, 3
      %p208 = pnand %p206, %p207
      %p209 = pneg %p208
      // Predicated region
      $region9: #{tpu_custom_call.1} parent=5 // pred_check
        _
      $region10: #{tpu_custom_call.1} parent=5 // pred_check_branch
        %211 = sbr.rel (%p208) target = $region12
      $region11: #{tpu_custom_call.1} parent=5 // pred_region
        %s212 = ssub.s32 %s20, 1
        // Predicated region
        $region13: #{tpu_custom_call.1} parent=11 // pred_check
          %p213 = pneg %p67
        $region14: #{tpu_custom_call.1} parent=11 // pred_check_branch
          %215 = sbr.rel (%p213) target = $region16
        $region15: #{tpu_custom_call.1} parent=11 // pred_region
          _
        $region16: #{tpu_custom_call.1} parent=11 // pred_fallthru
          _
        // Predicated region
        $region17: #{tpu_custom_call.1} parent=11 // pred_check
          %p216 = pneg %p88
        $region18: #{tpu_custom_call.1} parent=11 // pred_check_branch
          %218 = sbr.rel (%p216) target = $region20
        $region19: #{tpu_custom_call.1} parent=11 // pred_region
          _
        $region20: #{tpu_custom_call.1} parent=11 // pred_fallthru
          _
        // Predicated region
        $region21: #{tpu_custom_call.1} parent=11 // pred_check
          %p219 = pneg %p109
        $region22: #{tpu_custom_call.1} parent=11 // pred_check_branch
          %221 = sbr.rel (%p219) target = $region24
        $region23: #{tpu_custom_call.1} parent=11 // pred_region
          _
        $region24: #{tpu_custom_call.1} parent=11 // pred_fallthru
          _
        // Predicated region
        $region25: #{tpu_custom_call.1} parent=11 // pred_check
          %p222 = pneg %p130
        $region26: #{tpu_custom_call.1} parent=11 // pred_check_branch
          %224 = sbr.rel (%p222) target = $region28
        $region27: #{tpu_custom_call.1} parent=11 // pred_region
          _
        $region28: #{tpu_custom_call.1} parent=11 // pred_fallthru
          _
        // Predicated region
        $region29: #{tpu_custom_call.1} parent=11 // pred_check
          %p225 = pneg %p151
        $region30: #{tpu_custom_call.1} parent=11 // pred_check_branch
          %227 = sbr.rel (%p225) target = $region32
        $region31: #{tpu_custom_call.1} parent=11 // pred_region
          %s229 = ssub.s32 1024, 1024
          %230 = vsyncadd [#allocation7], %s229
          %s231 = sshll.u32 [#allocation6], 4
          %s232 = int_to_ptr.vmem [resolvable:$true] %s231
          %237 = dma.hbm_to_vmem [thread:$0]  %s5, 1024, %s232, [#allocation7], 512, 512, 32
        $region32: #{tpu_custom_call.1} parent=11 // pred_fallthru
          _
        // Predicated region
        $region33: #{tpu_custom_call.1} parent=11 // pred_check
          %p238 = pneg %p172
        $region34: #{tpu_custom_call.1} parent=11 // pred_check_branch
          %240 = sbr.rel (%p238) target = $region36
        $region35: #{tpu_custom_call.1} parent=11 // pred_region
          %s242 = ssub.s32 1024, 1024
          %243 = vsyncadd [#allocation7], %s242
          %s244 = sshll.u32 [#allocation8], 4
          %s245 = int_to_ptr.vmem [resolvable:$true] %s244
          %250 = dma.hbm_to_vmem [thread:$0]  %s6, 1024, %s245, [#allocation7], 512, 512, 32
        $region36: #{tpu_custom_call.1} parent=11 // pred_fallthru
          _
      $region12: #{tpu_custom_call.1} parent=5 // pred_fallthru
        _
      %p251 = scmp.lt.s32.totalorder %s20, 2
      // Predicated region
      $region37: #{tpu_custom_call.1} parent=5 // pred_check
        %p252 = pneg %p251
      $region38: #{tpu_custom_call.1} parent=5 // pred_check_branch
        %254 = sbr.rel (%p252) target = $region40
      $region39: #{tpu_custom_call.1} parent=5 // pred_region
        // Predicated region
        $region41: #{tpu_custom_call.1} parent=39 // pred_check
          %p255 = pneg %p40
        $region42: #{tpu_custom_call.1} parent=39 // pred_check_branch
          %257 = sbr.rel (%p255) target = $region44
        $region43: #{tpu_custom_call.1} parent=39 // pred_region
          %s258 = sand.u32 %s30, 1
          %s259 = scalar_lea.sflag [#allocation4], %s258
          %s260 = sand.u32 %s30, 1
          %s261 = smul.addr %s260, 32
          %s262 = scalar_lea.vmem [#allocation3], %s261
          %s263 = smul.u32 2, %s20
          %s265 = ssub.s32 512, 512
          %266 = vsyncadd %s259, %s265
          %s267 = smul.addr %s263, 2
          %s268 = smul.addr %s267, 128
          %s269 = scalar_lea.hbm %s0, %s268
          %s270 = sshll.u32 %s262, 4
          %s271 = int_to_ptr.vmem [resolvable:$true] %s270
          %276 = dma.hbm_to_vmem [thread:$0]  %s269, 512, %s271, %s259, 256, 256, 16
        $region44: #{tpu_custom_call.1} parent=39 // pred_fallthru
          _
      $region40: #{tpu_custom_call.1} parent=5 // pred_fallthru
        _
      %p277 = scmp.le.s32.totalorder 1, %s20
      %p278 = scmp.lt.s32.totalorder %s20, 3
      %p279 = pnand %p277, %p278
      %p280 = pneg %p279
      // Predicated region
      $region45: #{tpu_custom_call.1} parent=5 // pred_check
        _
      $region46: #{tpu_custom_call.1} parent=5 // pred_check_branch
        %282 = sbr.rel (%p279) target = $region48
      $region47: #{tpu_custom_call.1} parent=5 // pred_region
        %s283 = ssub.s32 %s20, 1
        %s284 = sand.u32 %s33, 1
        %s285 = scalar_lea.sflag [#allocation4], %s284
        %s286 = sand.u32 %s33, 1
        %s287 = smul.addr %s286, 32
        %s288 = scalar_lea.vmem [#allocation3], %s287
        // Predicated region
        $region49: #{tpu_custom_call.1} parent=47 // pred_check
          %p289 = pneg %p46
        $region50: #{tpu_custom_call.1} parent=47 // pred_check_branch
          %291 = sbr.rel (%p289) target = $region52
        $region51: #{tpu_custom_call.1} parent=47 // pred_region
          %292 = dma.done %s285, 512
        $region52: #{tpu_custom_call.1} parent=47 // pred_fallthru
          _
        // Predicated region
        $region53: #{tpu_custom_call.1} parent=47 // pred_check
          %p293 = pneg %p151
        $region54: #{tpu_custom_call.1} parent=47 // pred_check_branch
          %295 = sbr.rel (%p293) target = $region56
        $region55: #{tpu_custom_call.1} parent=47 // pred_region
          %296 = dma.done [#allocation7], 1024
        $region56: #{tpu_custom_call.1} parent=47 // pred_fallthru
          _
        // Predicated region
        $region57: #{tpu_custom_call.1} parent=47 // pred_check
          %p297 = pneg %p172
        $region58: #{tpu_custom_call.1} parent=47 // pred_check_branch
          %299 = sbr.rel (%p297) target = $region60
        $region59: #{tpu_custom_call.1} parent=47 // pred_region
          %300 = dma.done [#allocation7], 1024
        $region60: #{tpu_custom_call.1} parent=47 // pred_fallthru
          _
        %s301 = sand.u32 %s33, 1
        %s302 = scalar_lea.sflag [#allocation4], %s301
        %s303 = sand.u32 %s33, 1
        %s304 = smul.addr %s303, 32
        %s305 = scalar_lea.vmem [#allocation3], %s304
        %p306 = pneg %p46
        %p307 = pneg %p43
        %p308 = pneg %p67
        %p309 = pneg %p64
        %p310 = pneg %p88
        %p311 = pneg %p85
        %p312 = pneg %p109
        %p313 = pneg %p106
        %p314 = pneg %p130
        %p315 = pneg %p127
        %p316 = pneg %p151
        %p317 = pneg %p148
        %p318 = pneg %p172
        %p319 = pneg %p169
        %p320 = pneg %p198
        %p321 = pneg %p195
        %s322 = sand.u32 %s185, 1
        %s323 = scalar_lea.sflag [#allocation5], %s322
        %s324 = sand.u32 %s185, 1
        %s325 = smul.addr %s324, 8
        %s326 = scalar_lea.vmem [#allocation9], %s325
        %s327 = smul.u32 2, %s25
        %s328 = smul.u32 2, %s25
        %v329 = vld [vmem:[%s288] sm:$0xff]
        %v330 = vld [vmem:[%s288 + $0x8] sm:$0xff]
        %s331 = scalar_lea.vmem %s288, 16 [#allocation3]
        %v332 = vld [vmem:[%s331] sm:$0xff]
        %v333 = vld [vmem:[%s331 + $0x8] sm:$0xff]
        %335 = vrot.lane.b32.xlu0 %v333, 17
        %v336 = vpop.permute.xlu0 %335
        %341 = vrot.lane.b32.xlu0 %v329, 17
        %v342 = vpop.permute.xlu0 %341
        %343 = vrot.lane.b32.xlu0 %v330, 17
        %v344 = vpop.permute.xlu0 %343
        %345 = vrot.lane.b32.xlu0 %v332, 17
        %v346 = vpop.permute.xlu0 %345
        %vm347 = vcmask 138240
        %v348 = vsel %vm347, %v342, %v344
        %v349 = vsel %vm347, %v344, %v346
        %v350 = vsel %vm347, %v346, %v336
        %v355 = vsel %vm347, %v336, %v342
        %v356 = vld [vmem:[#allocation6] ss:$8 sm:$0xf]
        %v358 = vlaneseq
        %v359 = vshrl.u32 %v358, 7
        %v360 = vsub.s32 0, %v359
        %v361 = vrot.slane %v356, %v360
        %v362 = vlaneseq
        %v363 = vshrl.u32 %v362, 7
        %v364 = vsub.s32 1, %v363
        %v365 = vrot.slane %v356, %v364
        %v366 = vlaneseq
        %v367 = vshrl.u32 %v366, 7
        %v368 = vsub.s32 2, %v367
        %v369 = vrot.slane %v356, %v368
        %v370 = vlaneseq
        %v371 = vshrl.u32 %v370, 7
        %v372 = vsub.s32 3, %v371
        %v373 = vrot.slane %v356, %v372
        %v378 = vmul.f32 %v355, %v361
        %v379 = vmul.f32 %v348, %v365
        %v380 = vmul.f32 %v349, %v369
        %v381 = vmul.f32 %v350, %v373
        %382 = vst [vmem:[#allocation2] sm:$0xff] %v378
        %383 = vst [vmem:[#allocation2 + $0x8] sm:$0xff] %v379
        %384 = vst [vmem:[#allocation2 + $0x10] sm:$0xff] %v380
        %385 = vst [vmem:[#allocation2 + $0x18] sm:$0xff] %v381
        %386 = vrot.lane.b32.xlu0 %v333, 16
        %v387 = vpop.permute.xlu0 %386
        %389 = vrot.lane.b32.xlu0 %v329, 16
        %v390 = vpop.permute.xlu0 %389
        %391 = vrot.lane.b32.xlu0 %v330, 16
        %v392 = vpop.permute.xlu0 %391
        %393 = vrot.lane.b32.xlu0 %v332, 16
        %v394 = vpop.permute.xlu0 %393
        %vm395 = vcmask 130048
        %v396 = vsel %vm395, %v390, %v392
        %v397 = vsel %vm395, %v392, %v394
        %v398 = vsel %vm395, %v394, %v387
        %v403 = vsel %vm395, %v387, %v390
        %s404 = scalar_lea.vmem [#allocation6], 1
        %v405 = vld [vmem:[%s404] ss:$8 sm:$0xf]
        %v407 = vlaneseq
        %v408 = vshrl.u32 %v407, 7
        %v409 = vsub.s32 0, %v408
        %v410 = vrot.slane %v405, %v409
        %v411 = vlaneseq
        %v412 = vshrl.u32 %v411, 7
        %v413 = vsub.s32 1, %v412
        %v414 = vrot.slane %v405, %v413
        %v415 = vlaneseq
        %v416 = vshrl.u32 %v415, 7
        %v417 = vsub.s32 2, %v416
        %v418 = vrot.slane %v405, %v417
        %v419 = vlaneseq
        %v420 = vshrl.u32 %v419, 7
        %v421 = vsub.s32 3, %v420
        %v422 = vrot.slane %v405, %v421
        %v427 = vmul.f32 %v403, %v410
        %v428 = vmul.f32 %v396, %v414
        %v429 = vmul.f32 %v397, %v418
        %v430 = vmul.f32 %v398, %v422
        %431 = vst [vmem:[#allocation2 + $0x20] sm:$0xff] %v427
        %432 = vst [vmem:[#allocation2 + $0x28] sm:$0xff] %v428
        %433 = vst [vmem:[#allocation2 + $0x30] sm:$0xff] %v429
        %434 = vst [vmem:[#allocation2 + $0x38] sm:$0xff] %v430
        %435 = vrot.lane.b32.xlu0 %v333, 15
        %v436 = vpop.permute.xlu0 %435
        %438 = vrot.lane.b32.xlu0 %v329, 15
        %v439 = vpop.permute.xlu0 %438
        %440 = vrot.lane.b32.xlu0 %v330, 15
        %v441 = vpop.permute.xlu0 %440
        %442 = vrot.lane.b32.xlu0 %v332, 15
        %v443 = vpop.permute.xlu0 %442
        %vm444 = vcmask 121856
        %v445 = vsel %vm444, %v439, %v441
        %v446 = vsel %vm444, %v441, %v443
        %v447 = vsel %vm444, %v443, %v436
        %v452 = vsel %vm444, %v436, %v439
        %s453 = scalar_lea.vmem [#allocation6], 2
        %v454 = vld [vmem:[%s453] ss:$8 sm:$0xf]
        %v456 = vlaneseq
        %v457 = vshrl.u32 %v456, 7
        %v458 = vsub.s32 0, %v457
        %v459 = vrot.slane %v454, %v458
        %v460 = vlaneseq
        %v461 = vshrl.u32 %v460, 7
        %v462 = vsub.s32 1, %v461
        %v463 = vrot.slane %v454, %v462
        %v464 = vlaneseq
        %v465 = vshrl.u32 %v464, 7
        %v466 = vsub.s32 2, %v465
        %v467 = vrot.slane %v454, %v466
        %v468 = vlaneseq
        %v469 = vshrl.u32 %v468, 7
        %v470 = vsub.s32 3, %v469
        %v471 = vrot.slane %v454, %v470
        %v476 = vmul.f32 %v452, %v459
        %v477 = vmul.f32 %v445, %v463
        %v478 = vmul.f32 %v446, %v467
        %v479 = vmul.f32 %v447, %v471
        %480 = vst [vmem:[#allocation2 + $0x40] sm:$0xff] %v476
        %481 = vst [vmem:[#allocation2 + $0x48] sm:$0xff] %v477
        %482 = vst [vmem:[#allocation2 + $0x50] sm:$0xff] %v478
        %483 = vst [vmem:[#allocation2 + $0x58] sm:$0xff] %v479
        %484 = vrot.lane.b32.xlu0 %v333, 1
        %v485 = vpop.permute.xlu0 %484
        %487 = vrot.lane.b32.xlu0 %v329, 1
        %v488 = vpop.permute.xlu0 %487
        %489 = vrot.lane.b32.xlu0 %v330, 1
        %v490 = vpop.permute.xlu0 %489
        %491 = vrot.lane.b32.xlu0 %v332, 1
        %v492 = vpop.permute.xlu0 %491
        %vm493 = vcmask 7168
        %v494 = vsel %vm493, %v488, %v490
        %v495 = vsel %vm493, %v490, %v492
        %v496 = vsel %vm493, %v492, %v485
        %v501 = vsel %vm493, %v485, %v488
        %s502 = scalar_lea.vmem [#allocation6], 3
        %v503 = vld [vmem:[%s502] ss:$8 sm:$0xf]
        %v505 = vlaneseq
        %v506 = vshrl.u32 %v505, 7
        %v507 = vsub.s32 0, %v506
        %v508 = vrot.slane %v503, %v507
        %v509 = vlaneseq
        %v510 = vshrl.u32 %v509, 7
        %v511 = vsub.s32 1, %v510
        %v512 = vrot.slane %v503, %v511
        %v513 = vlaneseq
        %v514 = vshrl.u32 %v513, 7
        %v515 = vsub.s32 2, %v514
        %v516 = vrot.slane %v503, %v515
        %v517 = vlaneseq
        %v518 = vshrl.u32 %v517, 7
        %v519 = vsub.s32 3, %v518
        %v520 = vrot.slane %v503, %v519
        %v525 = vmul.f32 %v501, %v508
        %v526 = vmul.f32 %v494, %v512
        %v527 = vmul.f32 %v495, %v516
        %v528 = vmul.f32 %v496, %v520
        %529 = vst [vmem:[#allocation2 + $0x60] sm:$0xff] %v525
        %530 = vst [vmem:[#allocation2 + $0x68] sm:$0xff] %v526
        %531 = vst [vmem:[#allocation2 + $0x70] sm:$0xff] %v527
        %532 = vst [vmem:[#allocation2 + $0x78] sm:$0xff] %v528
        %533 = vst [vmem:[#allocation2 + $0x80] sm:$0xff] %v329
        %534 = vst [vmem:[#allocation2 + $0x88] sm:$0xff] %v330
        %535 = vst [vmem:[#allocation2 + $0x90] sm:$0xff] %v332
        %536 = vst [vmem:[#allocation2 + $0x98] sm:$0xff] %v333
        %537 = vrot.lane.b32.xlu0 %v329, 127
        %v538 = vpop.permute.xlu0 %537
        %539 = vrot.lane.b32.xlu0 %v330, 127
        %v540 = vpop.permute.xlu0 %539
        %541 = vrot.lane.b32.xlu0 %v332, 127
        %v542 = vpop.permute.xlu0 %541
        %543 = vrot.lane.b32.xlu0 %v333, 127
        %v544 = vpop.permute.xlu0 %543
        %vm545 = vcmask 1039360
        %v546 = vsel %vm545, %v538, %v540
        %v547 = vsel %vm545, %v540, %v542
        %v548 = vsel %vm545, %v542, %v544
        %v554 = vsel %vm545, %v544, %v538
        %s555 = scalar_lea.vmem [#allocation6], 5
        %v556 = vld [vmem:[%s555] ss:$8 sm:$0xf]
        %v558 = vlaneseq
        %v559 = vshrl.u32 %v558, 7
        %v560 = vsub.s32 0, %v559
        %v561 = vrot.slane %v556, %v560
        %v562 = vlaneseq
        %v563 = vshrl.u32 %v562, 7
        %v564 = vsub.s32 1, %v563
        %v565 = vrot.slane %v556, %v564
        %v566 = vlaneseq
        %v567 = vshrl.u32 %v566, 7
        %v568 = vsub.s32 2, %v567
        %v569 = vrot.slane %v556, %v568
        %v570 = vlaneseq
        %v571 = vshrl.u32 %v570, 7
        %v572 = vsub.s32 3, %v571
        %v573 = vrot.slane %v556, %v572
        %v578 = vmul.f32 %v546, %v561
        %v579 = vmul.f32 %v547, %v565
        %v580 = vmul.f32 %v548, %v569
        %v581 = vmul.f32 %v554, %v573
        %582 = vst [vmem:[#allocation2 + $0xa0] sm:$0xff] %v578
        %583 = vst [vmem:[#allocation2 + $0xa8] sm:$0xff] %v579
        %584 = vst [vmem:[#allocation2 + $0xb0] sm:$0xff] %v580
        %585 = vst [vmem:[#allocation2 + $0xb8] sm:$0xff] %v581
        %586 = vrot.lane.b32.xlu0 %v329, 113
        %v587 = vpop.permute.xlu0 %586
        %588 = vrot.lane.b32.xlu0 %v330, 113
        %v589 = vpop.permute.xlu0 %588
        %590 = vrot.lane.b32.xlu0 %v332, 113
        %v591 = vpop.permute.xlu0 %590
        %592 = vrot.lane.b32.xlu0 %v333, 113
        %v593 = vpop.permute.xlu0 %592
        %vm594 = vcmask 924672
        %v595 = vsel %vm594, %v587, %v589
        %v596 = vsel %vm594, %v589, %v591
        %v597 = vsel %vm594, %v591, %v593
        %v603 = vsel %vm594, %v593, %v587
        %s604 = scalar_lea.vmem [#allocation6], 6
        %v605 = vld [vmem:[%s604] ss:$8 sm:$0xf]
        %v607 = vlaneseq
        %v608 = vshrl.u32 %v607, 7
        %v609 = vsub.s32 0, %v608
        %v610 = vrot.slane %v605, %v609
        %v611 = vlaneseq
        %v612 = vshrl.u32 %v611, 7
        %v613 = vsub.s32 1, %v612
        %v614 = vrot.slane %v605, %v613
        %v615 = vlaneseq
        %v616 = vshrl.u32 %v615, 7
        %v617 = vsub.s32 2, %v616
        %v618 = vrot.slane %v605, %v617
        %v619 = vlaneseq
        %v620 = vshrl.u32 %v619, 7
        %v621 = vsub.s32 3, %v620
        %v622 = vrot.slane %v605, %v621
        %v627 = vmul.f32 %v595, %v610
        %v628 = vmul.f32 %v596, %v614
        %v629 = vmul.f32 %v597, %v618
        %v630 = vmul.f32 %v603, %v622
        %631 = vst [vmem:[#allocation2 + $0xc0] sm:$0xff] %v627
        %632 = vst [vmem:[#allocation2 + $0xc8] sm:$0xff] %v628
        %633 = vst [vmem:[#allocation2 + $0xd0] sm:$0xff] %v629
        %634 = vst [vmem:[#allocation2 + $0xd8] sm:$0xff] %v630
        %635 = vrot.lane.b32.xlu0 %v329, 112
        %v636 = vpop.permute.xlu0 %635
        %637 = vrot.lane.b32.xlu0 %v330, 112
        %v638 = vpop.permute.xlu0 %637
        %639 = vrot.lane.b32.xlu0 %v332, 112
        %v640 = vpop.permute.xlu0 %639
        %641 = vrot.lane.b32.xlu0 %v333, 112
        %v642 = vpop.permute.xlu0 %641
        %vm643 = vcmask 916480
        %v644 = vsel %vm643, %v636, %v638
        %v645 = vsel %vm643, %v638, %v640
        %v646 = vsel %vm643, %v640, %v642
        %v652 = vsel %vm643, %v642, %v636
        %s653 = scalar_lea.vmem [#allocation6], 7
        %v654 = vld [vmem:[%s653] ss:$8 sm:$0xf]
        %v656 = vlaneseq
        %v657 = vshrl.u32 %v656, 7
        %v658 = vsub.s32 0, %v657
        %v659 = vrot.slane %v654, %v658
        %v660 = vlaneseq
        %v661 = vshrl.u32 %v660, 7
        %v662 = vsub.s32 1, %v661
        %v663 = vrot.slane %v654, %v662
        %v664 = vlaneseq
        %v665 = vshrl.u32 %v664, 7
        %v666 = vsub.s32 2, %v665
        %v667 = vrot.slane %v654, %v666
        %v668 = vlaneseq
        %v669 = vshrl.u32 %v668, 7
        %v670 = vsub.s32 3, %v669
        %v671 = vrot.slane %v654, %v670
        %v676 = vmul.f32 %v644, %v659
        %v677 = vmul.f32 %v645, %v663
        %v678 = vmul.f32 %v646, %v667
        %v679 = vmul.f32 %v652, %v671
        %680 = vst [vmem:[#allocation2 + $0xe0] sm:$0xff] %v676
        %681 = vst [vmem:[#allocation2 + $0xe8] sm:$0xff] %v677
        %682 = vst [vmem:[#allocation2 + $0xf0] sm:$0xff] %v678
        %683 = vst [vmem:[#allocation2 + $0xf8] sm:$0xff] %v679
        %684 = vrot.lane.b32.xlu0 %v329, 111
        %v685 = vpop.permute.xlu0 %684
        %686 = vrot.lane.b32.xlu0 %v330, 111
        %v687 = vpop.permute.xlu0 %686
        %688 = vrot.lane.b32.xlu0 %v332, 111
        %v689 = vpop.permute.xlu0 %688
        %690 = vrot.lane.b32.xlu0 %v333, 111
        %v691 = vpop.permute.xlu0 %690
        %vm692 = vcmask 908288
        %v693 = vsel %vm692, %v685, %v687
        %v694 = vsel %vm692, %v687, %v689
        %v695 = vsel %vm692, %v689, %v691
        %v701 = vsel %vm692, %v691, %v685
        %s702 = scalar_lea.vmem [#allocation6], 32
        %v703 = vld [vmem:[%s702] ss:$8 sm:$0xf]
        %v705 = vlaneseq
        %v706 = vshrl.u32 %v705, 7
        %v707 = vsub.s32 0, %v706
        %v708 = vrot.slane %v703, %v707
        %v709 = vlaneseq
        %v710 = vshrl.u32 %v709, 7
        %v711 = vsub.s32 1, %v710
        %v712 = vrot.slane %v703, %v711
        %v713 = vlaneseq
        %v714 = vshrl.u32 %v713, 7
        %v715 = vsub.s32 2, %v714
        %v716 = vrot.slane %v703, %v715
        %v717 = vlaneseq
        %v718 = vshrl.u32 %v717, 7
        %v719 = vsub.s32 3, %v718
        %v720 = vrot.slane %v703, %v719
        %v725 = vmul.f32 %v693, %v708
        %v726 = vmul.f32 %v694, %v712
        %v727 = vmul.f32 %v695, %v716
        %v728 = vmul.f32 %v701, %v720
        %729 = vst [vmem:[#allocation2 + $0x100] sm:$0xff] %v725
        %730 = vst [vmem:[#allocation2 + $0x108] sm:$0xff] %v726
        %731 = vst [vmem:[#allocation2 + $0x110] sm:$0xff] %v727
        %732 = vst [vmem:[#allocation2 + $0x118] sm:$0xff] %v728
        %v733 = vld [vmem:[%s1] sm:$0xff]
        %v734 = vld [vmem:[#allocation2] sm:$0xff]
        %v735 = vld [vmem:[#allocation2 + $0x8] sm:$0xff]
        %v736 = vld [vmem:[#allocation2 + $0x10] sm:$0xff]
        %v737 = vld [vmem:[#allocation2 + $0x18] sm:$0xff]
        %v738 = vld [vmem:[#allocation2 + $0x20] sm:$0xff]
        %v739 = vld [vmem:[#allocation2 + $0x28] sm:$0xff]
        %v740 = vld [vmem:[#allocation2 + $0x30] sm:$0xff]
        %v741 = vld [vmem:[#allocation2 + $0x38] sm:$0xff]
        %v742 = vld [vmem:[#allocation2 + $0x40] sm:$0xff]
        %v743 = vld [vmem:[#allocation2 + $0x48] sm:$0xff]
        %v744 = vld [vmem:[#allocation2 + $0x50] sm:$0xff]
        %v745 = vld [vmem:[#allocation2 + $0x58] sm:$0xff]
        %v746 = vld [vmem:[#allocation2 + $0x60] sm:$0xff]
        %v747 = vld [vmem:[#allocation2 + $0x68] sm:$0xff]
        %v748 = vld [vmem:[#allocation2 + $0x70] sm:$0xff]
        %v749 = vld [vmem:[#allocation2 + $0x78] sm:$0xff]
        %v750 = vld [vmem:[#allocation2 + $0x80] sm:$0xff]
        %v751 = vld [vmem:[#allocation2 + $0x88] sm:$0xff]
        %v752 = vld [vmem:[#allocation2 + $0x90] sm:$0xff]
        %v753 = vld [vmem:[#allocation2 + $0x98] sm:$0xff]
        %v754 = vld [vmem:[#allocation2 + $0xa0] sm:$0xff]
        %v755 = vld [vmem:[#allocation2 + $0xa8] sm:$0xff]
        %v756 = vld [vmem:[#allocation2 + $0xb0] sm:$0xff]
        %v757 = vld [vmem:[#allocation2 + $0xb8] sm:$0xff]
        %v758 = vld [vmem:[#allocation2 + $0xc0] sm:$0xff]
        %v759 = vld [vmem:[#allocation2 + $0xc8] sm:$0xff]
        %v760 = vld [vmem:[#allocation2 + $0xd0] sm:$0xff]
        %v761 = vld [vmem:[#allocation2 + $0xd8] sm:$0xff]
        %v762 = vld [vmem:[#allocation2 + $0xe0] sm:$0xff]
        %v763 = vld [vmem:[#allocation2 + $0xe8] sm:$0xff]
        %v764 = vld [vmem:[#allocation2 + $0xf0] sm:$0xff]
        %v765 = vld [vmem:[#allocation2 + $0xf8] sm:$0xff]
        %v766 = vld [vmem:[#allocation2 + $0x100] sm:$0xff]
        %v767 = vld [vmem:[#allocation2 + $0x108] sm:$0xff]
        %v768 = vld [vmem:[#allocation2 + $0x110] sm:$0xff]
        %v769 = vld [vmem:[#allocation2 + $0x118] sm:$0xff]
        %v770 = vld [vmem:[%s2] sm:$0xff]
        %772 = vset.pattern.permute.xlu0 0
        %773 = vperm.xlu0 %772, %v770
        %v774 = vpop.permute.xlu0 %773
        %vm776 = vcmask 588800
        %v778 = vsel %vm776, %v733, 0
        %780 = vmatprep.subr.mxu0 0.0
        %781 = vmatpush1.msra.mxu0 0.0
        %782 = vmatprep.subr.mxu0 0.0
        %783 = vmatpush1.msra.mxu0 0.0
        %784 = vmatprep.subr.mxu0 0.0
        %785 = vmatpush1.msra.mxu0 0.0
        %786 = vmatprep.subr.mxu0 0.0
        %787 = vmatpush1.msra.mxu0 0.0
        %788 = vmatprep.subr.mxu0 0.0
        %789 = vmatpush1.msra.mxu0 0.0
        %790 = vmatprep.subr.mxu0 0.0
        %791 = vmatpush1.msra.mxu0 0.0
        %792 = vmatprep.subr.mxu0 0.0
        %793 = vmatpush1.msra.mxu0 0.0
        %794 = vmatprep.subr.mxu0 %v767
        %795 = vmatpush1.msra.mxu0 %v766
        %796 = vmatprep.subr.mxu0 %v763
        %797 = vmatpush1.msra.mxu0 %v762
        %798 = vmatprep.subr.mxu0 %v759
        %799 = vmatpush1.msra.mxu0 %v758
        %800 = vmatprep.subr.mxu0 %v755
        %801 = vmatpush1.msra.mxu0 %v754
        %802 = vmatprep.subr.mxu0 %v751
        %803 = vmatpush1.msra.mxu0 %v750
        %804 = vmatprep.subr.mxu0 %v747
        %805 = vmatpush1.msra.mxu0 %v746
        %806 = vmatprep.subr.mxu0 %v743
        %807 = vmatpush1.msra.mxu0 %v742
        %808 = vmatprep.subr.mxu0 %v739
        %809 = vmatpush1.msra.mxu0 %v738
        %810 = vmatprep.subr.mxu0 %v735
        %811 = vmatpush1.msra.mxu0 %v734
        %812 = vmatprep.subr.mxu0 0.0
        %813 = vmatpush2.msra.mxu0 0.0
        %814 = vmatprep.subr.mxu0 0.0
        %815 = vmatpush2.msra.mxu0 0.0
        %816 = vmatprep.subr.mxu0 0.0
        %817 = vmatpush2.msra.mxu0 0.0
        %818 = vmatprep.subr.mxu0 0.0
        %819 = vmatpush2.msra.mxu0 0.0
        %820 = vmatprep.subr.mxu0 0.0
        %821 = vmatpush2.msra.mxu0 0.0
        %822 = vmatprep.subr.mxu0 0.0
        %823 = vmatpush2.msra.mxu0 0.0
        %824 = vmatprep.subr.mxu0 0.0
        %825 = vmatpush2.msra.mxu0 0.0
        %826 = vmatprep.subr.mxu0 0.0
        %827 = vmatpush2.msra.mxu0 0.0
        %828 = vmatprep.subr.mxu0 0.0
        %829 = vmatpush2.msra.mxu0 0.0
        %830 = vmatprep.subr.mxu0 0.0
        %831 = vmatpush2.msra.mxu0 0.0
        %832 = vmatprep.subr.mxu0 0.0
        %833 = vmatpush2.msra.mxu0 0.0
        %834 = vmatprep.subr.mxu0 0.0
        %835 = vmatpush2.msra.mxu0 0.0
        %836 = vmatprep.subr.mxu0 0.0
        %837 = vmatpush2.msra.mxu0 0.0
        %838 = vmatprep.subr.mxu0 0.0
        %839 = vmatpush2.msra.mxu0 0.0
        %840 = vmatprep.subr.mxu0 0.0
        %841 = vmatpush2.msra.mxu0 0.0
        %842 = vmatprep.subr.mxu0 0.0
        %843 = vmatpush2.msra.mxu0 0.0
        %844 = vmatprep.mubr.f32.mxu0 0.0
        %845 = vmatmul.mubr.f32.gmra.mxu0 %v778
        %v846 = vpop.f32.mrf.mxu0
        %v847 = vadd.f32 %v774, %v846
        %v848 = vpop.f32.mrf.mxu0
        %v849 = vadd.f32 %v774, %v848
        %850 = vdwg.mxu0
        %851 = vmatprep.subr.mxu0 0.0
        %852 = vmatpush1.msra.mxu0 0.0
        %853 = vmatprep.subr.mxu0 0.0
        %854 = vmatpush1.msra.mxu0 0.0
        %855 = vmatprep.subr.mxu0 0.0
        %856 = vmatpush1.msra.mxu0 0.0
        %857 = vmatprep.subr.mxu0 0.0
        %858 = vmatpush1.msra.mxu0 0.0
        %859 = vmatprep.subr.mxu0 0.0
        %860 = vmatpush1.msra.mxu0 0.0
        %861 = vmatprep.subr.mxu0 0.0
        %862 = vmatpush1.msra.mxu0 0.0
        %863 = vmatprep.subr.mxu0 0.0
        %864 = vmatpush1.msra.mxu0 0.0
        %865 = vmatprep.subr.mxu0 %v769
        %866 = vmatpush1.msra.mxu0 %v768
        %867 = vmatprep.subr.mxu0 %v765
        %868 = vmatpush1.msra.mxu0 %v764
        %869 = vmatprep.subr.mxu0 %v761
        %870 = vmatpush1.msra.mxu0 %v760
        %871 = vmatprep.subr.mxu0 %v757
        %872 = vmatpush1.msra.mxu0 %v756
        %873 = vmatprep.subr.mxu0 %v753
        %874 = vmatpush1.msra.mxu0 %v752
        %875 = vmatprep.subr.mxu0 %v749
        %876 = vmatpush1.msra.mxu0 %v748
        %877 = vmatprep.subr.mxu0 %v745
        %878 = vmatpush1.msra.mxu0 %v744
        %879 = vmatprep.subr.mxu0 %v741
        %880 = vmatpush1.msra.mxu0 %v740
        %881 = vmatprep.subr.mxu0 %v737
        %882 = vmatpush1.msra.mxu0 %v736
        %883 = vmatprep.subr.mxu0 0.0
        %884 = vmatpush2.msra.mxu0 0.0
        %885 = vmatprep.subr.mxu0 0.0
        %886 = vmatpush2.msra.mxu0 0.0
        %887 = vmatprep.subr.mxu0 0.0
        %888 = vmatpush2.msra.mxu0 0.0
        %889 = vmatprep.subr.mxu0 0.0
        %890 = vmatpush2.msra.mxu0 0.0
        %891 = vmatprep.subr.mxu0 0.0
        %892 = vmatpush2.msra.mxu0 0.0
        %893 = vmatprep.subr.mxu0 0.0
        %894 = vmatpush2.msra.mxu0 0.0
        %895 = vmatprep.subr.mxu0 0.0
        %896 = vmatpush2.msra.mxu0 0.0
        %897 = vmatprep.subr.mxu0 0.0
        %898 = vmatpush2.msra.mxu0 0.0
        %899 = vmatprep.subr.mxu0 0.0
        %900 = vmatpush2.msra.mxu0 0.0
        %901 = vmatprep.subr.mxu0 0.0
        %902 = vmatpush2.msra.mxu0 0.0
        %903 = vmatprep.subr.mxu0 0.0
        %904 = vmatpush2.msra.mxu0 0.0
        %905 = vmatprep.subr.mxu0 0.0
        %906 = vmatpush2.msra.mxu0 0.0
        %907 = vmatprep.subr.mxu0 0.0
        %908 = vmatpush2.msra.mxu0 0.0
        %909 = vmatprep.subr.mxu0 0.0
        %910 = vmatpush2.msra.mxu0 0.0
        %911 = vmatprep.subr.mxu0 0.0
        %912 = vmatpush2.msra.mxu0 0.0
        %913 = vmatprep.subr.mxu0 0.0
        %914 = vmatpush2.msra.mxu0 0.0
        %915 = vmatprep.mubr.f32.mxu0 0.0
        %916 = vmatmul.mubr.f32.gmra.mxu0 %v778
        %v917 = vpop.f32.mrf.mxu0
        %v918 = vadd.f32 %v774, %v917
        %v919 = vpop.f32.mrf.mxu0
        %v920 = vadd.f32 %v774, %v919
        %921 = vdwg.mxu0
        %v922 = vmax.f32 %v847, 0.0
        %v923 = vmax.f32 %v849, 0.0
        %v924 = vmax.f32 %v918, 0.0
        %v925 = vmax.f32 %v920, 0.0
        %927 = vrot.lane.b32.xlu0 %v925, 17
        %v928 = vpop.permute.xlu0 %927
        %933 = vrot.lane.b32.xlu0 %v922, 17
        %v934 = vpop.permute.xlu0 %933
        %935 = vrot.lane.b32.xlu0 %v923, 17
        %v936 = vpop.permute.xlu0 %935
        %937 = vrot.lane.b32.xlu0 %v924, 17
        %v938 = vpop.permute.xlu0 %937
        %v939 = vsel %vm347, %v934, %v936
        %v940 = vsel %vm347, %v936, %v938
        %v941 = vsel %vm347, %v938, %v928
        %v946 = vsel %vm347, %v928, %v934
        %v947 = vld [vmem:[#allocation6] ss:$8 sm:$0xf]
        %v949 = vlaneseq
        %v950 = vshrl.u32 %v949, 7
        %v951 = vsub.s32 0, %v950
        %v952 = vrot.slane %v947, %v951
        %v953 = vlaneseq
        %v954 = vshrl.u32 %v953, 7
        %v955 = vsub.s32 1, %v954
        %v956 = vrot.slane %v947, %v955
        %v957 = vlaneseq
        %v958 = vshrl.u32 %v957, 7
        %v959 = vsub.s32 2, %v958
        %v960 = vrot.slane %v947, %v959
        %v961 = vlaneseq
        %v962 = vshrl.u32 %v961, 7
        %v963 = vsub.s32 3, %v962
        %v964 = vrot.slane %v947, %v963
        %v969 = vmul.f32 %v946, %v952
        %v970 = vmul.f32 %v939, %v956
        %v971 = vmul.f32 %v940, %v960
        %v972 = vmul.f32 %v941, %v964
        %973 = vst [vmem:[#allocation2] sm:$0xff] %v969
        %974 = vst [vmem:[#allocation2 + $0x8] sm:$0xff] %v970
        %975 = vst [vmem:[#allocation2 + $0x10] sm:$0xff] %v971
        %976 = vst [vmem:[#allocation2 + $0x18] sm:$0xff] %v972
        %977 = vrot.lane.b32.xlu0 %v925, 16
        %v978 = vpop.permute.xlu0 %977
        %980 = vrot.lane.b32.xlu0 %v922, 16
        %v981 = vpop.permute.xlu0 %980
        %982 = vrot.lane.b32.xlu0 %v923, 16
        %v983 = vpop.permute.xlu0 %982
        %984 = vrot.lane.b32.xlu0 %v924, 16
        %v985 = vpop.permute.xlu0 %984
        %v986 = vsel %vm395, %v981, %v983
        %v987 = vsel %vm395, %v983, %v985
        %v988 = vsel %vm395, %v985, %v978
        %v993 = vsel %vm395, %v978, %v981
        %v994 = vld [vmem:[%s404] ss:$8 sm:$0xf]
        %v996 = vlaneseq
        %v997 = vshrl.u32 %v996, 7
        %v998 = vsub.s32 0, %v997
        %v999 = vrot.slane %v994, %v998
        %v1000 = vlaneseq
        %v1001 = vshrl.u32 %v1000, 7
        %v1002 = vsub.s32 1, %v1001
        %v1003 = vrot.slane %v994, %v1002
        %v1004 = vlaneseq
        %v1005 = vshrl.u32 %v1004, 7
        %v1006 = vsub.s32 2, %v1005
        %v1007 = vrot.slane %v994, %v1006
        %v1008 = vlaneseq
        %v1009 = vshrl.u32 %v1008, 7
        %v1010 = vsub.s32 3, %v1009
        %v1011 = vrot.slane %v994, %v1010
        %v1016 = vmul.f32 %v993, %v999
        %v1017 = vmul.f32 %v986, %v1003
        %v1018 = vmul.f32 %v987, %v1007
        %v1019 = vmul.f32 %v988, %v1011
        %1020 = vst [vmem:[#allocation2 + $0x20] sm:$0xff] %v1016
        %1021 = vst [vmem:[#allocation2 + $0x28] sm:$0xff] %v1017
        %1022 = vst [vmem:[#allocation2 + $0x30] sm:$0xff] %v1018
        %1023 = vst [vmem:[#allocation2 + $0x38] sm:$0xff] %v1019
        %1024 = vrot.lane.b32.xlu0 %v925, 15
        %v1025 = vpop.permute.xlu0 %1024
        %1027 = vrot.lane.b32.xlu0 %v922, 15
        %v1028 = vpop.permute.xlu0 %1027
        %1029 = vrot.lane.b32.xlu0 %v923, 15
        %v1030 = vpop.permute.xlu0 %1029
        %1031 = vrot.lane.b32.xlu0 %v924, 15
        %v1032 = vpop.permute.xlu0 %1031
        %v1033 = vsel %vm444, %v1028, %v1030
        %v1034 = vsel %vm444, %v1030, %v1032
        %v1035 = vsel %vm444, %v1032, %v1025
        %v1040 = vsel %vm444, %v1025, %v1028
        %v1041 = vld [vmem:[%s453] ss:$8 sm:$0xf]
        %v1043 = vlaneseq
        %v1044 = vshrl.u32 %v1043, 7
        %v1045 = vsub.s32 0, %v1044
        %v1046 = vrot.slane %v1041, %v1045
        %v1047 = vlaneseq
        %v1048 = vshrl.u32 %v1047, 7
        %v1049 = vsub.s32 1, %v1048
        %v1050 = vrot.slane %v1041, %v1049
        %v1051 = vlaneseq
        %v1052 = vshrl.u32 %v1051, 7
        %v1053 = vsub.s32 2, %v1052
        %v1054 = vrot.slane %v1041, %v1053
        %v1055 = vlaneseq
        %v1056 = vshrl.u32 %v1055, 7
        %v1057 = vsub.s32 3, %v1056
        %v1058 = vrot.slane %v1041, %v1057
        %v1063 = vmul.f32 %v1040, %v1046
        %v1064 = vmul.f32 %v1033, %v1050
        %v1065 = vmul.f32 %v1034, %v1054
        %v1066 = vmul.f32 %v1035, %v1058
        %1067 = vst [vmem:[#allocation2 + $0x40] sm:$0xff] %v1063
        %1068 = vst [vmem:[#allocation2 + $0x48] sm:$0xff] %v1064
        %1069 = vst [vmem:[#allocation2 + $0x50] sm:$0xff] %v1065
        %1070 = vst [vmem:[#allocation2 + $0x58] sm:$0xff] %v1066
        %1071 = vrot.lane.b32.xlu0 %v925, 1
        %v1072 = vpop.permute.xlu0 %1071
        %1074 = vrot.lane.b32.xlu0 %v922, 1
        %v1075 = vpop.permute.xlu0 %1074
        %1076 = vrot.lane.b32.xlu0 %v923, 1
        %v1077 = vpop.permute.xlu0 %1076
        %1078 = vrot.lane.b32.xlu0 %v924, 1
        %v1079 = vpop.permute.xlu0 %1078
        %v1080 = vsel %vm493, %v1075, %v1077
        %v1081 = vsel %vm493, %v1077, %v1079
        %v1082 = vsel %vm493, %v1079, %v1072
        %v1087 = vsel %vm493, %v1072, %v1075
        %v1088 = vld [vmem:[%s502] ss:$8 sm:$0xf]
        %v1090 = vlaneseq
        %v1091 = vshrl.u32 %v1090, 7
        %v1092 = vsub.s32 0, %v1091
        %v1093 = vrot.slane %v1088, %v1092
        %v1094 = vlaneseq
        %v1095 = vshrl.u32 %v1094, 7
        %v1096 = vsub.s32 1, %v1095
        %v1097 = vrot.slane %v1088, %v1096
        %v1098 = vlaneseq
        %v1099 = vshrl.u32 %v1098, 7
        %v1100 = vsub.s32 2, %v1099
        %v1101 = vrot.slane %v1088, %v1100
        %v1102 = vlaneseq
        %v1103 = vshrl.u32 %v1102, 7
        %v1104 = vsub.s32 3, %v1103
        %v1105 = vrot.slane %v1088, %v1104
        %v1110 = vmul.f32 %v1087, %v1093
        %v1111 = vmul.f32 %v1080, %v1097
        %v1112 = vmul.f32 %v1081, %v1101
        %v1113 = vmul.f32 %v1082, %v1105
        %1114 = vst [vmem:[#allocation2 + $0x60] sm:$0xff] %v1110
        %1115 = vst [vmem:[#allocation2 + $0x68] sm:$0xff] %v1111
        %1116 = vst [vmem:[#allocation2 + $0x70] sm:$0xff] %v1112
        %1117 = vst [vmem:[#allocation2 + $0x78] sm:$0xff] %v1113
        %1118 = vst [vmem:[#allocation2 + $0x80] sm:$0xff] %v922
        %1119 = vst [vmem:[#allocation2 + $0x88] sm:$0xff] %v923
        %1120 = vst [vmem:[#allocation2 + $0x90] sm:$0xff] %v924
        %1121 = vst [vmem:[#allocation2 + $0x98] sm:$0xff] %v925
        %1122 = vrot.lane.b32.xlu0 %v922, 127
        %v1123 = vpop.permute.xlu0 %1122
        %1124 = vrot.lane.b32.xlu0 %v923, 127
        %v1125 = vpop.permute.xlu0 %1124
        %1126 = vrot.lane.b32.xlu0 %v924, 127
        %v1127 = vpop.permute.xlu0 %1126
        %1128 = vrot.lane.b32.xlu0 %v925, 127
        %v1129 = vpop.permute.xlu0 %1128
        %v1130 = vsel %vm545, %v1123, %v1125
        %v1131 = vsel %vm545, %v1125, %v1127
        %v1132 = vsel %vm545, %v1127, %v1129
        %v1138 = vsel %vm545, %v1129, %v1123
        %v1139 = vld [vmem:[%s555] ss:$8 sm:$0xf]
        %v1141 = vlaneseq
        %v1142 = vshrl.u32 %v1141, 7
        %v1143 = vsub.s32 0, %v1142
        %v1144 = vrot.slane %v1139, %v1143
        %v1145 = vlaneseq
        %v1146 = vshrl.u32 %v1145, 7
        %v1147 = vsub.s32 1, %v1146
        %v1148 = vrot.slane %v1139, %v1147
        %v1149 = vlaneseq
        %v1150 = vshrl.u32 %v1149, 7
        %v1151 = vsub.s32 2, %v1150
        %v1152 = vrot.slane %v1139, %v1151
        %v1153 = vlaneseq
        %v1154 = vshrl.u32 %v1153, 7
        %v1155 = vsub.s32 3, %v1154
        %v1156 = vrot.slane %v1139, %v1155
        %v1161 = vmul.f32 %v1130, %v1144
        %v1162 = vmul.f32 %v1131, %v1148
        %v1163 = vmul.f32 %v1132, %v1152
        %v1164 = vmul.f32 %v1138, %v1156
        %1165 = vst [vmem:[#allocation2 + $0xa0] sm:$0xff] %v1161
        %1166 = vst [vmem:[#allocation2 + $0xa8] sm:$0xff] %v1162
        %1167 = vst [vmem:[#allocation2 + $0xb0] sm:$0xff] %v1163
        %1168 = vst [vmem:[#allocation2 + $0xb8] sm:$0xff] %v1164
        %1169 = vrot.lane.b32.xlu0 %v922, 113
        %v1170 = vpop.permute.xlu0 %1169
        %1171 = vrot.lane.b32.xlu0 %v923, 113
        %v1172 = vpop.permute.xlu0 %1171
        %1173 = vrot.lane.b32.xlu0 %v924, 113
        %v1174 = vpop.permute.xlu0 %1173
        %1175 = vrot.lane.b32.xlu0 %v925, 113
        %v1176 = vpop.permute.xlu0 %1175
        %v1177 = vsel %vm594, %v1170, %v1172
        %v1178 = vsel %vm594, %v1172, %v1174
        %v1179 = vsel %vm594, %v1174, %v1176
        %v1185 = vsel %vm594, %v1176, %v1170
        %v1186 = vld [vmem:[%s604] ss:$8 sm:$0xf]
        %v1188 = vlaneseq
        %v1189 = vshrl.u32 %v1188, 7
        %v1190 = vsub.s32 0, %v1189
        %v1191 = vrot.slane %v1186, %v1190
        %v1192 = vlaneseq
        %v1193 = vshrl.u32 %v1192, 7
        %v1194 = vsub.s32 1, %v1193
        %v1195 = vrot.slane %v1186, %v1194
        %v1196 = vlaneseq
        %v1197 = vshrl.u32 %v1196, 7
        %v1198 = vsub.s32 2, %v1197
        %v1199 = vrot.slane %v1186, %v1198
        %v1200 = vlaneseq
        %v1201 = vshrl.u32 %v1200, 7
        %v1202 = vsub.s32 3, %v1201
        %v1203 = vrot.slane %v1186, %v1202
        %v1208 = vmul.f32 %v1177, %v1191
        %v1209 = vmul.f32 %v1178, %v1195
        %v1210 = vmul.f32 %v1179, %v1199
        %v1211 = vmul.f32 %v1185, %v1203
        %1212 = vst [vmem:[#allocation2 + $0xc0] sm:$0xff] %v1208
        %1213 = vst [vmem:[#allocation2 + $0xc8] sm:$0xff] %v1209
        %1214 = vst [vmem:[#allocation2 + $0xd0] sm:$0xff] %v1210
        %1215 = vst [vmem:[#allocation2 + $0xd8] sm:$0xff] %v1211
        %1216 = vrot.lane.b32.xlu0 %v922, 112
        %v1217 = vpop.permute.xlu0 %1216
        %1218 = vrot.lane.b32.xlu0 %v923, 112
        %v1219 = vpop.permute.xlu0 %1218
        %1220 = vrot.lane.b32.xlu0 %v924, 112
        %v1221 = vpop.permute.xlu0 %1220
        %1222 = vrot.lane.b32.xlu0 %v925, 112
        %v1223 = vpop.permute.xlu0 %1222
        %v1224 = vsel %vm643, %v1217, %v1219
        %v1225 = vsel %vm643, %v1219, %v1221
        %v1226 = vsel %vm643, %v1221, %v1223
        %v1232 = vsel %vm643, %v1223, %v1217
        %v1233 = vld [vmem:[%s653] ss:$8 sm:$0xf]
        %v1235 = vlaneseq
        %v1236 = vshrl.u32 %v1235, 7
        %v1237 = vsub.s32 0, %v1236
        %v1238 = vrot.slane %v1233, %v1237
        %v1239 = vlaneseq
        %v1240 = vshrl.u32 %v1239, 7
        %v1241 = vsub.s32 1, %v1240
        %v1242 = vrot.slane %v1233, %v1241
        %v1243 = vlaneseq
        %v1244 = vshrl.u32 %v1243, 7
        %v1245 = vsub.s32 2, %v1244
        %v1246 = vrot.slane %v1233, %v1245
        %v1247 = vlaneseq
        %v1248 = vshrl.u32 %v1247, 7
        %v1249 = vsub.s32 3, %v1248
        %v1250 = vrot.slane %v1233, %v1249
        %v1255 = vmul.f32 %v1224, %v1238
        %v1256 = vmul.f32 %v1225, %v1242
        %v1257 = vmul.f32 %v1226, %v1246
        %v1258 = vmul.f32 %v1232, %v1250
        %1259 = vst [vmem:[#allocation2 + $0xe0] sm:$0xff] %v1255
        %1260 = vst [vmem:[#allocation2 + $0xe8] sm:$0xff] %v1256
        %1261 = vst [vmem:[#allocation2 + $0xf0] sm:$0xff] %v1257
        %1262 = vst [vmem:[#allocation2 + $0xf8] sm:$0xff] %v1258
        %1263 = vrot.lane.b32.xlu0 %v922, 111
        %v1264 = vpop.permute.xlu0 %1263
        %1265 = vrot.lane.b32.xlu0 %v923, 111
        %v1266 = vpop.permute.xlu0 %1265
        %1267 = vrot.lane.b32.xlu0 %v924, 111
        %v1268 = vpop.permute.xlu0 %1267
        %1269 = vrot.lane.b32.xlu0 %v925, 111
        %v1270 = vpop.permute.xlu0 %1269
        %v1271 = vsel %vm692, %v1264, %v1266
        %v1272 = vsel %vm692, %v1266, %v1268
        %v1273 = vsel %vm692, %v1268, %v1270
        %v1279 = vsel %vm692, %v1270, %v1264
        %v1280 = vld [vmem:[%s702] ss:$8 sm:$0xf]
        %v1282 = vlaneseq
        %v1283 = vshrl.u32 %v1282, 7
        %v1284 = vsub.s32 0, %v1283
        %v1285 = vrot.slane %v1280, %v1284
        %v1286 = vlaneseq
        %v1287 = vshrl.u32 %v1286, 7
        %v1288 = vsub.s32 1, %v1287
        %v1289 = vrot.slane %v1280, %v1288
        %v1290 = vlaneseq
        %v1291 = vshrl.u32 %v1290, 7
        %v1292 = vsub.s32 2, %v1291
        %v1293 = vrot.slane %v1280, %v1292
        %v1294 = vlaneseq
        %v1295 = vshrl.u32 %v1294, 7
        %v1296 = vsub.s32 3, %v1295
        %v1297 = vrot.slane %v1280, %v1296
        %v1302 = vmul.f32 %v1271, %v1285
        %v1303 = vmul.f32 %v1272, %v1289
        %v1304 = vmul.f32 %v1273, %v1293
        %v1305 = vmul.f32 %v1279, %v1297
        %1306 = vst [vmem:[#allocation2 + $0x100] sm:$0xff] %v1302
        %1307 = vst [vmem:[#allocation2 + $0x108] sm:$0xff] %v1303
        %1308 = vst [vmem:[#allocation2 + $0x110] sm:$0xff] %v1304
        %1309 = vst [vmem:[#allocation2 + $0x118] sm:$0xff] %v1305
        %s1310 = scalar_lea.vmem %s1, 8
        %v1311 = vld [vmem:[%s1310] sm:$0xff]
        %v1312 = vld [vmem:[#allocation2] sm:$0xff]
        %v1313 = vld [vmem:[#allocation2 + $0x8] sm:$0xff]
        %v1314 = vld [vmem:[#allocation2 + $0x10] sm:$0xff]
        %v1315 = vld [vmem:[#allocation2 + $0x18] sm:$0xff]
        %v1316 = vld [vmem:[#allocation2 + $0x20] sm:$0xff]
        %v1317 = vld [vmem:[#allocation2 + $0x28] sm:$0xff]
        %v1318 = vld [vmem:[#allocation2 + $0x30] sm:$0xff]
        %v1319 = vld [vmem:[#allocation2 + $0x38] sm:$0xff]
        %v1320 = vld [vmem:[#allocation2 + $0x40] sm:$0xff]
        %v1321 = vld [vmem:[#allocation2 + $0x48] sm:$0xff]
        %v1322 = vld [vmem:[#allocation2 + $0x50] sm:$0xff]
        %v1323 = vld [vmem:[#allocation2 + $0x58] sm:$0xff]
        %v1324 = vld [vmem:[#allocation2 + $0x60] sm:$0xff]
        %v1325 = vld [vmem:[#allocation2 + $0x68] sm:$0xff]
        %v1326 = vld [vmem:[#allocation2 + $0x70] sm:$0xff]
        %v1327 = vld [vmem:[#allocation2 + $0x78] sm:$0xff]
        %v1328 = vld [vmem:[#allocation2 + $0x80] sm:$0xff]
        %v1329 = vld [vmem:[#allocation2 + $0x88] sm:$0xff]
        %v1330 = vld [vmem:[#allocation2 + $0x90] sm:$0xff]
        %v1331 = vld [vmem:[#allocation2 + $0x98] sm:$0xff]
        %v1332 = vld [vmem:[#allocation2 + $0xa0] sm:$0xff]
        %v1333 = vld [vmem:[#allocation2 + $0xa8] sm:$0xff]
        %v1334 = vld [vmem:[#allocation2 + $0xb0] sm:$0xff]
        %v1335 = vld [vmem:[#allocation2 + $0xb8] sm:$0xff]
        %v1336 = vld [vmem:[#allocation2 + $0xc0] sm:$0xff]
        %v1337 = vld [vmem:[#allocation2 + $0xc8] sm:$0xff]
        %v1338 = vld [vmem:[#allocation2 + $0xd0] sm:$0xff]
        %v1339 = vld [vmem:[#allocation2 + $0xd8] sm:$0xff]
        %v1340 = vld [vmem:[#allocation2 + $0xe0] sm:$0xff]
        %v1341 = vld [vmem:[#allocation2 + $0xe8] sm:$0xff]
        %v1342 = vld [vmem:[#allocation2 + $0xf0] sm:$0xff]
        %v1343 = vld [vmem:[#allocation2 + $0xf8] sm:$0xff]
        %v1344 = vld [vmem:[#allocation2 + $0x100] sm:$0xff]
        %v1345 = vld [vmem:[#allocation2 + $0x108] sm:$0xff]
        %v1346 = vld [vmem:[#allocation2 + $0x110] sm:$0xff]
        %v1347 = vld [vmem:[#allocation2 + $0x118] sm:$0xff]
        %s1348 = scalar_lea.vmem %s2, 8
        %v1349 = vld [vmem:[%s1348] sm:$0xff]
        %1351 = vset.pattern.permute.xlu0 0
        %1352 = vperm.xlu0 %1351, %v1349
        %v1353 = vpop.permute.xlu0 %1352
        %v1356 = vsel %vm776, %v1311, 0
        %1358 = vmatprep.subr.mxu0 0.0
        %1359 = vmatpush1.msra.mxu0 0.0
        %1360 = vmatprep.subr.mxu0 0.0
        %1361 = vmatpush1.msra.mxu0 0.0
        %1362 = vmatprep.subr.mxu0 0.0
        %1363 = vmatpush1.msra.mxu0 0.0
        %1364 = vmatprep.subr.mxu0 0.0
        %1365 = vmatpush1.msra.mxu0 0.0
        %1366 = vmatprep.subr.mxu0 0.0
        %1367 = vmatpush1.msra.mxu0 0.0
        %1368 = vmatprep.subr.mxu0 0.0
        %1369 = vmatpush1.msra.mxu0 0.0
        %1370 = vmatprep.subr.mxu0 0.0
        %1371 = vmatpush1.msra.mxu0 0.0
        %1372 = vmatprep.subr.mxu0 %v1345
        %1373 = vmatpush1.msra.mxu0 %v1344
        %1374 = vmatprep.subr.mxu0 %v1341
        %1375 = vmatpush1.msra.mxu0 %v1340
        %1376 = vmatprep.subr.mxu0 %v1337
        %1377 = vmatpush1.msra.mxu0 %v1336
        %1378 = vmatprep.subr.mxu0 %v1333
        %1379 = vmatpush1.msra.mxu0 %v1332
        %1380 = vmatprep.subr.mxu0 %v1329
        %1381 = vmatpush1.msra.mxu0 %v1328
        %1382 = vmatprep.subr.mxu0 %v1325
        %1383 = vmatpush1.msra.mxu0 %v1324
        %1384 = vmatprep.subr.mxu0 %v1321
        %1385 = vmatpush1.msra.mxu0 %v1320
        %1386 = vmatprep.subr.mxu0 %v1317
        %1387 = vmatpush1.msra.mxu0 %v1316
        %1388 = vmatprep.subr.mxu0 %v1313
        %1389 = vmatpush1.msra.mxu0 %v1312
        %1390 = vmatprep.subr.mxu0 0.0
        %1391 = vmatpush2.msra.mxu0 0.0
        %1392 = vmatprep.subr.mxu0 0.0
        %1393 = vmatpush2.msra.mxu0 0.0
        %1394 = vmatprep.subr.mxu0 0.0
        %1395 = vmatpush2.msra.mxu0 0.0
        %1396 = vmatprep.subr.mxu0 0.0
        %1397 = vmatpush2.msra.mxu0 0.0
        %1398 = vmatprep.subr.mxu0 0.0
        %1399 = vmatpush2.msra.mxu0 0.0
        %1400 = vmatprep.subr.mxu0 0.0
        %1401 = vmatpush2.msra.mxu0 0.0
        %1402 = vmatprep.subr.mxu0 0.0
        %1403 = vmatpush2.msra.mxu0 0.0
        %1404 = vmatprep.subr.mxu0 0.0
        %1405 = vmatpush2.msra.mxu0 0.0
        %1406 = vmatprep.subr.mxu0 0.0
        %1407 = vmatpush2.msra.mxu0 0.0
        %1408 = vmatprep.subr.mxu0 0.0
        %1409 = vmatpush2.msra.mxu0 0.0
        %1410 = vmatprep.subr.mxu0 0.0
        %1411 = vmatpush2.msra.mxu0 0.0
        %1412 = vmatprep.subr.mxu0 0.0
        %1413 = vmatpush2.msra.mxu0 0.0
        %1414 = vmatprep.subr.mxu0 0.0
        %1415 = vmatpush2.msra.mxu0 0.0
        %1416 = vmatprep.subr.mxu0 0.0
        %1417 = vmatpush2.msra.mxu0 0.0
        %1418 = vmatprep.subr.mxu0 0.0
        %1419 = vmatpush2.msra.mxu0 0.0
        %1420 = vmatprep.subr.mxu0 0.0
        %1421 = vmatpush2.msra.mxu0 0.0
        %1422 = vmatprep.mubr.f32.mxu0 0.0
        %1423 = vmatmul.mubr.f32.gmra.mxu0 %v1356
        %v1424 = vpop.f32.mrf.mxu0
        %v1425 = vadd.f32 %v1353, %v1424
        %v1426 = vpop.f32.mrf.mxu0
        %v1427 = vadd.f32 %v1353, %v1426
        %1428 = vdwg.mxu0
        %1429 = vmatprep.subr.mxu0 0.0
        %1430 = vmatpush1.msra.mxu0 0.0
        %1431 = vmatprep.subr.mxu0 0.0
        %1432 = vmatpush1.msra.mxu0 0.0
        %1433 = vmatprep.subr.mxu0 0.0
        %1434 = vmatpush1.msra.mxu0 0.0
        %1435 = vmatprep.subr.mxu0 0.0
        %1436 = vmatpush1.msra.mxu0 0.0
        %1437 = vmatprep.subr.mxu0 0.0
        %1438 = vmatpush1.msra.mxu0 0.0
        %1439 = vmatprep.subr.mxu0 0.0
        %1440 = vmatpush1.msra.mxu0 0.0
        %1441 = vmatprep.subr.mxu0 0.0
        %1442 = vmatpush1.msra.mxu0 0.0
        %1443 = vmatprep.subr.mxu0 %v1347
        %1444 = vmatpush1.msra.mxu0 %v1346
        %1445 = vmatprep.subr.mxu0 %v1343
        %1446 = vmatpush1.msra.mxu0 %v1342
        %1447 = vmatprep.subr.mxu0 %v1339
        %1448 = vmatpush1.msra.mxu0 %v1338
        %1449 = vmatprep.subr.mxu0 %v1335
        %1450 = vmatpush1.msra.mxu0 %v1334
        %1451 = vmatprep.subr.mxu0 %v1331
        %1452 = vmatpush1.msra.mxu0 %v1330
        %1453 = vmatprep.subr.mxu0 %v1327
        %1454 = vmatpush1.msra.mxu0 %v1326
        %1455 = vmatprep.subr.mxu0 %v1323
        %1456 = vmatpush1.msra.mxu0 %v1322
        %1457 = vmatprep.subr.mxu0 %v1319
        %1458 = vmatpush1.msra.mxu0 %v1318
        %1459 = vmatprep.subr.mxu0 %v1315
        %1460 = vmatpush1.msra.mxu0 %v1314
        %1461 = vmatprep.subr.mxu0 0.0
        %1462 = vmatpush2.msra.mxu0 0.0
        %1463 = vmatprep.subr.mxu0 0.0
        %1464 = vmatpush2.msra.mxu0 0.0
        %1465 = vmatprep.subr.mxu0 0.0
        %1466 = vmatpush2.msra.mxu0 0.0
        %1467 = vmatprep.subr.mxu0 0.0
        %1468 = vmatpush2.msra.mxu0 0.0
        %1469 = vmatprep.subr.mxu0 0.0
        %1470 = vmatpush2.msra.mxu0 0.0
        %1471 = vmatprep.subr.mxu0 0.0
        %1472 = vmatpush2.msra.mxu0 0.0
        %1473 = vmatprep.subr.mxu0 0.0
        %1474 = vmatpush2.msra.mxu0 0.0
        %1475 = vmatprep.subr.mxu0 0.0
        %1476 = vmatpush2.msra.mxu0 0.0
        %1477 = vmatprep.subr.mxu0 0.0
        %1478 = vmatpush2.msra.mxu0 0.0
        %1479 = vmatprep.subr.mxu0 0.0
        %1480 = vmatpush2.msra.mxu0 0.0
        %1481 = vmatprep.subr.mxu0 0.0
        %1482 = vmatpush2.msra.mxu0 0.0
        %1483 = vmatprep.subr.mxu0 0.0
        %1484 = vmatpush2.msra.mxu0 0.0
        %1485 = vmatprep.subr.mxu0 0.0
        %1486 = vmatpush2.msra.mxu0 0.0
        %1487 = vmatprep.subr.mxu0 0.0
        %1488 = vmatpush2.msra.mxu0 0.0
        %1489 = vmatprep.subr.mxu0 0.0
        %1490 = vmatpush2.msra.mxu0 0.0
        %1491 = vmatprep.subr.mxu0 0.0
        %1492 = vmatpush2.msra.mxu0 0.0
        %1493 = vmatprep.mubr.f32.mxu0 0.0
        %1494 = vmatmul.mubr.f32.gmra.mxu0 %v1356
        %v1495 = vpop.f32.mrf.mxu0
        %v1496 = vadd.f32 %v1353, %v1495
        %v1497 = vpop.f32.mrf.mxu0
        %v1498 = vadd.f32 %v1353, %v1497
        %1499 = vdwg.mxu0
        %v1500 = vmax.f32 %v1425, 0.0
        %v1501 = vmax.f32 %v1427, 0.0
        %v1502 = vmax.f32 %v1496, 0.0
        %v1503 = vmax.f32 %v1498, 0.0
        %1505 = vrot.lane.b32.xlu0 %v1503, 17
        %v1506 = vpop.permute.xlu0 %1505
        %1511 = vrot.lane.b32.xlu0 %v1500, 17
        %v1512 = vpop.permute.xlu0 %1511
        %1513 = vrot.lane.b32.xlu0 %v1501, 17
        %v1514 = vpop.permute.xlu0 %1513
        %1515 = vrot.lane.b32.xlu0 %v1502, 17
        %v1516 = vpop.permute.xlu0 %1515
        %v1517 = vsel %vm347, %v1512, %v1514
        %v1518 = vsel %vm347, %v1514, %v1516
        %v1519 = vsel %vm347, %v1516, %v1506
        %v1524 = vsel %vm347, %v1506, %v1512
        %v1525 = vld [vmem:[#allocation6] ss:$8 sm:$0xf]
        %v1527 = vlaneseq
        %v1528 = vshrl.u32 %v1527, 7
        %v1529 = vsub.s32 0, %v1528
        %v1530 = vrot.slane %v1525, %v1529
        %v1531 = vlaneseq
        %v1532 = vshrl.u32 %v1531, 7
        %v1533 = vsub.s32 1, %v1532
        %v1534 = vrot.slane %v1525, %v1533
        %v1535 = vlaneseq
        %v1536 = vshrl.u32 %v1535, 7
        %v1537 = vsub.s32 2, %v1536
        %v1538 = vrot.slane %v1525, %v1537
        %v1539 = vlaneseq
        %v1540 = vshrl.u32 %v1539, 7
        %v1541 = vsub.s32 3, %v1540
        %v1542 = vrot.slane %v1525, %v1541
        %v1547 = vmul.f32 %v1524, %v1530
        %v1548 = vmul.f32 %v1517, %v1534
        %v1549 = vmul.f32 %v1518, %v1538
        %v1550 = vmul.f32 %v1519, %v1542
        %1551 = vst [vmem:[#allocation2] sm:$0xff] %v1547
        %1552 = vst [vmem:[#allocation2 + $0x8] sm:$0xff] %v1548
        %1553 = vst [vmem:[#allocation2 + $0x10] sm:$0xff] %v1549
        %1554 = vst [vmem:[#allocation2 + $0x18] sm:$0xff] %v1550
        %1555 = vrot.lane.b32.xlu0 %v1503, 16
        %v1556 = vpop.permute.xlu0 %1555
        %1558 = vrot.lane.b32.xlu0 %v1500, 16
        %v1559 = vpop.permute.xlu0 %1558
        %1560 = vrot.lane.b32.xlu0 %v1501, 16
        %v1561 = vpop.permute.xlu0 %1560
        %1562 = vrot.lane.b32.xlu0 %v1502, 16
        %v1563 = vpop.permute.xlu0 %1562
        %v1564 = vsel %vm395, %v1559, %v1561
        %v1565 = vsel %vm395, %v1561, %v1563
        %v1566 = vsel %vm395, %v1563, %v1556
        %v1571 = vsel %vm395, %v1556, %v1559
        %v1572 = vld [vmem:[%s404] ss:$8 sm:$0xf]
        %v1574 = vlaneseq
        %v1575 = vshrl.u32 %v1574, 7
        %v1576 = vsub.s32 0, %v1575
        %v1577 = vrot.slane %v1572, %v1576
        %v1578 = vlaneseq
        %v1579 = vshrl.u32 %v1578, 7
        %v1580 = vsub.s32 1, %v1579
        %v1581 = vrot.slane %v1572, %v1580
        %v1582 = vlaneseq
        %v1583 = vshrl.u32 %v1582, 7
        %v1584 = vsub.s32 2, %v1583
        %v1585 = vrot.slane %v1572, %v1584
        %v1586 = vlaneseq
        %v1587 = vshrl.u32 %v1586, 7
        %v1588 = vsub.s32 3, %v1587
        %v1589 = vrot.slane %v1572, %v1588
        %v1594 = vmul.f32 %v1571, %v1577
        %v1595 = vmul.f32 %v1564, %v1581
        %v1596 = vmul.f32 %v1565, %v1585
        %v1597 = vmul.f32 %v1566, %v1589
        %1598 = vst [vmem:[#allocation2 + $0x20] sm:$0xff] %v1594
        %1599 = vst [vmem:[#allocation2 + $0x28] sm:$0xff] %v1595
        %1600 = vst [vmem:[#allocation2 + $0x30] sm:$0xff] %v1596
        %1601 = vst [vmem:[#allocation2 + $0x38] sm:$0xff] %v1597
        %1602 = vrot.lane.b32.xlu0 %v1503, 15
        %v1603 = vpop.permute.xlu0 %1602
        %1605 = vrot.lane.b32.xlu0 %v1500, 15
        %v1606 = vpop.permute.xlu0 %1605
        %1607 = vrot.lane.b32.xlu0 %v1501, 15
        %v1608 = vpop.permute.xlu0 %1607
        %1609 = vrot.lane.b32.xlu0 %v1502, 15
        %v1610 = vpop.permute.xlu0 %1609
        %v1611 = vsel %vm444, %v1606, %v1608
        %v1612 = vsel %vm444, %v1608, %v1610
        %v1613 = vsel %vm444, %v1610, %v1603
        %v1618 = vsel %vm444, %v1603, %v1606
        %v1619 = vld [vmem:[%s453] ss:$8 sm:$0xf]
        %v1621 = vlaneseq
        %v1622 = vshrl.u32 %v1621, 7
        %v1623 = vsub.s32 0, %v1622
        %v1624 = vrot.slane %v1619, %v1623
        %v1625 = vlaneseq
        %v1626 = vshrl.u32 %v1625, 7
        %v1627 = vsub.s32 1, %v1626
        %v1628 = vrot.slane %v1619, %v1627
        %v1629 = vlaneseq
        %v1630 = vshrl.u32 %v1629, 7
        %v1631 = vsub.s32 2, %v1630
        %v1632 = vrot.slane %v1619, %v1631
        %v1633 = vlaneseq
        %v1634 = vshrl.u32 %v1633, 7
        %v1635 = vsub.s32 3, %v1634
        %v1636 = vrot.slane %v1619, %v1635
        %v1641 = vmul.f32 %v1618, %v1624
        %v1642 = vmul.f32 %v1611, %v1628
        %v1643 = vmul.f32 %v1612, %v1632
        %v1644 = vmul.f32 %v1613, %v1636
        %1645 = vst [vmem:[#allocation2 + $0x40] sm:$0xff] %v1641
        %1646 = vst [vmem:[#allocation2 + $0x48] sm:$0xff] %v1642
        %1647 = vst [vmem:[#allocation2 + $0x50] sm:$0xff] %v1643
        %1648 = vst [vmem:[#allocation2 + $0x58] sm:$0xff] %v1644
        %1649 = vrot.lane.b32.xlu0 %v1503, 1
        %v1650 = vpop.permute.xlu0 %1649
        %1652 = vrot.lane.b32.xlu0 %v1500, 1
        %v1653 = vpop.permute.xlu0 %1652
        %1654 = vrot.lane.b32.xlu0 %v1501, 1
        %v1655 = vpop.permute.xlu0 %1654
        %1656 = vrot.lane.b32.xlu0 %v1502, 1
        %v1657 = vpop.permute.xlu0 %1656
        %v1658 = vsel %vm493, %v1653, %v1655
        %v1659 = vsel %vm493, %v1655, %v1657
        %v1660 = vsel %vm493, %v1657, %v1650
        %v1665 = vsel %vm493, %v1650, %v1653
        %v1666 = vld [vmem:[%s502] ss:$8 sm:$0xf]
        %v1668 = vlaneseq
        %v1669 = vshrl.u32 %v1668, 7
        %v1670 = vsub.s32 0, %v1669
        %v1671 = vrot.slane %v1666, %v1670
        %v1672 = vlaneseq
        %v1673 = vshrl.u32 %v1672, 7
        %v1674 = vsub.s32 1, %v1673
        %v1675 = vrot.slane %v1666, %v1674
        %v1676 = vlaneseq
        %v1677 = vshrl.u32 %v1676, 7
        %v1678 = vsub.s32 2, %v1677
        %v1679 = vrot.slane %v1666, %v1678
        %v1680 = vlaneseq
        %v1681 = vshrl.u32 %v1680, 7
        %v1682 = vsub.s32 3, %v1681
        %v1683 = vrot.slane %v1666, %v1682
        %v1688 = vmul.f32 %v1665, %v1671
        %v1689 = vmul.f32 %v1658, %v1675
        %v1690 = vmul.f32 %v1659, %v1679
        %v1691 = vmul.f32 %v1660, %v1683
        %1692 = vst [vmem:[#allocation2 + $0x60] sm:$0xff] %v1688
        %1693 = vst [vmem:[#allocation2 + $0x68] sm:$0xff] %v1689
        %1694 = vst [vmem:[#allocation2 + $0x70] sm:$0xff] %v1690
        %1695 = vst [vmem:[#allocation2 + $0x78] sm:$0xff] %v1691
        %1696 = vst [vmem:[#allocation2 + $0x80] sm:$0xff] %v1500
        %1697 = vst [vmem:[#allocation2 + $0x88] sm:$0xff] %v1501
        %1698 = vst [vmem:[#allocation2 + $0x90] sm:$0xff] %v1502
        %1699 = vst [vmem:[#allocation2 + $0x98] sm:$0xff] %v1503
        %1700 = vrot.lane.b32.xlu0 %v1500, 127
        %v1701 = vpop.permute.xlu0 %1700
        %1702 = vrot.lane.b32.xlu0 %v1501, 127
        %v1703 = vpop.permute.xlu0 %1702
        %1704 = vrot.lane.b32.xlu0 %v1502, 127
        %v1705 = vpop.permute.xlu0 %1704
        %1706 = vrot.lane.b32.xlu0 %v1503, 127
        %v1707 = vpop.permute.xlu0 %1706
        %v1708 = vsel %vm545, %v1701, %v1703
        %v1709 = vsel %vm545, %v1703, %v1705
        %v1710 = vsel %vm545, %v1705, %v1707
        %v1716 = vsel %vm545, %v1707, %v1701
        %v1717 = vld [vmem:[%s555] ss:$8 sm:$0xf]
        %v1719 = vlaneseq
        %v1720 = vshrl.u32 %v1719, 7
        %v1721 = vsub.s32 0, %v1720
        %v1722 = vrot.slane %v1717, %v1721
        %v1723 = vlaneseq
        %v1724 = vshrl.u32 %v1723, 7
        %v1725 = vsub.s32 1, %v1724
        %v1726 = vrot.slane %v1717, %v1725
        %v1727 = vlaneseq
        %v1728 = vshrl.u32 %v1727, 7
        %v1729 = vsub.s32 2, %v1728
        %v1730 = vrot.slane %v1717, %v1729
        %v1731 = vlaneseq
        %v1732 = vshrl.u32 %v1731, 7
        %v1733 = vsub.s32 3, %v1732
        %v1734 = vrot.slane %v1717, %v1733
        %v1739 = vmul.f32 %v1708, %v1722
        %v1740 = vmul.f32 %v1709, %v1726
        %v1741 = vmul.f32 %v1710, %v1730
        %v1742 = vmul.f32 %v1716, %v1734
        %1743 = vst [vmem:[#allocation2 + $0xa0] sm:$0xff] %v1739
        %1744 = vst [vmem:[#allocation2 + $0xa8] sm:$0xff] %v1740
        %1745 = vst [vmem:[#allocation2 + $0xb0] sm:$0xff] %v1741
        %1746 = vst [vmem:[#allocation2 + $0xb8] sm:$0xff] %v1742
        %1747 = vrot.lane.b32.xlu0 %v1500, 113
        %v1748 = vpop.permute.xlu0 %1747
        %1749 = vrot.lane.b32.xlu0 %v1501, 113
        %v1750 = vpop.permute.xlu0 %1749
        %1751 = vrot.lane.b32.xlu0 %v1502, 113
        %v1752 = vpop.permute.xlu0 %1751
        %1753 = vrot.lane.b32.xlu0 %v1503, 113
        %v1754 = vpop.permute.xlu0 %1753
        %v1755 = vsel %vm594, %v1748, %v1750
        %v1756 = vsel %vm594, %v1750, %v1752
        %v1757 = vsel %vm594, %v1752, %v1754
        %v1763 = vsel %vm594, %v1754, %v1748
        %v1764 = vld [vmem:[%s604] ss:$8 sm:$0xf]
        %v1766 = vlaneseq
        %v1767 = vshrl.u32 %v1766, 7
        %v1768 = vsub.s32 0, %v1767
        %v1769 = vrot.slane %v1764, %v1768
        %v1770 = vlaneseq
        %v1771 = vshrl.u32 %v1770, 7
        %v1772 = vsub.s32 1, %v1771
        %v1773 = vrot.slane %v1764, %v1772
        %v1774 = vlaneseq
        %v1775 = vshrl.u32 %v1774, 7
        %v1776 = vsub.s32 2, %v1775
        %v1777 = vrot.slane %v1764, %v1776
        %v1778 = vlaneseq
        %v1779 = vshrl.u32 %v1778, 7
        %v1780 = vsub.s32 3, %v1779
        %v1781 = vrot.slane %v1764, %v1780
        %v1786 = vmul.f32 %v1755, %v1769
        %v1787 = vmul.f32 %v1756, %v1773
        %v1788 = vmul.f32 %v1757, %v1777
        %v1789 = vmul.f32 %v1763, %v1781
        %1790 = vst [vmem:[#allocation2 + $0xc0] sm:$0xff] %v1786
        %1791 = vst [vmem:[#allocation2 + $0xc8] sm:$0xff] %v1787
        %1792 = vst [vmem:[#allocation2 + $0xd0] sm:$0xff] %v1788
        %1793 = vst [vmem:[#allocation2 + $0xd8] sm:$0xff] %v1789
        %1794 = vrot.lane.b32.xlu0 %v1500, 112
        %v1795 = vpop.permute.xlu0 %1794
        %1796 = vrot.lane.b32.xlu0 %v1501, 112
        %v1797 = vpop.permute.xlu0 %1796
        %1798 = vrot.lane.b32.xlu0 %v1502, 112
        %v1799 = vpop.permute.xlu0 %1798
        %1800 = vrot.lane.b32.xlu0 %v1503, 112
        %v1801 = vpop.permute.xlu0 %1800
        %v1802 = vsel %vm643, %v1795, %v1797
        %v1803 = vsel %vm643, %v1797, %v1799
        %v1804 = vsel %vm643, %v1799, %v1801
        %v1810 = vsel %vm643, %v1801, %v1795
        %v1811 = vld [vmem:[%s653] ss:$8 sm:$0xf]
        %v1813 = vlaneseq
        %v1814 = vshrl.u32 %v1813, 7
        %v1815 = vsub.s32 0, %v1814
        %v1816 = vrot.slane %v1811, %v1815
        %v1817 = vlaneseq
        %v1818 = vshrl.u32 %v1817, 7
        %v1819 = vsub.s32 1, %v1818
        %v1820 = vrot.slane %v1811, %v1819
        %v1821 = vlaneseq
        %v1822 = vshrl.u32 %v1821, 7
        %v1823 = vsub.s32 2, %v1822
        %v1824 = vrot.slane %v1811, %v1823
        %v1825 = vlaneseq
        %v1826 = vshrl.u32 %v1825, 7
        %v1827 = vsub.s32 3, %v1826
        %v1828 = vrot.slane %v1811, %v1827
        %v1833 = vmul.f32 %v1802, %v1816
        %v1834 = vmul.f32 %v1803, %v1820
        %v1835 = vmul.f32 %v1804, %v1824
        %v1836 = vmul.f32 %v1810, %v1828
        %1837 = vst [vmem:[#allocation2 + $0xe0] sm:$0xff] %v1833
        %1838 = vst [vmem:[#allocation2 + $0xe8] sm:$0xff] %v1834
        %1839 = vst [vmem:[#allocation2 + $0xf0] sm:$0xff] %v1835
        %1840 = vst [vmem:[#allocation2 + $0xf8] sm:$0xff] %v1836
        %1841 = vrot.lane.b32.xlu0 %v1500, 111
        %v1842 = vpop.permute.xlu0 %1841
        %1843 = vrot.lane.b32.xlu0 %v1501, 111
        %v1844 = vpop.permute.xlu0 %1843
        %1845 = vrot.lane.b32.xlu0 %v1502, 111
        %v1846 = vpop.permute.xlu0 %1845
        %1847 = vrot.lane.b32.xlu0 %v1503, 111
        %v1848 = vpop.permute.xlu0 %1847
        %v1849 = vsel %vm692, %v1842, %v1844
        %v1850 = vsel %vm692, %v1844, %v1846
        %v1851 = vsel %vm692, %v1846, %v1848
        %v1857 = vsel %vm692, %v1848, %v1842
        %v1858 = vld [vmem:[%s702] ss:$8 sm:$0xf]
        %v1860 = vlaneseq
        %v1861 = vshrl.u32 %v1860, 7
        %v1862 = vsub.s32 0, %v1861
        %v1863 = vrot.slane %v1858, %v1862
        %v1864 = vlaneseq
        %v1865 = vshrl.u32 %v1864, 7
        %v1866 = vsub.s32 1, %v1865
        %v1867 = vrot.slane %v1858, %v1866
        %v1868 = vlaneseq
        %v1869 = vshrl.u32 %v1868, 7
        %v1870 = vsub.s32 2, %v1869
        %v1871 = vrot.slane %v1858, %v1870
        %v1872 = vlaneseq
        %v1873 = vshrl.u32 %v1872, 7
        %v1874 = vsub.s32 3, %v1873
        %v1875 = vrot.slane %v1858, %v1874
        %v1880 = vmul.f32 %v1849, %v1863
        %v1881 = vmul.f32 %v1850, %v1867
        %v1882 = vmul.f32 %v1851, %v1871
        %v1883 = vmul.f32 %v1857, %v1875
        %1884 = vst [vmem:[#allocation2 + $0x100] sm:$0xff] %v1880
        %1885 = vst [vmem:[#allocation2 + $0x108] sm:$0xff] %v1881
        %1886 = vst [vmem:[#allocation2 + $0x110] sm:$0xff] %v1882
        %1887 = vst [vmem:[#allocation2 + $0x118] sm:$0xff] %v1883
        %s1888 = scalar_lea.vmem %s1, 16
        %v1889 = vld [vmem:[%s1888] sm:$0xff]
        %v1890 = vld [vmem:[#allocation2] sm:$0xff]
        %v1891 = vld [vmem:[#allocation2 + $0x8] sm:$0xff]
        %v1892 = vld [vmem:[#allocation2 + $0x10] sm:$0xff]
        %v1893 = vld [vmem:[#allocation2 + $0x18] sm:$0xff]
        %v1894 = vld [vmem:[#allocation2 + $0x20] sm:$0xff]
        %v1895 = vld [vmem:[#allocation2 + $0x28] sm:$0xff]
        %v1896 = vld [vmem:[#allocation2 + $0x30] sm:$0xff]
        %v1897 = vld [vmem:[#allocation2 + $0x38] sm:$0xff]
        %v1898 = vld [vmem:[#allocation2 + $0x40] sm:$0xff]
        %v1899 = vld [vmem:[#allocation2 + $0x48] sm:$0xff]
        %v1900 = vld [vmem:[#allocation2 + $0x50] sm:$0xff]
        %v1901 = vld [vmem:[#allocation2 + $0x58] sm:$0xff]
        %v1902 = vld [vmem:[#allocation2 + $0x60] sm:$0xff]
        %v1903 = vld [vmem:[#allocation2 + $0x68] sm:$0xff]
        %v1904 = vld [vmem:[#allocation2 + $0x70] sm:$0xff]
        %v1905 = vld [vmem:[#allocation2 + $0x78] sm:$0xff]
        %v1906 = vld [vmem:[#allocation2 + $0x80] sm:$0xff]
        %v1907 = vld [vmem:[#allocation2 + $0x88] sm:$0xff]
        %v1908 = vld [vmem:[#allocation2 + $0x90] sm:$0xff]
        %v1909 = vld [vmem:[#allocation2 + $0x98] sm:$0xff]
        %v1910 = vld [vmem:[#allocation2 + $0xa0] sm:$0xff]
        %v1911 = vld [vmem:[#allocation2 + $0xa8] sm:$0xff]
        %v1912 = vld [vmem:[#allocation2 + $0xb0] sm:$0xff]
        %v1913 = vld [vmem:[#allocation2 + $0xb8] sm:$0xff]
        %v1914 = vld [vmem:[#allocation2 + $0xc0] sm:$0xff]
        %v1915 = vld [vmem:[#allocation2 + $0xc8] sm:$0xff]
        %v1916 = vld [vmem:[#allocation2 + $0xd0] sm:$0xff]
        %v1917 = vld [vmem:[#allocation2 + $0xd8] sm:$0xff]
        %v1918 = vld [vmem:[#allocation2 + $0xe0] sm:$0xff]
        %v1919 = vld [vmem:[#allocation2 + $0xe8] sm:$0xff]
        %v1920 = vld [vmem:[#allocation2 + $0xf0] sm:$0xff]
        %v1921 = vld [vmem:[#allocation2 + $0xf8] sm:$0xff]
        %v1922 = vld [vmem:[#allocation2 + $0x100] sm:$0xff]
        %v1923 = vld [vmem:[#allocation2 + $0x108] sm:$0xff]
        %v1924 = vld [vmem:[#allocation2 + $0x110] sm:$0xff]
        %v1925 = vld [vmem:[#allocation2 + $0x118] sm:$0xff]
        %s1926 = scalar_lea.vmem %s2, 16
        %v1927 = vld [vmem:[%s1926] sm:$0xff]
        %1929 = vset.pattern.permute.xlu0 0
        %1930 = vperm.xlu0 %1929, %v1927
        %v1931 = vpop.permute.xlu0 %1930
        %v1934 = vsel %vm776, %v1889, 0
        %1936 = vmatprep.subr.mxu0 0.0
        %1937 = vmatpush1.msra.mxu0 0.0
        %1938 = vmatprep.subr.mxu0 0.0
        %1939 = vmatpush1.msra.mxu0 0.0
        %1940 = vmatprep.subr.mxu0 0.0
        %1941 = vmatpush1.msra.mxu0 0.0
        %1942 = vmatprep.subr.mxu0 0.0
        %1943 = vmatpush1.msra.mxu0 0.0
        %1944 = vmatprep.subr.mxu0 0.0
        %1945 = vmatpush1.msra.mxu0 0.0
        %1946 = vmatprep.subr.mxu0 0.0
        %1947 = vmatpush1.msra.mxu0 0.0
        %1948 = vmatprep.subr.mxu0 0.0
        %1949 = vmatpush1.msra.mxu0 0.0
        %1950 = vmatprep.subr.mxu0 %v1923
        %1951 = vmatpush1.msra.mxu0 %v1922
        %1952 = vmatprep.subr.mxu0 %v1919
        %1953 = vmatpush1.msra.mxu0 %v1918
        %1954 = vmatprep.subr.mxu0 %v1915
        %1955 = vmatpush1.msra.mxu0 %v1914
        %1956 = vmatprep.subr.mxu0 %v1911
        %1957 = vmatpush1.msra.mxu0 %v1910
        %1958 = vmatprep.subr.mxu0 %v1907
        %1959 = vmatpush1.msra.mxu0 %v1906
        %1960 = vmatprep.subr.mxu0 %v1903
        %1961 = vmatpush1.msra.mxu0 %v1902
        %1962 = vmatprep.subr.mxu0 %v1899
        %1963 = vmatpush1.msra.mxu0 %v1898
        %1964 = vmatprep.subr.mxu0 %v1895
        %1965 = vmatpush1.msra.mxu0 %v1894
        %1966 = vmatprep.subr.mxu0 %v1891
        %1967 = vmatpush1.msra.mxu0 %v1890
        %1968 = vmatprep.subr.mxu0 0.0
        %1969 = vmatpush2.msra.mxu0 0.0
        %1970 = vmatprep.subr.mxu0 0.0
        %1971 = vmatpush2.msra.mxu0 0.0
        %1972 = vmatprep.subr.mxu0 0.0
        %1973 = vmatpush2.msra.mxu0 0.0
        %1974 = vmatprep.subr.mxu0 0.0
        %1975 = vmatpush2.msra.mxu0 0.0
        %1976 = vmatprep.subr.mxu0 0.0
        %1977 = vmatpush2.msra.mxu0 0.0
        %1978 = vmatprep.subr.mxu0 0.0
        %1979 = vmatpush2.msra.mxu0 0.0
        %1980 = vmatprep.subr.mxu0 0.0
        %1981 = vmatpush2.msra.mxu0 0.0
        %1982 = vmatprep.subr.mxu0 0.0
        %1983 = vmatpush2.msra.mxu0 0.0
        %1984 = vmatprep.subr.mxu0 0.0
        %1985 = vmatpush2.msra.mxu0 0.0
        %1986 = vmatprep.subr.mxu0 0.0
        %1987 = vmatpush2.msra.mxu0 0.0
        %1988 = vmatprep.subr.mxu0 0.0
        %1989 = vmatpush2.msra.mxu0 0.0
        %1990 = vmatprep.subr.mxu0 0.0
        %1991 = vmatpush2.msra.mxu0 0.0
        %1992 = vmatprep.subr.mxu0 0.0
        %1993 = vmatpush2.msra.mxu0 0.0
        %1994 = vmatprep.subr.mxu0 0.0
        %1995 = vmatpush2.msra.mxu0 0.0
        %1996 = vmatprep.subr.mxu0 0.0
        %1997 = vmatpush2.msra.mxu0 0.0
        %1998 = vmatprep.subr.mxu0 0.0
        %1999 = vmatpush2.msra.mxu0 0.0
        %2000 = vmatprep.mubr.f32.mxu0 0.0
        %2001 = vmatmul.mubr.f32.gmra.mxu0 %v1934
        %v2002 = vpop.f32.mrf.mxu0
        %v2003 = vadd.f32 %v1931, %v2002
        %v2004 = vpop.f32.mrf.mxu0
        %v2005 = vadd.f32 %v1931, %v2004
        %2006 = vdwg.mxu0
        %2007 = vmatprep.subr.mxu0 0.0
        %2008 = vmatpush1.msra.mxu0 0.0
        %2009 = vmatprep.subr.mxu0 0.0
        %2010 = vmatpush1.msra.mxu0 0.0
        %2011 = vmatprep.subr.mxu0 0.0
        %2012 = vmatpush1.msra.mxu0 0.0
        %2013 = vmatprep.subr.mxu0 0.0
        %2014 = vmatpush1.msra.mxu0 0.0
        %2015 = vmatprep.subr.mxu0 0.0
        %2016 = vmatpush1.msra.mxu0 0.0
        %2017 = vmatprep.subr.mxu0 0.0
        %2018 = vmatpush1.msra.mxu0 0.0
        %2019 = vmatprep.subr.mxu0 0.0
        %2020 = vmatpush1.msra.mxu0 0.0
        %2021 = vmatprep.subr.mxu0 %v1925
        %2022 = vmatpush1.msra.mxu0 %v1924
        %2023 = vmatprep.subr.mxu0 %v1921
        %2024 = vmatpush1.msra.mxu0 %v1920
        %2025 = vmatprep.subr.mxu0 %v1917
        %2026 = vmatpush1.msra.mxu0 %v1916
        %2027 = vmatprep.subr.mxu0 %v1913
        %2028 = vmatpush1.msra.mxu0 %v1912
        %2029 = vmatprep.subr.mxu0 %v1909
        %2030 = vmatpush1.msra.mxu0 %v1908
        %2031 = vmatprep.subr.mxu0 %v1905
        %2032 = vmatpush1.msra.mxu0 %v1904
        %2033 = vmatprep.subr.mxu0 %v1901
        %2034 = vmatpush1.msra.mxu0 %v1900
        %2035 = vmatprep.subr.mxu0 %v1897
        %2036 = vmatpush1.msra.mxu0 %v1896
        %2037 = vmatprep.subr.mxu0 %v1893
        %2038 = vmatpush1.msra.mxu0 %v1892
        %2039 = vmatprep.subr.mxu0 0.0
        %2040 = vmatpush2.msra.mxu0 0.0
        %2041 = vmatprep.subr.mxu0 0.0
        %2042 = vmatpush2.msra.mxu0 0.0
        %2043 = vmatprep.subr.mxu0 0.0
        %2044 = vmatpush2.msra.mxu0 0.0
        %2045 = vmatprep.subr.mxu0 0.0
        %2046 = vmatpush2.msra.mxu0 0.0
        %2047 = vmatprep.subr.mxu0 0.0
        %2048 = vmatpush2.msra.mxu0 0.0
        %2049 = vmatprep.subr.mxu0 0.0
        %2050 = vmatpush2.msra.mxu0 0.0
        %2051 = vmatprep.subr.mxu0 0.0
        %2052 = vmatpush2.msra.mxu0 0.0
        %2053 = vmatprep.subr.mxu0 0.0
        %2054 = vmatpush2.msra.mxu0 0.0
        %2055 = vmatprep.subr.mxu0 0.0
        %2056 = vmatpush2.msra.mxu0 0.0
        %2057 = vmatprep.subr.mxu0 0.0
        %2058 = vmatpush2.msra.mxu0 0.0
        %2059 = vmatprep.subr.mxu0 0.0
        %2060 = vmatpush2.msra.mxu0 0.0
        %2061 = vmatprep.subr.mxu0 0.0
        %2062 = vmatpush2.msra.mxu0 0.0
        %2063 = vmatprep.subr.mxu0 0.0
        %2064 = vmatpush2.msra.mxu0 0.0
        %2065 = vmatprep.subr.mxu0 0.0
        %2066 = vmatpush2.msra.mxu0 0.0
        %2067 = vmatprep.subr.mxu0 0.0
        %2068 = vmatpush2.msra.mxu0 0.0
        %2069 = vmatprep.subr.mxu0 0.0
        %2070 = vmatpush2.msra.mxu0 0.0
        %2071 = vmatprep.mubr.f32.mxu0 0.0
        %2072 = vmatmul.mubr.f32.gmra.mxu0 %v1934
        %v2073 = vpop.f32.mrf.mxu0
        %v2074 = vadd.f32 %v1931, %v2073
        %v2075 = vpop.f32.mrf.mxu0
        %v2076 = vadd.f32 %v1931, %v2075
        %2077 = vdwg.mxu0
        %2079 = vrot.lane.b32.xlu0 %v2076, 17
        %v2080 = vpop.permute.xlu0 %2079
        %2085 = vrot.lane.b32.xlu0 %v2003, 17
        %v2086 = vpop.permute.xlu0 %2085
        %2087 = vrot.lane.b32.xlu0 %v2005, 17
        %v2088 = vpop.permute.xlu0 %2087
        %2089 = vrot.lane.b32.xlu0 %v2074, 17
        %v2090 = vpop.permute.xlu0 %2089
        %v2091 = vsel %vm347, %v2086, %v2088
        %v2092 = vsel %vm347, %v2088, %v2090
        %v2093 = vsel %vm347, %v2090, %v2080
        %v2098 = vsel %vm347, %v2080, %v2086
        %v2099 = vld [vmem:[#allocation8] ss:$8 sm:$0xf]
        %v2101 = vlaneseq
        %v2102 = vshrl.u32 %v2101, 7
        %v2103 = vsub.s32 0, %v2102
        %v2104 = vrot.slane %v2099, %v2103
        %v2105 = vlaneseq
        %v2106 = vshrl.u32 %v2105, 7
        %v2107 = vsub.s32 1, %v2106
        %v2108 = vrot.slane %v2099, %v2107
        %v2109 = vlaneseq
        %v2110 = vshrl.u32 %v2109, 7
        %v2111 = vsub.s32 2, %v2110
        %v2112 = vrot.slane %v2099, %v2111
        %v2113 = vlaneseq
        %v2114 = vshrl.u32 %v2113, 7
        %v2115 = vsub.s32 3, %v2114
        %v2116 = vrot.slane %v2099, %v2115
        %v2121 = vmul.f32 %v2098, %v2104
        %v2122 = vmul.f32 %v2091, %v2108
        %v2123 = vmul.f32 %v2092, %v2112
        %v2124 = vmul.f32 %v2093, %v2116
        %2125 = vst [vmem:[#allocation2] sm:$0xff] %v2121
        %2126 = vst [vmem:[#allocation2 + $0x8] sm:$0xff] %v2122
        %2127 = vst [vmem:[#allocation2 + $0x10] sm:$0xff] %v2123
        %2128 = vst [vmem:[#allocation2 + $0x18] sm:$0xff] %v2124
        %2129 = vrot.lane.b32.xlu0 %v2076, 16
        %v2130 = vpop.permute.xlu0 %2129
        %2132 = vrot.lane.b32.xlu0 %v2003, 16
        %v2133 = vpop.permute.xlu0 %2132
        %2134 = vrot.lane.b32.xlu0 %v2005, 16
        %v2135 = vpop.permute.xlu0 %2134
        %2136 = vrot.lane.b32.xlu0 %v2074, 16
        %v2137 = vpop.permute.xlu0 %2136
        %v2138 = vsel %vm395, %v2133, %v2135
        %v2139 = vsel %vm395, %v2135, %v2137
        %v2140 = vsel %vm395, %v2137, %v2130
        %v2145 = vsel %vm395, %v2130, %v2133
        %s2146 = scalar_lea.vmem [#allocation8], 1
        %v2147 = vld [vmem:[%s2146] ss:$8 sm:$0xf]
        %v2149 = vlaneseq
        %v2150 = vshrl.u32 %v2149, 7
        %v2151 = vsub.s32 0, %v2150
        %v2152 = vrot.slane %v2147, %v2151
        %v2153 = vlaneseq
        %v2154 = vshrl.u32 %v2153, 7
        %v2155 = vsub.s32 1, %v2154
        %v2156 = vrot.slane %v2147, %v2155
        %v2157 = vlaneseq
        %v2158 = vshrl.u32 %v2157, 7
        %v2159 = vsub.s32 2, %v2158
        %v2160 = vrot.slane %v2147, %v2159
        %v2161 = vlaneseq
        %v2162 = vshrl.u32 %v2161, 7
        %v2163 = vsub.s32 3, %v2162
        %v2164 = vrot.slane %v2147, %v2163
        %v2169 = vmul.f32 %v2145, %v2152
        %v2170 = vmul.f32 %v2138, %v2156
        %v2171 = vmul.f32 %v2139, %v2160
        %v2172 = vmul.f32 %v2140, %v2164
        %2173 = vst [vmem:[#allocation2 + $0x20] sm:$0xff] %v2169
        %2174 = vst [vmem:[#allocation2 + $0x28] sm:$0xff] %v2170
        %2175 = vst [vmem:[#allocation2 + $0x30] sm:$0xff] %v2171
        %2176 = vst [vmem:[#allocation2 + $0x38] sm:$0xff] %v2172
        %2177 = vrot.lane.b32.xlu0 %v2076, 15
        %v2178 = vpop.permute.xlu0 %2177
        %2180 = vrot.lane.b32.xlu0 %v2003, 15
        %v2181 = vpop.permute.xlu0 %2180
        %2182 = vrot.lane.b32.xlu0 %v2005, 15
        %v2183 = vpop.permute.xlu0 %2182
        %2184 = vrot.lane.b32.xlu0 %v2074, 15
        %v2185 = vpop.permute.xlu0 %2184
        %v2186 = vsel %vm444, %v2181, %v2183
        %v2187 = vsel %vm444, %v2183, %v2185
        %v2188 = vsel %vm444, %v2185, %v2178
        %v2193 = vsel %vm444, %v2178, %v2181
        %s2194 = scalar_lea.vmem [#allocation8], 2
        %v2195 = vld [vmem:[%s2194] ss:$8 sm:$0xf]
        %v2197 = vlaneseq
        %v2198 = vshrl.u32 %v2197, 7
        %v2199 = vsub.s32 0, %v2198
        %v2200 = vrot.slane %v2195, %v2199
        %v2201 = vlaneseq
        %v2202 = vshrl.u32 %v2201, 7
        %v2203 = vsub.s32 1, %v2202
        %v2204 = vrot.slane %v2195, %v2203
        %v2205 = vlaneseq
        %v2206 = vshrl.u32 %v2205, 7
        %v2207 = vsub.s32 2, %v2206
        %v2208 = vrot.slane %v2195, %v2207
        %v2209 = vlaneseq
        %v2210 = vshrl.u32 %v2209, 7
        %v2211 = vsub.s32 3, %v2210
        %v2212 = vrot.slane %v2195, %v2211
        %v2217 = vmul.f32 %v2193, %v2200
        %v2218 = vmul.f32 %v2186, %v2204
        %v2219 = vmul.f32 %v2187, %v2208
        %v2220 = vmul.f32 %v2188, %v2212
        %2221 = vst [vmem:[#allocation2 + $0x40] sm:$0xff] %v2217
        %2222 = vst [vmem:[#allocation2 + $0x48] sm:$0xff] %v2218
        %2223 = vst [vmem:[#allocation2 + $0x50] sm:$0xff] %v2219
        %2224 = vst [vmem:[#allocation2 + $0x58] sm:$0xff] %v2220
        %2225 = vrot.lane.b32.xlu0 %v2076, 1
        %v2226 = vpop.permute.xlu0 %2225
        %2228 = vrot.lane.b32.xlu0 %v2003, 1
        %v2229 = vpop.permute.xlu0 %2228
        %2230 = vrot.lane.b32.xlu0 %v2005, 1
        %v2231 = vpop.permute.xlu0 %2230
        %2232 = vrot.lane.b32.xlu0 %v2074, 1
        %v2233 = vpop.permute.xlu0 %2232
        %v2234 = vsel %vm493, %v2229, %v2231
        %v2235 = vsel %vm493, %v2231, %v2233
        %v2236 = vsel %vm493, %v2233, %v2226
        %v2241 = vsel %vm493, %v2226, %v2229
        %s2242 = scalar_lea.vmem [#allocation8], 3
        %v2243 = vld [vmem:[%s2242] ss:$8 sm:$0xf]
        %v2245 = vlaneseq
        %v2246 = vshrl.u32 %v2245, 7
        %v2247 = vsub.s32 0, %v2246
        %v2248 = vrot.slane %v2243, %v2247
        %v2249 = vlaneseq
        %v2250 = vshrl.u32 %v2249, 7
        %v2251 = vsub.s32 1, %v2250
        %v2252 = vrot.slane %v2243, %v2251
        %v2253 = vlaneseq
        %v2254 = vshrl.u32 %v2253, 7
        %v2255 = vsub.s32 2, %v2254
        %v2256 = vrot.slane %v2243, %v2255
        %v2257 = vlaneseq
        %v2258 = vshrl.u32 %v2257, 7
        %v2259 = vsub.s32 3, %v2258
        %v2260 = vrot.slane %v2243, %v2259
        %v2265 = vmul.f32 %v2241, %v2248
        %v2266 = vmul.f32 %v2234, %v2252
        %v2267 = vmul.f32 %v2235, %v2256
        %v2268 = vmul.f32 %v2236, %v2260
        %2269 = vst [vmem:[#allocation2 + $0x60] sm:$0xff] %v2265
        %2270 = vst [vmem:[#allocation2 + $0x68] sm:$0xff] %v2266
        %2271 = vst [vmem:[#allocation2 + $0x70] sm:$0xff] %v2267
        %2272 = vst [vmem:[#allocation2 + $0x78] sm:$0xff] %v2268
        %2273 = vst [vmem:[#allocation2 + $0x80] sm:$0xff] %v2003
        %2274 = vst [vmem:[#allocation2 + $0x88] sm:$0xff] %v2005
        %2275 = vst [vmem:[#allocation2 + $0x90] sm:$0xff] %v2074
        %2276 = vst [vmem:[#allocation2 + $0x98] sm:$0xff] %v2076
        %2277 = vrot.lane.b32.xlu0 %v2003, 127
        %v2278 = vpop.permute.xlu0 %2277
        %2279 = vrot.lane.b32.xlu0 %v2005, 127
        %v2280 = vpop.permute.xlu0 %2279
        %2281 = vrot.lane.b32.xlu0 %v2074, 127
        %v2282 = vpop.permute.xlu0 %2281
        %2283 = vrot.lane.b32.xlu0 %v2076, 127
        %v2284 = vpop.permute.xlu0 %2283
        %v2285 = vsel %vm545, %v2278, %v2280
        %v2286 = vsel %vm545, %v2280, %v2282
        %v2287 = vsel %vm545, %v2282, %v2284
        %v2293 = vsel %vm545, %v2284, %v2278
        %s2294 = scalar_lea.vmem [#allocation8], 5
        %v2295 = vld [vmem:[%s2294] ss:$8 sm:$0xf]
        %v2297 = vlaneseq
        %v2298 = vshrl.u32 %v2297, 7
        %v2299 = vsub.s32 0, %v2298
        %v2300 = vrot.slane %v2295, %v2299
        %v2301 = vlaneseq
        %v2302 = vshrl.u32 %v2301, 7
        %v2303 = vsub.s32 1, %v2302
        %v2304 = vrot.slane %v2295, %v2303
        %v2305 = vlaneseq
        %v2306 = vshrl.u32 %v2305, 7
        %v2307 = vsub.s32 2, %v2306
        %v2308 = vrot.slane %v2295, %v2307
        %v2309 = vlaneseq
        %v2310 = vshrl.u32 %v2309, 7
        %v2311 = vsub.s32 3, %v2310
        %v2312 = vrot.slane %v2295, %v2311
        %v2317 = vmul.f32 %v2285, %v2300
        %v2318 = vmul.f32 %v2286, %v2304
        %v2319 = vmul.f32 %v2287, %v2308
        %v2320 = vmul.f32 %v2293, %v2312
        %2321 = vst [vmem:[#allocation2 + $0xa0] sm:$0xff] %v2317
        %2322 = vst [vmem:[#allocation2 + $0xa8] sm:$0xff] %v2318
        %2323 = vst [vmem:[#allocation2 + $0xb0] sm:$0xff] %v2319
        %2324 = vst [vmem:[#allocation2 + $0xb8] sm:$0xff] %v2320
        %2325 = vrot.lane.b32.xlu0 %v2003, 113
        %v2326 = vpop.permute.xlu0 %2325
        %2327 = vrot.lane.b32.xlu0 %v2005, 113
        %v2328 = vpop.permute.xlu0 %2327
        %2329 = vrot.lane.b32.xlu0 %v2074, 113
        %v2330 = vpop.permute.xlu0 %2329
        %2331 = vrot.lane.b32.xlu0 %v2076, 113
        %v2332 = vpop.permute.xlu0 %2331
        %v2333 = vsel %vm594, %v2326, %v2328
        %v2334 = vsel %vm594, %v2328, %v2330
        %v2335 = vsel %vm594, %v2330, %v2332
        %v2341 = vsel %vm594, %v2332, %v2326
        %s2342 = scalar_lea.vmem [#allocation8], 6
        %v2343 = vld [vmem:[%s2342] ss:$8 sm:$0xf]
        %v2345 = vlaneseq
        %v2346 = vshrl.u32 %v2345, 7
        %v2347 = vsub.s32 0, %v2346
        %v2348 = vrot.slane %v2343, %v2347
        %v2349 = vlaneseq
        %v2350 = vshrl.u32 %v2349, 7
        %v2351 = vsub.s32 1, %v2350
        %v2352 = vrot.slane %v2343, %v2351
        %v2353 = vlaneseq
        %v2354 = vshrl.u32 %v2353, 7
        %v2355 = vsub.s32 2, %v2354
        %v2356 = vrot.slane %v2343, %v2355
        %v2357 = vlaneseq
        %v2358 = vshrl.u32 %v2357, 7
        %v2359 = vsub.s32 3, %v2358
        %v2360 = vrot.slane %v2343, %v2359
        %v2365 = vmul.f32 %v2333, %v2348
        %v2366 = vmul.f32 %v2334, %v2352
        %v2367 = vmul.f32 %v2335, %v2356
        %v2368 = vmul.f32 %v2341, %v2360
        %2369 = vst [vmem:[#allocation2 + $0xc0] sm:$0xff] %v2365
        %2370 = vst [vmem:[#allocation2 + $0xc8] sm:$0xff] %v2366
        %2371 = vst [vmem:[#allocation2 + $0xd0] sm:$0xff] %v2367
        %2372 = vst [vmem:[#allocation2 + $0xd8] sm:$0xff] %v2368
        %2373 = vrot.lane.b32.xlu0 %v2003, 112
        %v2374 = vpop.permute.xlu0 %2373
        %2375 = vrot.lane.b32.xlu0 %v2005, 112
        %v2376 = vpop.permute.xlu0 %2375
        %2377 = vrot.lane.b32.xlu0 %v2074, 112
        %v2378 = vpop.permute.xlu0 %2377
        %2379 = vrot.lane.b32.xlu0 %v2076, 112
        %v2380 = vpop.permute.xlu0 %2379
        %v2381 = vsel %vm643, %v2374, %v2376
        %v2382 = vsel %vm643, %v2376, %v2378
        %v2383 = vsel %vm643, %v2378, %v2380
        %v2389 = vsel %vm643, %v2380, %v2374
        %s2390 = scalar_lea.vmem [#allocation8], 7
        %v2391 = vld [vmem:[%s2390] ss:$8 sm:$0xf]
        %v2393 = vlaneseq
        %v2394 = vshrl.u32 %v2393, 7
        %v2395 = vsub.s32 0, %v2394
        %v2396 = vrot.slane %v2391, %v2395
        %v2397 = vlaneseq
        %v2398 = vshrl.u32 %v2397, 7
        %v2399 = vsub.s32 1, %v2398
        %v2400 = vrot.slane %v2391, %v2399
        %v2401 = vlaneseq
        %v2402 = vshrl.u32 %v2401, 7
        %v2403 = vsub.s32 2, %v2402
        %v2404 = vrot.slane %v2391, %v2403
        %v2405 = vlaneseq
        %v2406 = vshrl.u32 %v2405, 7
        %v2407 = vsub.s32 3, %v2406
        %v2408 = vrot.slane %v2391, %v2407
        %v2413 = vmul.f32 %v2381, %v2396
        %v2414 = vmul.f32 %v2382, %v2400
        %v2415 = vmul.f32 %v2383, %v2404
        %v2416 = vmul.f32 %v2389, %v2408
        %2417 = vst [vmem:[#allocation2 + $0xe0] sm:$0xff] %v2413
        %2418 = vst [vmem:[#allocation2 + $0xe8] sm:$0xff] %v2414
        %2419 = vst [vmem:[#allocation2 + $0xf0] sm:$0xff] %v2415
        %2420 = vst [vmem:[#allocation2 + $0xf8] sm:$0xff] %v2416
        %2421 = vrot.lane.b32.xlu0 %v2003, 111
        %v2422 = vpop.permute.xlu0 %2421
        %2423 = vrot.lane.b32.xlu0 %v2005, 111
        %v2424 = vpop.permute.xlu0 %2423
        %2425 = vrot.lane.b32.xlu0 %v2074, 111
        %v2426 = vpop.permute.xlu0 %2425
        %2427 = vrot.lane.b32.xlu0 %v2076, 111
        %v2428 = vpop.permute.xlu0 %2427
        %v2429 = vsel %vm692, %v2422, %v2424
        %v2430 = vsel %vm692, %v2424, %v2426
        %v2431 = vsel %vm692, %v2426, %v2428
        %v2437 = vsel %vm692, %v2428, %v2422
        %s2438 = scalar_lea.vmem [#allocation8], 32
        %v2439 = vld [vmem:[%s2438] ss:$8 sm:$0xf]
        %v2441 = vlaneseq
        %v2442 = vshrl.u32 %v2441, 7
        %v2443 = vsub.s32 0, %v2442
        %v2444 = vrot.slane %v2439, %v2443
        %v2445 = vlaneseq
        %v2446 = vshrl.u32 %v2445, 7
        %v2447 = vsub.s32 1, %v2446
        %v2448 = vrot.slane %v2439, %v2447
        %v2449 = vlaneseq
        %v2450 = vshrl.u32 %v2449, 7
        %v2451 = vsub.s32 2, %v2450
        %v2452 = vrot.slane %v2439, %v2451
        %v2453 = vlaneseq
        %v2454 = vshrl.u32 %v2453, 7
        %v2455 = vsub.s32 3, %v2454
        %v2456 = vrot.slane %v2439, %v2455
        %v2461 = vmul.f32 %v2429, %v2444
        %v2462 = vmul.f32 %v2430, %v2448
        %v2463 = vmul.f32 %v2431, %v2452
        %v2464 = vmul.f32 %v2437, %v2456
        %2465 = vst [vmem:[#allocation2 + $0x100] sm:$0xff] %v2461
        %2466 = vst [vmem:[#allocation2 + $0x108] sm:$0xff] %v2462
        %2467 = vst [vmem:[#allocation2 + $0x110] sm:$0xff] %v2463
        %2468 = vst [vmem:[#allocation2 + $0x118] sm:$0xff] %v2464
        %v2469 = vld [vmem:[%s3] sm:$0x3]
        %v2470 = vld [vmem:[#allocation2] sm:$0xff]
        %v2471 = vld [vmem:[#allocation2 + $0x8] sm:$0xff]
        %v2472 = vld [vmem:[#allocation2 + $0x10] sm:$0xff]
        %v2473 = vld [vmem:[#allocation2 + $0x18] sm:$0xff]
        %v2474 = vld [vmem:[#allocation2 + $0x20] sm:$0xff]
        %v2475 = vld [vmem:[#allocation2 + $0x28] sm:$0xff]
        %v2476 = vld [vmem:[#allocation2 + $0x30] sm:$0xff]
        %v2477 = vld [vmem:[#allocation2 + $0x38] sm:$0xff]
        %v2478 = vld [vmem:[#allocation2 + $0x40] sm:$0xff]
        %v2479 = vld [vmem:[#allocation2 + $0x48] sm:$0xff]
        %v2480 = vld [vmem:[#allocation2 + $0x50] sm:$0xff]
        %v2481 = vld [vmem:[#allocation2 + $0x58] sm:$0xff]
        %v2482 = vld [vmem:[#allocation2 + $0x60] sm:$0xff]
        %v2483 = vld [vmem:[#allocation2 + $0x68] sm:$0xff]
        %v2484 = vld [vmem:[#allocation2 + $0x70] sm:$0xff]
        %v2485 = vld [vmem:[#allocation2 + $0x78] sm:$0xff]
        %v2486 = vld [vmem:[#allocation2 + $0x80] sm:$0xff]
        %v2487 = vld [vmem:[#allocation2 + $0x88] sm:$0xff]
        %v2488 = vld [vmem:[#allocation2 + $0x90] sm:$0xff]
        %v2489 = vld [vmem:[#allocation2 + $0x98] sm:$0xff]
        %v2490 = vld [vmem:[#allocation2 + $0xa0] sm:$0xff]
        %v2491 = vld [vmem:[#allocation2 + $0xa8] sm:$0xff]
        %v2492 = vld [vmem:[#allocation2 + $0xb0] sm:$0xff]
        %v2493 = vld [vmem:[#allocation2 + $0xb8] sm:$0xff]
        %v2494 = vld [vmem:[#allocation2 + $0xc0] sm:$0xff]
        %v2495 = vld [vmem:[#allocation2 + $0xc8] sm:$0xff]
        %v2496 = vld [vmem:[#allocation2 + $0xd0] sm:$0xff]
        %v2497 = vld [vmem:[#allocation2 + $0xd8] sm:$0xff]
        %v2498 = vld [vmem:[#allocation2 + $0xe0] sm:$0xff]
        %v2499 = vld [vmem:[#allocation2 + $0xe8] sm:$0xff]
        %v2500 = vld [vmem:[#allocation2 + $0xf0] sm:$0xff]
        %v2501 = vld [vmem:[#allocation2 + $0xf8] sm:$0xff]
        %v2502 = vld [vmem:[#allocation2 + $0x100] sm:$0xff]
        %v2503 = vld [vmem:[#allocation2 + $0x108] sm:$0xff]
        %v2504 = vld [vmem:[#allocation2 + $0x110] sm:$0xff]
        %v2505 = vld [vmem:[#allocation2 + $0x118] sm:$0xff]
        %v2506 = vld [vmem:[%s4] sm:$0x3]
        %2508 = vset.pattern.permute.xlu0 0
        %2509 = vperm.xlu0 %2508, %v2506
        %v2510 = vpop.permute.xlu0 %2509
        %v2513 = vsel %vm776, %v2469, 0
        %2515 = vmatprep.subr.mxu0 0.0
        %2516 = vmatpush1.msra.mxu0 0.0
        %2517 = vmatprep.subr.mxu0 0.0
        %2518 = vmatpush1.msra.mxu0 0.0
        %2519 = vmatprep.subr.mxu0 0.0
        %2520 = vmatpush1.msra.mxu0 0.0
        %2521 = vmatprep.subr.mxu0 0.0
        %2522 = vmatpush1.msra.mxu0 0.0
        %2523 = vmatprep.subr.mxu0 0.0
        %2524 = vmatpush1.msra.mxu0 0.0
        %2525 = vmatprep.subr.mxu0 0.0
        %2526 = vmatpush1.msra.mxu0 0.0
        %2527 = vmatprep.subr.mxu0 0.0
        %2528 = vmatpush1.msra.mxu0 0.0
        %2529 = vmatprep.subr.mxu0 %v2503
        %2530 = vmatpush1.msra.mxu0 %v2502
        %2531 = vmatprep.subr.mxu0 %v2499
        %2532 = vmatpush1.msra.mxu0 %v2498
        %2533 = vmatprep.subr.mxu0 %v2495
        %2534 = vmatpush1.msra.mxu0 %v2494
        %2535 = vmatprep.subr.mxu0 %v2491
        %2536 = vmatpush1.msra.mxu0 %v2490
        %2537 = vmatprep.subr.mxu0 %v2487
        %2538 = vmatpush1.msra.mxu0 %v2486
        %2539 = vmatprep.subr.mxu0 %v2483
        %2540 = vmatpush1.msra.mxu0 %v2482
        %2541 = vmatprep.subr.mxu0 %v2479
        %2542 = vmatpush1.msra.mxu0 %v2478
        %2543 = vmatprep.subr.mxu0 %v2475
        %2544 = vmatpush1.msra.mxu0 %v2474
        %2545 = vmatprep.subr.mxu0 %v2471
        %2546 = vmatpush1.msra.mxu0 %v2470
        %2547 = vmatprep.subr.mxu0 0.0
        %2548 = vmatpush2.msra.mxu0 0.0
        %2549 = vmatprep.subr.mxu0 0.0
        %2550 = vmatpush2.msra.mxu0 0.0
        %2551 = vmatprep.subr.mxu0 0.0
        %2552 = vmatpush2.msra.mxu0 0.0
        %2553 = vmatprep.subr.mxu0 0.0
        %2554 = vmatpush2.msra.mxu0 0.0
        %2555 = vmatprep.subr.mxu0 0.0
        %2556 = vmatpush2.msra.mxu0 0.0
        %2557 = vmatprep.subr.mxu0 0.0
        %2558 = vmatpush2.msra.mxu0 0.0
        %2559 = vmatprep.subr.mxu0 0.0
        %2560 = vmatpush2.msra.mxu0 0.0
        %2561 = vmatprep.subr.mxu0 0.0
        %2562 = vmatpush2.msra.mxu0 0.0
        %2563 = vmatprep.subr.mxu0 0.0
        %2564 = vmatpush2.msra.mxu0 0.0
        %2565 = vmatprep.subr.mxu0 0.0
        %2566 = vmatpush2.msra.mxu0 0.0
        %2567 = vmatprep.subr.mxu0 0.0
        %2568 = vmatpush2.msra.mxu0 0.0
        %2569 = vmatprep.subr.mxu0 0.0
        %2570 = vmatpush2.msra.mxu0 0.0
        %2571 = vmatprep.subr.mxu0 0.0
        %2572 = vmatpush2.msra.mxu0 0.0
        %2573 = vmatprep.subr.mxu0 0.0
        %2574 = vmatpush2.msra.mxu0 0.0
        %2575 = vmatprep.subr.mxu0 0.0
        %2576 = vmatpush2.msra.mxu0 0.0
        %2577 = vmatprep.subr.mxu0 0.0
        %2578 = vmatpush2.msra.mxu0 0.0
        %2579 = vmatprep.mubr.f32.mxu0 0.0
        %2580 = vmatmul.mubr.f32.gmra.mxu0 %v2513
        %v2581 = vpop.f32.mrf.mxu0
        %v2582 = vadd.f32 %v2510, %v2581
        %v2583 = vpop.f32.mrf.mxu0
        %v2584 = vadd.f32 %v2510, %v2583
        %2585 = vdwg.mxu0
        %2586 = vmatprep.subr.mxu0 0.0
        %2587 = vmatpush1.msra.mxu0 0.0
        %2588 = vmatprep.subr.mxu0 0.0
        %2589 = vmatpush1.msra.mxu0 0.0
        %2590 = vmatprep.subr.mxu0 0.0
        %2591 = vmatpush1.msra.mxu0 0.0
        %2592 = vmatprep.subr.mxu0 0.0
        %2593 = vmatpush1.msra.mxu0 0.0
        %2594 = vmatprep.subr.mxu0 0.0
        %2595 = vmatpush1.msra.mxu0 0.0
        %2596 = vmatprep.subr.mxu0 0.0
        %2597 = vmatpush1.msra.mxu0 0.0
        %2598 = vmatprep.subr.mxu0 0.0
        %2599 = vmatpush1.msra.mxu0 0.0
        %2600 = vmatprep.subr.mxu0 %v2505
        %2601 = vmatpush1.msra.mxu0 %v2504
        %2602 = vmatprep.subr.mxu0 %v2501
        %2603 = vmatpush1.msra.mxu0 %v2500
        %2604 = vmatprep.subr.mxu0 %v2497
        %2605 = vmatpush1.msra.mxu0 %v2496
        %2606 = vmatprep.subr.mxu0 %v2493
        %2607 = vmatpush1.msra.mxu0 %v2492
        %2608 = vmatprep.subr.mxu0 %v2489
        %2609 = vmatpush1.msra.mxu0 %v2488
        %2610 = vmatprep.subr.mxu0 %v2485
        %2611 = vmatpush1.msra.mxu0 %v2484
        %2612 = vmatprep.subr.mxu0 %v2481
        %2613 = vmatpush1.msra.mxu0 %v2480
        %2614 = vmatprep.subr.mxu0 %v2477
        %2615 = vmatpush1.msra.mxu0 %v2476
        %2616 = vmatprep.subr.mxu0 %v2473
        %2617 = vmatpush1.msra.mxu0 %v2472
        %2618 = vmatprep.subr.mxu0 0.0
        %2619 = vmatpush2.msra.mxu0 0.0
        %2620 = vmatprep.subr.mxu0 0.0
        %2621 = vmatpush2.msra.mxu0 0.0
        %2622 = vmatprep.subr.mxu0 0.0
        %2623 = vmatpush2.msra.mxu0 0.0
        %2624 = vmatprep.subr.mxu0 0.0
        %2625 = vmatpush2.msra.mxu0 0.0
        %2626 = vmatprep.subr.mxu0 0.0
        %2627 = vmatpush2.msra.mxu0 0.0
        %2628 = vmatprep.subr.mxu0 0.0
        %2629 = vmatpush2.msra.mxu0 0.0
        %2630 = vmatprep.subr.mxu0 0.0
        %2631 = vmatpush2.msra.mxu0 0.0
        %2632 = vmatprep.subr.mxu0 0.0
        %2633 = vmatpush2.msra.mxu0 0.0
        %2634 = vmatprep.subr.mxu0 0.0
        %2635 = vmatpush2.msra.mxu0 0.0
        %2636 = vmatprep.subr.mxu0 0.0
        %2637 = vmatpush2.msra.mxu0 0.0
        %2638 = vmatprep.subr.mxu0 0.0
        %2639 = vmatpush2.msra.mxu0 0.0
        %2640 = vmatprep.subr.mxu0 0.0
        %2641 = vmatpush2.msra.mxu0 0.0
        %2642 = vmatprep.subr.mxu0 0.0
        %2643 = vmatpush2.msra.mxu0 0.0
        %2644 = vmatprep.subr.mxu0 0.0
        %2645 = vmatpush2.msra.mxu0 0.0
        %2646 = vmatprep.subr.mxu0 0.0
        %2647 = vmatpush2.msra.mxu0 0.0
        %2648 = vmatprep.subr.mxu0 0.0
        %2649 = vmatpush2.msra.mxu0 0.0
        %2650 = vmatprep.mubr.f32.mxu0 0.0
        %2651 = vmatmul.mubr.f32.gmra.mxu0 %v2513
        %v2652 = vpop.f32.mrf.mxu0
        %v2653 = vadd.f32 %v2510, %v2652
        %v2654 = vpop.f32.mrf.mxu0
        %v2655 = vadd.f32 %v2510, %v2654
        %2656 = vdwg.mxu0
        %v2659 = vcombine.low %v2582, %v2584
        %v2661 = vunpack.c.l.s4 1983009808
        %v2662 = vunpack.c.0.s8 %v2661
        %v2663 = vlaneseq
        %v2664 = vshrl.u32 %v2663, 7
        %v2665 = vsub.s32 %v2662, %v2664
        %v2666 = vrot.slane %v2659, %v2665
        %2668 = vst [vmem:[%s326] sm:$0xf] %v2666
        %v2671 = vcombine.low %v2653, %v2655
        %v2673 = vunpack.c.l.s4 1983009808
        %v2674 = vunpack.c.0.s8 %v2673
        %v2675 = vlaneseq
        %v2676 = vshrl.u32 %v2675, 7
        %v2677 = vsub.s32 %v2674, %v2676
        %v2678 = vrot.slane %v2671, %v2677
        %s2680 = scalar_lea.vmem %s326, 4 [#allocation9]
        %2681 = vst [vmem:[%s2680] sm:$0xf] %v2678
        %s2682 = sand.u32 %s185, 1
        %s2683 = scalar_lea.sflag [#allocation5], %s2682
        %s2684 = sand.u32 %s185, 1
        %s2685 = smul.addr %s2684, 8
        %s2686 = scalar_lea.vmem [#allocation9], %s2685
        // Predicated region
        $region61: #{tpu_custom_call.1} parent=47 // pred_check
          %p2687 = pneg %p195
        $region62: #{tpu_custom_call.1} parent=47 // pred_check_branch
          %2689 = sbr.rel (%p2687) target = $region64
        $region63: #{tpu_custom_call.1} parent=47 // pred_region
          %s2690 = smul.u32 2, %s25
          %s2692 = ssub.s32 128, 128
          %2693 = vsyncadd %s2683, %s2692
          %s2694 = smul.addr %s2690, 2
          %s2695 = smul.addr %s2694, 32
          %s2696 = scalar_lea.hbm %s7, %s2695
          %s2697 = sshll.u32 %s2686, 4
          %s2698 = int_to_ptr.vmem [resolvable:$true] %s2697
          %2703 = dma.vmem_to_hbm [thread:$0]  %s2698, 128, %s2696, %s2683, 64, 64, 4
        $region64: #{tpu_custom_call.1} parent=47 // pred_fallthru
          _
      $region48: #{tpu_custom_call.1} parent=5 // pred_fallthru
        _
      %p2704 = scmp.le.s32.totalorder 2, %s20
      // Predicated region
      $region65: #{tpu_custom_call.1} parent=5 // pred_check
        %p2705 = pneg %p2704
      $region66: #{tpu_custom_call.1} parent=5 // pred_check_branch
        %2707 = sbr.rel (%p2705) target = $region68
      $region67: #{tpu_custom_call.1} parent=5 // pred_region
        %s2708 = ssub.s32 %s20, 2
        // Predicated region
        $region69: #{tpu_custom_call.1} parent=67 // pred_check
          %p2709 = pneg %p201
        $region70: #{tpu_custom_call.1} parent=67 // pred_check_branch
          %2711 = sbr.rel (%p2709) target = $region72
        $region71: #{tpu_custom_call.1} parent=67 // pred_region
          %s2712 = sand.u32 %s186, 1
          %s2713 = scalar_lea.sflag [#allocation5], %s2712
          %s2714 = sand.u32 %s186, 1
          %s2715 = smul.addr %s2714, 8
          %s2716 = scalar_lea.vmem [#allocation9], %s2715
          %2717 = dma.done %s2713, 128
        $region72: #{tpu_custom_call.1} parent=67 // pred_fallthru
          _
      $region68: #{tpu_custom_call.1} parent=5 // pred_fallthru
        _
    $region6: #{tpu_custom_call.1} parent=1 // loop_footer
      %s24 = sadd.s32 1, %s20
    $region7: #{tpu_custom_call.1} parent=1 // loop_footer_branch
      %19 = sbr.rel target = $region3
    $region8: #{tpu_custom_call.1} parent=1 // loop_exit
      _
    %2718 = vsyncpa [#allocation4], 1
    %s2719 = scalar_lea.sflag [#allocation4], 1
    %2720 = vsyncpa %s2719, 1
    %2721 = vsyncpa [#allocation7], 1
    %2722 = vsyncpa [#allocation5], 1
    %s2723 = scalar_lea.sflag [#allocation5], 1
    %2724 = vsyncpa %s2723, 1

</llo_original>
